<compile_context>
chip_gen: v7x
topology: tpu7x:2x2x1
jax: 0.10.0
libtpu: 0.0.40
codegen_flags: <defaults>
</compile_context>

<pallas_src>
import math
import numpy as np
import jax
import jax.numpy as jnp
from jax import lax
from jax.experimental import pallas as pl
from jax.experimental.pallas import tpu as pltpu

# ---- model config (from Transformer5.py) ------------------------------------
INPUT_DIM = 11
EMBED_DIM = 256
FF_DIM = 512
NUM_HEADS = 4
NUM_LAYERS = 2
MAX_SEQ_LEN = 1
HEAD_DIM = EMBED_DIM // NUM_HEADS
LN_EPS = 1e-5
PAD_IN = 128          # lane-aligned padded input width

KPARAM_ORDER = [
    "emb_w", "emb_b", "pos",
    "qkv_w", "qkv_b", "o_w", "o_b",
    "ln1_w", "ln1_b", "ln2_w", "ln2_b",
    "lin1_w", "lin1_b", "lin2_w", "lin2_b",
    "fc_w", "fc_b",
]


def _layer_norm(x, w, b):
    mu = jnp.mean(x, axis=-1, keepdims=True)
    var = jnp.mean(jnp.square(x - mu), axis=-1, keepdims=True)
    return (x - mu) * lax.rsqrt(var + LN_EPS) * w + b


# ---- the Pallas kernel: whole forward pass for one problem, VMEM-resident ----
def transformer_kernel(x_ref, emb_w_ref, emb_b_ref, pos_ref,
                       qkv_w_ref, qkv_b_ref, o_w_ref, o_b_ref,
                       ln1_w_ref, ln1_b_ref, ln2_w_ref, ln2_b_ref,
                       lin1_w_ref, lin1_b_ref, lin2_w_ref, lin2_b_ref,
                       fc_w_ref, fc_b_ref, out_ref):
    x = x_ref[...]                                            # (B, 128) f32, zero-padded
    B = x.shape[0]

    # embedding + positional encoding (bf16 matmul, f32 accumulate)
    h = jnp.dot(x.astype(jnp.bfloat16), emb_w_ref[...],
                preferred_element_type=jnp.float32)
    h = h + emb_b_ref[...] + pos_ref[...]                     # (B, E) f32

    for l in range(NUM_LAYERS):                               # static unroll
        # ---- multi-head self-attention (post-norm layer) ----
        hb = h.astype(jnp.bfloat16)
        # ONE fused lane-dense QKV matmul per layer: (B, 768)
        qkv = jnp.dot(hb, qkv_w_ref[l],
                      preferred_element_type=jnp.float32) + qkv_b_ref[l]
        head_outs = []
        for hh in range(NUM_HEADS):                           # static unroll
            lo = hh * HEAD_DIM
            q = qkv[:, lo:lo + HEAD_DIM]                               # scale pre-folded
            k = qkv[:, EMBED_DIM + lo:EMBED_DIM + lo + HEAD_DIM]
            v = qkv[:, 2 * EMBED_DIM + lo:2 * EMBED_DIM + lo + HEAD_DIM]
            # scores = q @ k^T without materializing a transpose
            s = lax.dot_general(q, k, (((1,), (1,)), ((), ())),
                                preferred_element_type=jnp.float32)    # (B, B)
            s = s - jnp.max(s, axis=-1, keepdims=True)
            p = jnp.exp(s)
            p = p * pl.reciprocal(jnp.sum(p, axis=-1, keepdims=True),
                                  approx=True)
            head_outs.append(jnp.dot(p, v,
                                     preferred_element_type=jnp.float32))  # (B, Dh)
        # lane-dense concat of heads, then ONE full-width out-projection
        attn_in = jnp.concatenate(head_outs, axis=-1).astype(jnp.bfloat16)  # (B, E)
        attn = jnp.dot(attn_in, o_w_ref[l],
                       preferred_element_type=jnp.float32) + o_b_ref[l]
        h = _layer_norm(h + attn, ln1_w_ref[l], ln1_b_ref[l])

        # ---- feed-forward ----
        ff = jnp.dot(h.astype(jnp.bfloat16), lin1_w_ref[l],
                     preferred_element_type=jnp.float32) + lin1_b_ref[l]
        ff = jnp.maximum(ff, 0.0)                             # ReLU
        ff = jnp.dot(ff.astype(jnp.bfloat16), lin2_w_ref[l],
                     preferred_element_type=jnp.float32) + lin2_b_ref[l]
        h = _layer_norm(h + ff, ln2_w_ref[l], ln2_b_ref[l])

    # fc_out as a VPU multiply + lane reduce (avoids an N=1 MXU matmul)
    out_ref[...] = (jnp.sum(h * fc_w_ref[...], axis=-1, keepdims=True)
                    + fc_b_ref[...])


def _const_spec(arr):
    """Full-array block whose index never changes -> weight stays VMEM-resident."""
    zeros = (0,) * arr.ndim
    return pl.BlockSpec(arr.shape, lambda n, _z=zeros: _z)


# ---- wrapper -----------------------------------------------------------------
@jax.jit
def transformer_forward(srcs, kparams):
    """srcs: (N, B, S, INPUT_DIM) — N independent problems sharing the weights."""
    N, B, S, D = srcs.shape
    assert S == MAX_SEQ_LEN and D == INPUT_DIM
    x = srcs.reshape(N, B, D)
    x = jnp.pad(x, ((0, 0), (0, 0), (0, PAD_IN - D)))          # lane-aligned input
    args = [x] + [kparams[k] for k in KPARAM_ORDER]
    in_specs = ([pl.BlockSpec((None, B, PAD_IN), lambda n: (n, 0, 0))]
                + [_const_spec(kparams[k]) for k in KPARAM_ORDER])
    return pl.pallas_call(
        transformer_kernel,
        grid=(N,),
        out_shape=jax.ShapeDtypeStruct((N, B, 1), jnp.float32),
        in_specs=in_specs,
        out_specs=pl.BlockSpec((None, B, 1), lambda n: (n, 0, 0)),
        compiler_params=pltpu.CompilerParams(
            dimension_semantics=("parallel",),
            vmem_limit_bytes=32 << 20),
    )(*args)


# ---- canonical (PyTorch-layout-equivalent) parameters -------------------------
def make_canonical_params(key):
    keys = iter(jax.random.split(key, 32))
    init = lambda shape, s=0.02: s * jax.random.normal(next(keys), shape, jnp.float32)
    stack = lambda shape: jnp.stack([init(shape) for _ in range(NUM_LAYERS)])
    return {
        "emb_w": init((INPUT_DIM, EMBED_DIM)),
        "emb_b": init((EMBED_DIM,)),
        # nn.Parameter(torch.zeros(1, max_seq_len, embed_dim))
        "pos": jnp.zeros((1, MAX_SEQ_LEN, EMBED_DIM), jnp.float32),
        "inproj_w": stack((EMBED_DIM, 3 * EMBED_DIM)),   # columns [Wq | Wk | Wv]
        "inproj_b": stack((3 * EMBED_DIM,)),
        "outproj_w": stack((EMBED_DIM, EMBED_DIM)),
        "outproj_b": stack((EMBED_DIM,)),
        "ln1_w": jnp.ones((NUM_LAYERS, EMBED_DIM), jnp.float32),
        "ln1_b": jnp.zeros((NUM_LAYERS, EMBED_DIM), jnp.float32),
        "ln2_w": jnp.ones((NUM_LAYERS, EMBED_DIM), jnp.float32),
        "ln2_b": jnp.zeros((NUM_LAYERS, EMBED_DIM), jnp.float32),
        "lin1_w": stack((EMBED_DIM, FF_DIM)),
        "lin1_b": stack((FF_DIM,)),
        "lin2_w": stack((FF_DIM, EMBED_DIM)),
        "lin2_b": stack((EMBED_DIM,)),
        "fc_w": init((EMBED_DIM, 1)),
        "fc_b": init((1,)),
    }


# ---- one-time layout plumbing: canonical -> kernel-friendly layout ------------
def prepare_kernel_params(p):
    scale = 1.0 / math.sqrt(HEAD_DIM)
    bf16 = jnp.bfloat16
    # fold 1/sqrt(Dh) into the Q columns (and Q bias) of the fused QKV weight
    col_scale = jnp.concatenate([
        jnp.full((EMBED_DIM,), scale, jnp.float32),
        jnp.ones((2 * EMBED_DIM,), jnp.float32)])
    qkv_w = jnp.stack([(p["inproj_w"][l] * col_scale[None, :]).astype(bf16)
                       for l in range(NUM_LAYERS)])              # (L, E, 3E) bf16
    qkv_b = jnp.stack([(p["inproj_b"][l] * col_scale).reshape(1, 3 * EMBED_DIM)
                       for l in range(NUM_LAYERS)])              # (L, 1, 3E) f32
    # pad embedding rows to 128 (lane-aligned contraction)
    emb_w = jnp.zeros((PAD_IN, EMBED_DIM), jnp.float32)
    emb_w = emb_w.at[:INPUT_DIM].set(p["emb_w"]).astype(bf16)
    return {
        "emb_w": emb_w,                                          # (128, E)   bf16
        "emb_b": p["emb_b"].reshape(1, EMBED_DIM),
        "pos": p["pos"].reshape(MAX_SEQ_LEN, EMBED_DIM),
        "qkv_w": qkv_w,
        "qkv_b": qkv_b,
        "o_w": p["outproj_w"].astype(bf16),                      # (L, E, E)  bf16
        "o_b": p["outproj_b"].reshape(NUM_LAYERS, 1, EMBED_DIM),
        "ln1_w": p["ln1_w"].reshape(NUM_LAYERS, 1, EMBED_DIM),
        "ln1_b": p["ln1_b"].reshape(NUM_LAYERS, 1, EMBED_DIM),
        "ln2_w": p["ln2_w"].reshape(NUM_LAYERS, 1, EMBED_DIM),
        "ln2_b": p["ln2_b"].reshape(NUM_LAYERS, 1, EMBED_DIM),
        "lin1_w": p["lin1_w"].astype(bf16),                      # (L, E, FF) bf16
        "lin1_b": p["lin1_b"].reshape(NUM_LAYERS, 1, FF_DIM),
        "lin2_w": p["lin2_w"].astype(bf16),                      # (L, FF, E) bf16
        "lin2_b": p["lin2_b"].reshape(NUM_LAYERS, 1, EMBED_DIM),
        "fc_w": p["fc_w"].reshape(1, EMBED_DIM),
        "fc_b": p["fc_b"].reshape(1, 1),
    }


# ---- pure-JAX reference on canonical params (standard MHA formulation) --------
def reference_forward(src, p, use_bf16=True):
    B, S, D = src.shape
    cast = (lambda a: a.astype(jnp.bfloat16)) if use_bf16 else (lambda a: a)
    x = src.reshape(B, D)
    h = jnp.dot(cast(x), cast(p["emb_w"]), preferred_element_type=jnp.float32)
    h = h + p["emb_b"][None, :] + p["pos"][0, 0][None, :]
    for l in range(NUM_LAYERS):
        hb = cast(h)
        qkv = jnp.dot(hb, cast(p["inproj_w"][l]),
                      preferred_element_type=jnp.float32) + p["inproj_b"][l][None, :]
        q, k, v = jnp.split(qkv, 3, axis=-1)
        qh = q.reshape(B, NUM_HEADS, HEAD_DIM)
        kh = k.reshape(B, NUM_HEADS, HEAD_DIM)
        vh = v.reshape(B, NUM_HEADS, HEAD_DIM)
        s = jnp.einsum("qhd,khd->hqk", qh, kh) / math.sqrt(HEAD_DIM)
        pr = jax.nn.softmax(s, axis=-1)
        a = jnp.einsum("hqk,khd->qhd", pr, vh).reshape(B, EMBED_DIM)
        a = jnp.dot(cast(a), cast(p["outproj_w"][l]),
                    preferred_element_type=jnp.float32) + p["outproj_b"][l][None, :]
        h = _layer_norm(h + a, p["ln1_w"][l][None, :], p["ln1_b"][l][None, :])
        ff = jnp.dot(cast(h), cast(p["lin1_w"][l]),
                     preferred_element_type=jnp.float32) + p["lin1_b"][l][None, :]
        ff = jnp.maximum(ff, 0.0)
        ff = jnp.dot(cast(ff), cast(p["lin2_w"][l]),
                     preferred_element_type=jnp.float32) + p["lin2_b"][l][None, :]
        h = _layer_norm(h + ff, p["ln2_w"][l][None, :], p["ln2_b"][l][None, :])
    return jnp.dot(h, p["fc_w"]) + p["fc_b"][None, :]


if __name__ == "__main__":
    key = jax.random.PRNGKey(0)
    pkey, xkey = jax.random.split(key)
    canon = make_canonical_params(pkey)
    kparams = prepare_kernel_params(canon)

    N, B, S = 2, 8, MAX_SEQ_LEN          # two small independent problems
    srcs = jax.random.normal(xkey, (N, B, S, INPUT_DIM), jnp.float32)

    out = jax.block_until_ready(transformer_forward(srcs, kparams))   # (N, B, 1)

    for n in range(N):
        # match the kernel's bf16 matmul / f32 accumulate numerics
        ref = reference_forward(srcs[n], canon, use_bf16=True)
        np.testing.assert_allclose(np.asarray(out[n]),
                                   np.asarray(ref, dtype=np.float32),
                                   rtol=5e-3, atol=5e-3)
        # loose check against the full-f32 (PyTorch-like) math
        ref_f32 = reference_forward(srcs[n], canon, use_bf16=False)
        np.testing.assert_allclose(np.asarray(out[n]),
                                   np.asarray(ref_f32, dtype=np.float32),
                                   rtol=5e-2, atol=5e-2)
    print("KERNEL_OK")
</pallas_src>

<mosaic_0001>
module attributes {stable_mosaic.version = 11 : i64} {
  func.func @transformer_kernel(%arg0: i32, %arg1: memref<1x8x128xf32, #tpu.memory_space<vmem>>, %arg2: memref<128x256xbf16, #tpu.memory_space<vmem>>, %arg3: memref<1x256xf32, #tpu.memory_space<vmem>>, %arg4: memref<1x256xf32, #tpu.memory_space<vmem>>, %arg5: memref<2x256x768xbf16, #tpu.memory_space<vmem>>, %arg6: memref<2x1x768xf32, #tpu.memory_space<vmem>>, %arg7: memref<2x256x256xbf16, #tpu.memory_space<vmem>>, %arg8: memref<2x1x256xf32, #tpu.memory_space<vmem>>, %arg9: memref<2x1x256xf32, #tpu.memory_space<vmem>>, %arg10: memref<2x1x256xf32, #tpu.memory_space<vmem>>, %arg11: memref<2x1x256xf32, #tpu.memory_space<vmem>>, %arg12: memref<2x1x256xf32, #tpu.memory_space<vmem>>, %arg13: memref<2x256x512xbf16, #tpu.memory_space<vmem>>, %arg14: memref<2x1x512xf32, #tpu.memory_space<vmem>>, %arg15: memref<2x512x256xbf16, #tpu.memory_space<vmem>>, %arg16: memref<2x1x256xf32, #tpu.memory_space<vmem>>, %arg17: memref<1x256xf32, #tpu.memory_space<vmem>>, %arg18: memref<1x1xf32, #tpu.memory_space<vmem>>, %arg19: memref<1x8x1xf32, #tpu.memory_space<vmem>>) attributes {dimension_semantics = [#tpu.dimension_semantics<parallel>], iteration_bounds = array<i64: 2>, scalar_prefetch = 0 : i64, scratch_operands = 0 : i64, tpu.core_type = #tpu.core_type<tc>, window_params = [{transform_indices = @transform_0, window_bounds = array<i64: 1, 8, 128>}, {pipeline_mode = #tpu.pipeline_mode<synchronous>, transform_indices = @transform_1, window_bounds = array<i64: 128, 256>}, {pipeline_mode = #tpu.pipeline_mode<synchronous>, transform_indices = @transform_2, window_bounds = array<i64: 1, 256>}, {pipeline_mode = #tpu.pipeline_mode<synchronous>, transform_indices = @transform_3, window_bounds = array<i64: 1, 256>}, {pipeline_mode = #tpu.pipeline_mode<synchronous>, transform_indices = @transform_4, window_bounds = array<i64: 2, 256, 768>}, {pipeline_mode = #tpu.pipeline_mode<synchronous>, transform_indices = @transform_5, window_bounds = array<i64: 2, 1, 768>}, {pipeline_mode = #tpu.pipeline_mode<synchronous>, transform_indices = @transform_6, window_bounds = array<i64: 2, 256, 256>}, {pipeline_mode = #tpu.pipeline_mode<synchronous>, transform_indices = @transform_7, window_bounds = array<i64: 2, 1, 256>}, {pipeline_mode = #tpu.pipeline_mode<synchronous>, transform_indices = @transform_8, window_bounds = array<i64: 2, 1, 256>}, {pipeline_mode = #tpu.pipeline_mode<synchronous>, transform_indices = @transform_9, window_bounds = array<i64: 2, 1, 256>}, {pipeline_mode = #tpu.pipeline_mode<synchronous>, transform_indices = @transform_10, window_bounds = array<i64: 2, 1, 256>}, {pipeline_mode = #tpu.pipeline_mode<synchronous>, transform_indices = @transform_11, window_bounds = array<i64: 2, 1, 256>}, {pipeline_mode = #tpu.pipeline_mode<synchronous>, transform_indices = @transform_12, window_bounds = array<i64: 2, 256, 512>}, {pipeline_mode = #tpu.pipeline_mode<synchronous>, transform_indices = @transform_13, window_bounds = array<i64: 2, 1, 512>}, {pipeline_mode = #tpu.pipeline_mode<synchronous>, transform_indices = @transform_14, window_bounds = array<i64: 2, 512, 256>}, {pipeline_mode = #tpu.pipeline_mode<synchronous>, transform_indices = @transform_15, window_bounds = array<i64: 2, 1, 256>}, {pipeline_mode = #tpu.pipeline_mode<synchronous>, transform_indices = @transform_16, window_bounds = array<i64: 1, 256>}, {pipeline_mode = #tpu.pipeline_mode<synchronous>, transform_indices = @transform_17, window_bounds = array<i64: 1, 1>}, {transform_indices = @transform_18, window_bounds = array<i64: 1, 8, 1>}]} {
    %c0 = arith.constant 0 : index
    %c0_0 = arith.constant 0 : index
    %c0_1 = arith.constant 0 : index
    %0 = vector.load %arg1[%c0, %c0_0, %c0_1] : memref<1x8x128xf32, #tpu.memory_space<vmem>>, vector<1x8x128xf32>
    %1 = vector.shape_cast %0 : vector<1x8x128xf32> to vector<8x128xf32>
    %2 = arith.truncf %1 : vector<8x128xf32> to vector<8x128xbf16>
    %c0_2 = arith.constant 0 : index
    %c0_3 = arith.constant 0 : index
    %3 = vector.load %arg2[%c0_2, %c0_3] : memref<128x256xbf16, #tpu.memory_space<vmem>>, vector<128x256xbf16>
    %cst = arith.constant dense<0.000000e+00> : vector<8x256xf32>
    %4 = tpu.matmul %2, %3, %cst {dimension_numbers = #tpu.dot_dimension_numbers<[1], [0], [0], [1], [0, 0, 1, 1], [], []>} : vector<8x128xbf16>, vector<128x256xbf16>, vector<8x256xf32> -> vector<8x256xf32>
    %c0_4 = arith.constant 0 : index
    %c0_5 = arith.constant 0 : index
    %5 = vector.load %arg3[%c0_4, %c0_5] : memref<1x256xf32, #tpu.memory_space<vmem>>, vector<1x256xf32>
    %6 = vector.broadcast %5 : vector<1x256xf32> to vector<8x256xf32>
    %7 = arith.addf %4, %6 : vector<8x256xf32>
    %c0_6 = arith.constant 0 : index
    %c0_7 = arith.constant 0 : index
    %8 = vector.load %arg4[%c0_6, %c0_7] : memref<1x256xf32, #tpu.memory_space<vmem>>, vector<1x256xf32>
    %9 = vector.broadcast %8 : vector<1x256xf32> to vector<8x256xf32>
    %10 = arith.addf %7, %9 : vector<8x256xf32>
    %11 = arith.truncf %10 : vector<8x256xf32> to vector<8x256xbf16>
    %c0_8 = arith.constant 0 : index
    %c0_9 = arith.constant 0 : index
    %c0_10 = arith.constant 0 : index
    %12 = vector.load %arg5[%c0_8, %c0_9, %c0_10] : memref<2x256x768xbf16, #tpu.memory_space<vmem>>, vector<1x256x768xbf16>
    %13 = vector.shape_cast %12 : vector<1x256x768xbf16> to vector<256x768xbf16>
    %cst_11 = arith.constant dense<0.000000e+00> : vector<8x768xf32>
    %14 = tpu.matmul %11, %13, %cst_11 {dimension_numbers = #tpu.dot_dimension_numbers<[1], [0], [0], [1], [0, 0, 1, 1], [], []>} : vector<8x256xbf16>, vector<256x768xbf16>, vector<8x768xf32> -> vector<8x768xf32>
    %c0_12 = arith.constant 0 : index
    %c0_13 = arith.constant 0 : index
    %c0_14 = arith.constant 0 : index
    %15 = vector.load %arg6[%c0_12, %c0_13, %c0_14] : memref<2x1x768xf32, #tpu.memory_space<vmem>>, vector<1x1x768xf32>
    %16 = vector.shape_cast %15 : vector<1x1x768xf32> to vector<1x768xf32>
    %17 = vector.broadcast %16 : vector<1x768xf32> to vector<8x768xf32>
    %18 = arith.addf %14, %17 : vector<8x768xf32>
    %19 = vector.extract_strided_slice %18 {offsets = [0, 0], sizes = [8, 64], strides = [1, 1]} : vector<8x768xf32> to vector<8x64xf32>
    %20 = vector.extract_strided_slice %18 {offsets = [0, 256], sizes = [8, 64], strides = [1, 1]} : vector<8x768xf32> to vector<8x64xf32>
    %21 = vector.extract_strided_slice %18 {offsets = [0, 512], sizes = [8, 64], strides = [1, 1]} : vector<8x768xf32> to vector<8x64xf32>
    %cst_15 = arith.constant dense<0.000000e+00> : vector<8x8xf32>
    %22 = tpu.matmul %19, %20, %cst_15 {dimension_numbers = #tpu.dot_dimension_numbers<[1], [1], [0], [0], [0, 0, 1, 0], [], []>} : vector<8x64xf32>, vector<8x64xf32>, vector<8x8xf32> -> vector<8x8xf32>
    %cst_16 = arith.constant dense<0xFF800000> : vector<8xf32>
    %23 = vector.multi_reduction <maximumf>, %22, %cst_16 [1] : vector<8x8xf32> to vector<8xf32>
    %24 = vector.shape_cast %23 : vector<8xf32> to vector<8x1xf32>
    %25 = vector.broadcast %24 : vector<8x1xf32> to vector<8x8xf32>
    %26 = arith.subf %22, %25 : vector<8x8xf32>
    %27 = math.exp %26 : vector<8x8xf32>
    %cst_17 = arith.constant dense<0.000000e+00> : vector<8xf32>
    %28 = vector.multi_reduction <add>, %27, %cst_17 [1] : vector<8x8xf32> to vector<8xf32>
    %29 = vector.shape_cast %28 : vector<8xf32> to vector<8x1xf32>
    %30 = tpu.reciprocal %29 {approx = true} : vector<8x1xf32> -> vector<8x1xf32>
    %31 = vector.broadcast %30 : vector<8x1xf32> to vector<8x8xf32>
    %32 = arith.mulf %27, %31 : vector<8x8xf32>
    %cst_18 = arith.constant dense<0.000000e+00> : vector<8x64xf32>
    %33 = tpu.matmul %32, %21, %cst_18 {dimension_numbers = #tpu.dot_dimension_numbers<[1], [0], [0], [1], [0, 0, 1, 1], [], []>} : vector<8x8xf32>, vector<8x64xf32>, vector<8x64xf32> -> vector<8x64xf32>
    %34 = vector.extract_strided_slice %18 {offsets = [0, 64], sizes = [8, 64], strides = [1, 1]} : vector<8x768xf32> to vector<8x64xf32>
    %35 = vector.extract_strided_slice %18 {offsets = [0, 320], sizes = [8, 64], strides = [1, 1]} : vector<8x768xf32> to vector<8x64xf32>
    %36 = vector.extract_strided_slice %18 {offsets = [0, 576], sizes = [8, 64], strides = [1, 1]} : vector<8x768xf32> to vector<8x64xf32>
    %cst_19 = arith.constant dense<0.000000e+00> : vector<8x8xf32>
    %37 = tpu.matmul %34, %35, %cst_19 {dimension_numbers = #tpu.dot_dimension_numbers<[1], [1], [0], [0], [0, 0, 1, 0], [], []>} : vector<8x64xf32>, vector<8x64xf32>, vector<8x8xf32> -> vector<8x8xf32>
    %cst_20 = arith.constant dense<0xFF800000> : vector<8xf32>
    %38 = vector.multi_reduction <maximumf>, %37, %cst_20 [1] : vector<8x8xf32> to vector<8xf32>
    %39 = vector.shape_cast %38 : vector<8xf32> to vector<8x1xf32>
    %40 = vector.broadcast %39 : vector<8x1xf32> to vector<8x8xf32>
    %41 = arith.subf %37, %40 : vector<8x8xf32>
    %42 = math.exp %41 : vector<8x8xf32>
    %cst_21 = arith.constant dense<0.000000e+00> : vector<8xf32>
    %43 = vector.multi_reduction <add>, %42, %cst_21 [1] : vector<8x8xf32> to vector<8xf32>
    %44 = vector.shape_cast %43 : vector<8xf32> to vector<8x1xf32>
    %45 = tpu.reciprocal %44 {approx = true} : vector<8x1xf32> -> vector<8x1xf32>
    %46 = vector.broadcast %45 : vector<8x1xf32> to vector<8x8xf32>
    %47 = arith.mulf %42, %46 : vector<8x8xf32>
    %cst_22 = arith.constant dense<0.000000e+00> : vector<8x64xf32>
    %48 = tpu.matmul %47, %36, %cst_22 {dimension_numbers = #tpu.dot_dimension_numbers<[1], [0], [0], [1], [0, 0, 1, 1], [], []>} : vector<8x8xf32>, vector<8x64xf32>, vector<8x64xf32> -> vector<8x64xf32>
    %49 = vector.extract_strided_slice %18 {offsets = [0, 128], sizes = [8, 64], strides = [1, 1]} : vector<8x768xf32> to vector<8x64xf32>
    %50 = vector.extract_strided_slice %18 {offsets = [0, 384], sizes = [8, 64], strides = [1, 1]} : vector<8x768xf32> to vector<8x64xf32>
    %51 = vector.extract_strided_slice %18 {offsets = [0, 640], sizes = [8, 64], strides = [1, 1]} : vector<8x768xf32> to vector<8x64xf32>
    %cst_23 = arith.constant dense<0.000000e+00> : vector<8x8xf32>
    %52 = tpu.matmul %49, %50, %cst_23 {dimension_numbers = #tpu.dot_dimension_numbers<[1], [1], [0], [0], [0, 0, 1, 0], [], []>} : vector<8x64xf32>, vector<8x64xf32>, vector<8x8xf32> -> vector<8x8xf32>
    %cst_24 = arith.constant dense<0xFF800000> : vector<8xf32>
    %53 = vector.multi_reduction <maximumf>, %52, %cst_24 [1] : vector<8x8xf32> to vector<8xf32>
    %54 = vector.shape_cast %53 : vector<8xf32> to vector<8x1xf32>
    %55 = vector.broadcast %54 : vector<8x1xf32> to vector<8x8xf32>
    %56 = arith.subf %52, %55 : vector<8x8xf32>
    %57 = math.exp %56 : vector<8x8xf32>
    %cst_25 = arith.constant dense<0.000000e+00> : vector<8xf32>
    %58 = vector.multi_reduction <add>, %57, %cst_25 [1] : vector<8x8xf32> to vector<8xf32>
    %59 = vector.shape_cast %58 : vector<8xf32> to vector<8x1xf32>
    %60 = tpu.reciprocal %59 {approx = true} : vector<8x1xf32> -> vector<8x1xf32>
    %61 = vector.broadcast %60 : vector<8x1xf32> to vector<8x8xf32>
    %62 = arith.mulf %57, %61 : vector<8x8xf32>
    %cst_26 = arith.constant dense<0.000000e+00> : vector<8x64xf32>
    %63 = tpu.matmul %62, %51, %cst_26 {dimension_numbers = #tpu.dot_dimension_numbers<[1], [0], [0], [1], [0, 0, 1, 1], [], []>} : vector<8x8xf32>, vector<8x64xf32>, vector<8x64xf32> -> vector<8x64xf32>
    %64 = vector.extract_strided_slice %18 {offsets = [0, 192], sizes = [8, 64], strides = [1, 1]} : vector<8x768xf32> to vector<8x64xf32>
    %65 = vector.extract_strided_slice %18 {offsets = [0, 448], sizes = [8, 64], strides = [1, 1]} : vector<8x768xf32> to vector<8x64xf32>
    %66 = vector.extract_strided_slice %18 {offsets = [0, 704], sizes = [8, 64], strides = [1, 1]} : vector<8x768xf32> to vector<8x64xf32>
    %cst_27 = arith.constant dense<0.000000e+00> : vector<8x8xf32>
    %67 = tpu.matmul %64, %65, %cst_27 {dimension_numbers = #tpu.dot_dimension_numbers<[1], [1], [0], [0], [0, 0, 1, 0], [], []>} : vector<8x64xf32>, vector<8x64xf32>, vector<8x8xf32> -> vector<8x8xf32>
    %cst_28 = arith.constant dense<0xFF800000> : vector<8xf32>
    %68 = vector.multi_reduction <maximumf>, %67, %cst_28 [1] : vector<8x8xf32> to vector<8xf32>
    %69 = vector.shape_cast %68 : vector<8xf32> to vector<8x1xf32>
    %70 = vector.broadcast %69 : vector<8x1xf32> to vector<8x8xf32>
    %71 = arith.subf %67, %70 : vector<8x8xf32>
    %72 = math.exp %71 : vector<8x8xf32>
    %cst_29 = arith.constant dense<0.000000e+00> : vector<8xf32>
    %73 = vector.multi_reduction <add>, %72, %cst_29 [1] : vector<8x8xf32> to vector<8xf32>
    %74 = vector.shape_cast %73 : vector<8xf32> to vector<8x1xf32>
    %75 = tpu.reciprocal %74 {approx = true} : vector<8x1xf32> -> vector<8x1xf32>
    %76 = vector.broadcast %75 : vector<8x1xf32> to vector<8x8xf32>
    %77 = arith.mulf %72, %76 : vector<8x8xf32>
    %cst_30 = arith.constant dense<0.000000e+00> : vector<8x64xf32>
    %78 = tpu.matmul %77, %66, %cst_30 {dimension_numbers = #tpu.dot_dimension_numbers<[1], [0], [0], [1], [0, 0, 1, 1], [], []>} : vector<8x8xf32>, vector<8x64xf32>, vector<8x64xf32> -> vector<8x64xf32>
    %79 = tpu.concatenate %33, %48, %63, %78 in 1 : vector<8x64xf32>, vector<8x64xf32>, vector<8x64xf32>, vector<8x64xf32> -> vector<8x256xf32>
    %80 = arith.truncf %79 : vector<8x256xf32> to vector<8x256xbf16>
    %c0_31 = arith.constant 0 : index
    %c0_32 = arith.constant 0 : index
    %c0_33 = arith.constant 0 : index
    %81 = vector.load %arg7[%c0_31, %c0_32, %c0_33] : memref<2x256x256xbf16, #tpu.memory_space<vmem>>, vector<1x256x256xbf16>
    %82 = vector.shape_cast %81 : vector<1x256x256xbf16> to vector<256x256xbf16>
    %cst_34 = arith.constant dense<0.000000e+00> : vector<8x256xf32>
    %83 = tpu.matmul %80, %82, %cst_34 {dimension_numbers = #tpu.dot_dimension_numbers<[1], [0], [0], [1], [0, 0, 1, 1], [], []>} : vector<8x256xbf16>, vector<256x256xbf16>, vector<8x256xf32> -> vector<8x256xf32>
    %c0_35 = arith.constant 0 : index
    %c0_36 = arith.constant 0 : index
    %c0_37 = arith.constant 0 : index
    %84 = vector.load %arg8[%c0_35, %c0_36, %c0_37] : memref<2x1x256xf32, #tpu.memory_space<vmem>>, vector<1x1x256xf32>
    %85 = vector.shape_cast %84 : vector<1x1x256xf32> to vector<1x256xf32>
    %86 = vector.broadcast %85 : vector<1x256xf32> to vector<8x256xf32>
    %87 = arith.addf %83, %86 : vector<8x256xf32>
    %88 = arith.addf %10, %87 : vector<8x256xf32>
    %c0_38 = arith.constant 0 : index
    %c0_39 = arith.constant 0 : index
    %c0_40 = arith.constant 0 : index
    %89 = vector.load %arg9[%c0_38, %c0_39, %c0_40] : memref<2x1x256xf32, #tpu.memory_space<vmem>>, vector<1x1x256xf32>
    %90 = vector.shape_cast %89 : vector<1x1x256xf32> to vector<1x256xf32>
    %c0_41 = arith.constant 0 : index
    %c0_42 = arith.constant 0 : index
    %c0_43 = arith.constant 0 : index
    %91 = vector.load %arg10[%c0_41, %c0_42, %c0_43] : memref<2x1x256xf32, #tpu.memory_space<vmem>>, vector<1x1x256xf32>
    %92 = vector.shape_cast %91 : vector<1x1x256xf32> to vector<1x256xf32>
    %cst_44 = arith.constant dense<0.000000e+00> : vector<8xf32>
    %93 = vector.multi_reduction <add>, %88, %cst_44 [1] : vector<8x256xf32> to vector<8xf32>
    %94 = vector.shape_cast %93 : vector<8xf32> to vector<8x1xf32>
    %cst_45 = arith.constant 2.560000e+02 : f32
    %95 = vector.broadcast %cst_45 : f32 to vector<8x1xf32>
    %96 = arith.divf %94, %95 : vector<8x1xf32>
    %97 = vector.broadcast %96 : vector<8x1xf32> to vector<8x256xf32>
    %98 = arith.subf %88, %97 : vector<8x256xf32>
    %99 = arith.mulf %98, %98 : vector<8x256xf32>
    %cst_46 = arith.constant dense<0.000000e+00> : vector<8xf32>
    %100 = vector.multi_reduction <add>, %99, %cst_46 [1] : vector<8x256xf32> to vector<8xf32>
    %101 = vector.shape_cast %100 : vector<8xf32> to vector<8x1xf32>
    %cst_47 = arith.constant 2.560000e+02 : f32
    %102 = vector.broadcast %cst_47 : f32 to vector<8x1xf32>
    %103 = arith.divf %101, %102 : vector<8x1xf32>
    %104 = vector.broadcast %96 : vector<8x1xf32> to vector<8x256xf32>
    %105 = arith.subf %88, %104 : vector<8x256xf32>
    %cst_48 = arith.constant 9.99999974E-6 : f32
    %106 = vector.broadcast %cst_48 : f32 to vector<8x1xf32>
    %107 = arith.addf %103, %106 : vector<8x1xf32>
    %108 = math.rsqrt %107 : vector<8x1xf32>
    %109 = vector.broadcast %108 : vector<8x1xf32> to vector<8x256xf32>
    %110 = arith.mulf %105, %109 : vector<8x256xf32>
    %111 = vector.broadcast %90 : vector<1x256xf32> to vector<8x256xf32>
    %112 = arith.mulf %110, %111 : vector<8x256xf32>
    %113 = vector.broadcast %92 : vector<1x256xf32> to vector<8x256xf32>
    %114 = arith.addf %112, %113 : vector<8x256xf32>
    %115 = arith.truncf %114 : vector<8x256xf32> to vector<8x256xbf16>
    %c0_49 = arith.constant 0 : index
    %c0_50 = arith.constant 0 : index
    %c0_51 = arith.constant 0 : index
    %116 = vector.load %arg13[%c0_49, %c0_50, %c0_51] : memref<2x256x512xbf16, #tpu.memory_space<vmem>>, vector<1x256x512xbf16>
    %117 = vector.shape_cast %116 : vector<1x256x512xbf16> to vector<256x512xbf16>
    %cst_52 = arith.constant dense<0.000000e+00> : vector<8x512xf32>
    %118 = tpu.matmul %115, %117, %cst_52 {dimension_numbers = #tpu.dot_dimension_numbers<[1], [0], [0], [1], [0, 0, 1, 1], [], []>} : vector<8x256xbf16>, vector<256x512xbf16>, vector<8x512xf32> -> vector<8x512xf32>
    %c0_53 = arith.constant 0 : index
    %c0_54 = arith.constant 0 : index
    %c0_55 = arith.constant 0 : index
    %119 = vector.load %arg14[%c0_53, %c0_54, %c0_55] : memref<2x1x512xf32, #tpu.memory_space<vmem>>, vector<1x1x512xf32>
    %120 = vector.shape_cast %119 : vector<1x1x512xf32> to vector<1x512xf32>
    %121 = vector.broadcast %120 : vector<1x512xf32> to vector<8x512xf32>
    %122 = arith.addf %118, %121 : vector<8x512xf32>
    %cst_56 = arith.constant 0.000000e+00 : f32
    %123 = vector.broadcast %cst_56 : f32 to vector<8x512xf32>
    %124 = arith.maximumf %122, %123 : vector<8x512xf32>
    %125 = arith.truncf %124 : vector<8x512xf32> to vector<8x512xbf16>
    %c0_57 = arith.constant 0 : index
    %c0_58 = arith.constant 0 : index
    %c0_59 = arith.constant 0 : index
    %126 = vector.load %arg15[%c0_57, %c0_58, %c0_59] : memref<2x512x256xbf16, #tpu.memory_space<vmem>>, vector<1x512x256xbf16>
    %127 = vector.shape_cast %126 : vector<1x512x256xbf16> to vector<512x256xbf16>
    %cst_60 = arith.constant dense<0.000000e+00> : vector<8x256xf32>
    %128 = tpu.matmul %125, %127, %cst_60 {dimension_numbers = #tpu.dot_dimension_numbers<[1], [0], [0], [1], [0, 0, 1, 1], [], []>} : vector<8x512xbf16>, vector<512x256xbf16>, vector<8x256xf32> -> vector<8x256xf32>
    %c0_61 = arith.constant 0 : index
    %c0_62 = arith.constant 0 : index
    %c0_63 = arith.constant 0 : index
    %129 = vector.load %arg16[%c0_61, %c0_62, %c0_63] : memref<2x1x256xf32, #tpu.memory_space<vmem>>, vector<1x1x256xf32>
    %130 = vector.shape_cast %129 : vector<1x1x256xf32> to vector<1x256xf32>
    %131 = vector.broadcast %130 : vector<1x256xf32> to vector<8x256xf32>
    %132 = arith.addf %128, %131 : vector<8x256xf32>
    %133 = arith.addf %114, %132 : vector<8x256xf32>
    %c0_64 = arith.constant 0 : index
    %c0_65 = arith.constant 0 : index
    %c0_66 = arith.constant 0 : index
    %134 = vector.load %arg11[%c0_64, %c0_65, %c0_66] : memref<2x1x256xf32, #tpu.memory_space<vmem>>, vector<1x1x256xf32>
    %135 = vector.shape_cast %134 : vector<1x1x256xf32> to vector<1x256xf32>
    %c0_67 = arith.constant 0 : index
    %c0_68 = arith.constant 0 : index
    %c0_69 = arith.constant 0 : index
    %136 = vector.load %arg12[%c0_67, %c0_68, %c0_69] : memref<2x1x256xf32, #tpu.memory_space<vmem>>, vector<1x1x256xf32>
    %137 = vector.shape_cast %136 : vector<1x1x256xf32> to vector<1x256xf32>
    %cst_70 = arith.constant dense<0.000000e+00> : vector<8xf32>
    %138 = vector.multi_reduction <add>, %133, %cst_70 [1] : vector<8x256xf32> to vector<8xf32>
    %139 = vector.shape_cast %138 : vector<8xf32> to vector<8x1xf32>
    %cst_71 = arith.constant 2.560000e+02 : f32
    %140 = vector.broadcast %cst_71 : f32 to vector<8x1xf32>
    %141 = arith.divf %139, %140 : vector<8x1xf32>
    %142 = vector.broadcast %141 : vector<8x1xf32> to vector<8x256xf32>
    %143 = arith.subf %133, %142 : vector<8x256xf32>
    %144 = arith.mulf %143, %143 : vector<8x256xf32>
    %cst_72 = arith.constant dense<0.000000e+00> : vector<8xf32>
    %145 = vector.multi_reduction <add>, %144, %cst_72 [1] : vector<8x256xf32> to vector<8xf32>
    %146 = vector.shape_cast %145 : vector<8xf32> to vector<8x1xf32>
    %cst_73 = arith.constant 2.560000e+02 : f32
    %147 = vector.broadcast %cst_73 : f32 to vector<8x1xf32>
    %148 = arith.divf %146, %147 : vector<8x1xf32>
    %149 = vector.broadcast %141 : vector<8x1xf32> to vector<8x256xf32>
    %150 = arith.subf %133, %149 : vector<8x256xf32>
    %cst_74 = arith.constant 9.99999974E-6 : f32
    %151 = vector.broadcast %cst_74 : f32 to vector<8x1xf32>
    %152 = arith.addf %148, %151 : vector<8x1xf32>
    %153 = math.rsqrt %152 : vector<8x1xf32>
    %154 = vector.broadcast %153 : vector<8x1xf32> to vector<8x256xf32>
    %155 = arith.mulf %150, %154 : vector<8x256xf32>
    %156 = vector.broadcast %135 : vector<1x256xf32> to vector<8x256xf32>
    %157 = arith.mulf %155, %156 : vector<8x256xf32>
    %158 = vector.broadcast %137 : vector<1x256xf32> to vector<8x256xf32>
    %159 = arith.addf %157, %158 : vector<8x256xf32>
    %160 = arith.truncf %159 : vector<8x256xf32> to vector<8x256xbf16>
    %c1 = arith.constant 1 : index
    %c0_75 = arith.constant 0 : index
    %c0_76 = arith.constant 0 : index
    %161 = vector.load %arg5[%c1, %c0_75, %c0_76] : memref<2x256x768xbf16, #tpu.memory_space<vmem>>, vector<1x256x768xbf16>
    %162 = vector.shape_cast %161 : vector<1x256x768xbf16> to vector<256x768xbf16>
    %cst_77 = arith.constant dense<0.000000e+00> : vector<8x768xf32>
    %163 = tpu.matmul %160, %162, %cst_77 {dimension_numbers = #tpu.dot_dimension_numbers<[1], [0], [0], [1], [0, 0, 1, 1], [], []>} : vector<8x256xbf16>, vector<256x768xbf16>, vector<8x768xf32> -> vector<8x768xf32>
    %c1_78 = arith.constant 1 : index
    %c0_79 = arith.constant 0 : index
    %c0_80 = arith.constant 0 : index
    %164 = vector.load %arg6[%c1_78, %c0_79, %c0_80] : memref<2x1x768xf32, #tpu.memory_space<vmem>>, vector<1x1x768xf32>
    %165 = vector.shape_cast %164 : vector<1x1x768xf32> to vector<1x768xf32>
    %166 = vector.broadcast %165 : vector<1x768xf32> to vector<8x768xf32>
    %167 = arith.addf %163, %166 : vector<8x768xf32>
    %168 = vector.extract_strided_slice %167 {offsets = [0, 0], sizes = [8, 64], strides = [1, 1]} : vector<8x768xf32> to vector<8x64xf32>
    %169 = vector.extract_strided_slice %167 {offsets = [0, 256], sizes = [8, 64], strides = [1, 1]} : vector<8x768xf32> to vector<8x64xf32>
    %170 = vector.extract_strided_slice %167 {offsets = [0, 512], sizes = [8, 64], strides = [1, 1]} : vector<8x768xf32> to vector<8x64xf32>
    %cst_81 = arith.constant dense<0.000000e+00> : vector<8x8xf32>
    %171 = tpu.matmul %168, %169, %cst_81 {dimension_numbers = #tpu.dot_dimension_numbers<[1], [1], [0], [0], [0, 0, 1, 0], [], []>} : vector<8x64xf32>, vector<8x64xf32>, vector<8x8xf32> -> vector<8x8xf32>
    %cst_82 = arith.constant dense<0xFF800000> : vector<8xf32>
    %172 = vector.multi_reduction <maximumf>, %171, %cst_82 [1] : vector<8x8xf32> to vector<8xf32>
    %173 = vector.shape_cast %172 : vector<8xf32> to vector<8x1xf32>
    %174 = vector.broadcast %173 : vector<8x1xf32> to vector<8x8xf32>
    %175 = arith.subf %171, %174 : vector<8x8xf32>
    %176 = math.exp %175 : vector<8x8xf32>
    %cst_83 = arith.constant dense<0.000000e+00> : vector<8xf32>
    %177 = vector.multi_reduction <add>, %176, %cst_83 [1] : vector<8x8xf32> to vector<8xf32>
    %178 = vector.shape_cast %177 : vector<8xf32> to vector<8x1xf32>
    %179 = tpu.reciprocal %178 {approx = true} : vector<8x1xf32> -> vector<8x1xf32>
    %180 = vector.broadcast %179 : vector<8x1xf32> to vector<8x8xf32>
    %181 = arith.mulf %176, %180 : vector<8x8xf32>
    %cst_84 = arith.constant dense<0.000000e+00> : vector<8x64xf32>
    %182 = tpu.matmul %181, %170, %cst_84 {dimension_numbers = #tpu.dot_dimension_numbers<[1], [0], [0], [1], [0, 0, 1, 1], [], []>} : vector<8x8xf32>, vector<8x64xf32>, vector<8x64xf32> -> vector<8x64xf32>
    %183 = vector.extract_strided_slice %167 {offsets = [0, 64], sizes = [8, 64], strides = [1, 1]} : vector<8x768xf32> to vector<8x64xf32>
    %184 = vector.extract_strided_slice %167 {offsets = [0, 320], sizes = [8, 64], strides = [1, 1]} : vector<8x768xf32> to vector<8x64xf32>
    %185 = vector.extract_strided_slice %167 {offsets = [0, 576], sizes = [8, 64], strides = [1, 1]} : vector<8x768xf32> to vector<8x64xf32>
    %cst_85 = arith.constant dense<0.000000e+00> : vector<8x8xf32>
    %186 = tpu.matmul %183, %184, %cst_85 {dimension_numbers = #tpu.dot_dimension_numbers<[1], [1], [0], [0], [0, 0, 1, 0], [], []>} : vector<8x64xf32>, vector<8x64xf32>, vector<8x8xf32> -> vector<8x8xf32>
    %cst_86 = arith.constant dense<0xFF800000> : vector<8xf32>
    %187 = vector.multi_reduction <maximumf>, %186, %cst_86 [1] : vector<8x8xf32> to vector<8xf32>
    %188 = vector.shape_cast %187 : vector<8xf32> to vector<8x1xf32>
    %189 = vector.broadcast %188 : vector<8x1xf32> to vector<8x8xf32>
    %190 = arith.subf %186, %189 : vector<8x8xf32>
    %191 = math.exp %190 : vector<8x8xf32>
    %cst_87 = arith.constant dense<0.000000e+00> : vector<8xf32>
    %192 = vector.multi_reduction <add>, %191, %cst_87 [1] : vector<8x8xf32> to vector<8xf32>
    %193 = vector.shape_cast %192 : vector<8xf32> to vector<8x1xf32>
    %194 = tpu.reciprocal %193 {approx = true} : vector<8x1xf32> -> vector<8x1xf32>
    %195 = vector.broadcast %194 : vector<8x1xf32> to vector<8x8xf32>
    %196 = arith.mulf %191, %195 : vector<8x8xf32>
    %cst_88 = arith.constant dense<0.000000e+00> : vector<8x64xf32>
    %197 = tpu.matmul %196, %185, %cst_88 {dimension_numbers = #tpu.dot_dimension_numbers<[1], [0], [0], [1], [0, 0, 1, 1], [], []>} : vector<8x8xf32>, vector<8x64xf32>, vector<8x64xf32> -> vector<8x64xf32>
    %198 = vector.extract_strided_slice %167 {offsets = [0, 128], sizes = [8, 64], strides = [1, 1]} : vector<8x768xf32> to vector<8x64xf32>
    %199 = vector.extract_strided_slice %167 {offsets = [0, 384], sizes = [8, 64], strides = [1, 1]} : vector<8x768xf32> to vector<8x64xf32>
    %200 = vector.extract_strided_slice %167 {offsets = [0, 640], sizes = [8, 64], strides = [1, 1]} : vector<8x768xf32> to vector<8x64xf32>
    %cst_89 = arith.constant dense<0.000000e+00> : vector<8x8xf32>
    %201 = tpu.matmul %198, %199, %cst_89 {dimension_numbers = #tpu.dot_dimension_numbers<[1], [1], [0], [0], [0, 0, 1, 0], [], []>} : vector<8x64xf32>, vector<8x64xf32>, vector<8x8xf32> -> vector<8x8xf32>
    %cst_90 = arith.constant dense<0xFF800000> : vector<8xf32>
    %202 = vector.multi_reduction <maximumf>, %201, %cst_90 [1] : vector<8x8xf32> to vector<8xf32>
    %203 = vector.shape_cast %202 : vector<8xf32> to vector<8x1xf32>
    %204 = vector.broadcast %203 : vector<8x1xf32> to vector<8x8xf32>
    %205 = arith.subf %201, %204 : vector<8x8xf32>
    %206 = math.exp %205 : vector<8x8xf32>
    %cst_91 = arith.constant dense<0.000000e+00> : vector<8xf32>
    %207 = vector.multi_reduction <add>, %206, %cst_91 [1] : vector<8x8xf32> to vector<8xf32>
    %208 = vector.shape_cast %207 : vector<8xf32> to vector<8x1xf32>
    %209 = tpu.reciprocal %208 {approx = true} : vector<8x1xf32> -> vector<8x1xf32>
    %210 = vector.broadcast %209 : vector<8x1xf32> to vector<8x8xf32>
    %211 = arith.mulf %206, %210 : vector<8x8xf32>
    %cst_92 = arith.constant dense<0.000000e+00> : vector<8x64xf32>
    %212 = tpu.matmul %211, %200, %cst_92 {dimension_numbers = #tpu.dot_dimension_numbers<[1], [0], [0], [1], [0, 0, 1, 1], [], []>} : vector<8x8xf32>, vector<8x64xf32>, vector<8x64xf32> -> vector<8x64xf32>
    %213 = vector.extract_strided_slice %167 {offsets = [0, 192], sizes = [8, 64], strides = [1, 1]} : vector<8x768xf32> to vector<8x64xf32>
    %214 = vector.extract_strided_slice %167 {offsets = [0, 448], sizes = [8, 64], strides = [1, 1]} : vector<8x768xf32> to vector<8x64xf32>
    %215 = vector.extract_strided_slice %167 {offsets = [0, 704], sizes = [8, 64], strides = [1, 1]} : vector<8x768xf32> to vector<8x64xf32>
    %cst_93 = arith.constant dense<0.000000e+00> : vector<8x8xf32>
    %216 = tpu.matmul %213, %214, %cst_93 {dimension_numbers = #tpu.dot_dimension_numbers<[1], [1], [0], [0], [0, 0, 1, 0], [], []>} : vector<8x64xf32>, vector<8x64xf32>, vector<8x8xf32> -> vector<8x8xf32>
    %cst_94 = arith.constant dense<0xFF800000> : vector<8xf32>
    %217 = vector.multi_reduction <maximumf>, %216, %cst_94 [1] : vector<8x8xf32> to vector<8xf32>
    %218 = vector.shape_cast %217 : vector<8xf32> to vector<8x1xf32>
    %219 = vector.broadcast %218 : vector<8x1xf32> to vector<8x8xf32>
    %220 = arith.subf %216, %219 : vector<8x8xf32>
    %221 = math.exp %220 : vector<8x8xf32>
    %cst_95 = arith.constant dense<0.000000e+00> : vector<8xf32>
    %222 = vector.multi_reduction <add>, %221, %cst_95 [1] : vector<8x8xf32> to vector<8xf32>
    %223 = vector.shape_cast %222 : vector<8xf32> to vector<8x1xf32>
    %224 = tpu.reciprocal %223 {approx = true} : vector<8x1xf32> -> vector<8x1xf32>
    %225 = vector.broadcast %224 : vector<8x1xf32> to vector<8x8xf32>
    %226 = arith.mulf %221, %225 : vector<8x8xf32>
    %cst_96 = arith.constant dense<0.000000e+00> : vector<8x64xf32>
    %227 = tpu.matmul %226, %215, %cst_96 {dimension_numbers = #tpu.dot_dimension_numbers<[1], [0], [0], [1], [0, 0, 1, 1], [], []>} : vector<8x8xf32>, vector<8x64xf32>, vector<8x64xf32> -> vector<8x64xf32>
    %228 = tpu.concatenate %182, %197, %212, %227 in 1 : vector<8x64xf32>, vector<8x64xf32>, vector<8x64xf32>, vector<8x64xf32> -> vector<8x256xf32>
    %229 = arith.truncf %228 : vector<8x256xf32> to vector<8x256xbf16>
    %c1_97 = arith.constant 1 : index
    %c0_98 = arith.constant 0 : index
    %c0_99 = arith.constant 0 : index
    %230 = vector.load %arg7[%c1_97, %c0_98, %c0_99] : memref<2x256x256xbf16, #tpu.memory_space<vmem>>, vector<1x256x256xbf16>
    %231 = vector.shape_cast %230 : vector<1x256x256xbf16> to vector<256x256xbf16>
    %cst_100 = arith.constant dense<0.000000e+00> : vector<8x256xf32>
    %232 = tpu.matmul %229, %231, %cst_100 {dimension_numbers = #tpu.dot_dimension_numbers<[1], [0], [0], [1], [0, 0, 1, 1], [], []>} : vector<8x256xbf16>, vector<256x256xbf16>, vector<8x256xf32> -> vector<8x256xf32>
    %c1_101 = arith.constant 1 : index
    %c0_102 = arith.constant 0 : index
    %c0_103 = arith.constant 0 : index
    %233 = vector.load %arg8[%c1_101, %c0_102, %c0_103] : memref<2x1x256xf32, #tpu.memory_space<vmem>>, vector<1x1x256xf32>
    %234 = vector.shape_cast %233 : vector<1x1x256xf32> to vector<1x256xf32>
    %235 = vector.broadcast %234 : vector<1x256xf32> to vector<8x256xf32>
    %236 = arith.addf %232, %235 : vector<8x256xf32>
    %237 = arith.addf %159, %236 : vector<8x256xf32>
    %c1_104 = arith.constant 1 : index
    %c0_105 = arith.constant 0 : index
    %c0_106 = arith.constant 0 : index
    %238 = vector.load %arg9[%c1_104, %c0_105, %c0_106] : memref<2x1x256xf32, #tpu.memory_space<vmem>>, vector<1x1x256xf32>
    %239 = vector.shape_cast %238 : vector<1x1x256xf32> to vector<1x256xf32>
    %c1_107 = arith.constant 1 : index
    %c0_108 = arith.constant 0 : index
    %c0_109 = arith.constant 0 : index
    %240 = vector.load %arg10[%c1_107, %c0_108, %c0_109] : memref<2x1x256xf32, #tpu.memory_space<vmem>>, vector<1x1x256xf32>
    %241 = vector.shape_cast %240 : vector<1x1x256xf32> to vector<1x256xf32>
    %cst_110 = arith.constant dense<0.000000e+00> : vector<8xf32>
    %242 = vector.multi_reduction <add>, %237, %cst_110 [1] : vector<8x256xf32> to vector<8xf32>
    %243 = vector.shape_cast %242 : vector<8xf32> to vector<8x1xf32>
    %cst_111 = arith.constant 2.560000e+02 : f32
    %244 = vector.broadcast %cst_111 : f32 to vector<8x1xf32>
    %245 = arith.divf %243, %244 : vector<8x1xf32>
    %246 = vector.broadcast %245 : vector<8x1xf32> to vector<8x256xf32>
    %247 = arith.subf %237, %246 : vector<8x256xf32>
    %248 = arith.mulf %247, %247 : vector<8x256xf32>
    %cst_112 = arith.constant dense<0.000000e+00> : vector<8xf32>
    %249 = vector.multi_reduction <add>, %248, %cst_112 [1] : vector<8x256xf32> to vector<8xf32>
    %250 = vector.shape_cast %249 : vector<8xf32> to vector<8x1xf32>
    %cst_113 = arith.constant 2.560000e+02 : f32
    %251 = vector.broadcast %cst_113 : f32 to vector<8x1xf32>
    %252 = arith.divf %250, %251 : vector<8x1xf32>
    %253 = vector.broadcast %245 : vector<8x1xf32> to vector<8x256xf32>
    %254 = arith.subf %237, %253 : vector<8x256xf32>
    %cst_114 = arith.constant 9.99999974E-6 : f32
    %255 = vector.broadcast %cst_114 : f32 to vector<8x1xf32>
    %256 = arith.addf %252, %255 : vector<8x1xf32>
    %257 = math.rsqrt %256 : vector<8x1xf32>
    %258 = vector.broadcast %257 : vector<8x1xf32> to vector<8x256xf32>
    %259 = arith.mulf %254, %258 : vector<8x256xf32>
    %260 = vector.broadcast %239 : vector<1x256xf32> to vector<8x256xf32>
    %261 = arith.mulf %259, %260 : vector<8x256xf32>
    %262 = vector.broadcast %241 : vector<1x256xf32> to vector<8x256xf32>
    %263 = arith.addf %261, %262 : vector<8x256xf32>
    %264 = arith.truncf %263 : vector<8x256xf32> to vector<8x256xbf16>
    %c1_115 = arith.constant 1 : index
    %c0_116 = arith.constant 0 : index
    %c0_117 = arith.constant 0 : index
    %265 = vector.load %arg13[%c1_115, %c0_116, %c0_117] : memref<2x256x512xbf16, #tpu.memory_space<vmem>>, vector<1x256x512xbf16>
    %266 = vector.shape_cast %265 : vector<1x256x512xbf16> to vector<256x512xbf16>
    %cst_118 = arith.constant dense<0.000000e+00> : vector<8x512xf32>
    %267 = tpu.matmul %264, %266, %cst_118 {dimension_numbers = #tpu.dot_dimension_numbers<[1], [0], [0], [1], [0, 0, 1, 1], [], []>} : vector<8x256xbf16>, vector<256x512xbf16>, vector<8x512xf32> -> vector<8x512xf32>
    %c1_119 = arith.constant 1 : index
    %c0_120 = arith.constant 0 : index
    %c0_121 = arith.constant 0 : index
    %268 = vector.load %arg14[%c1_119, %c0_120, %c0_121] : memref<2x1x512xf32, #tpu.memory_space<vmem>>, vector<1x1x512xf32>
    %269 = vector.shape_cast %268 : vector<1x1x512xf32> to vector<1x512xf32>
    %270 = vector.broadcast %269 : vector<1x512xf32> to vector<8x512xf32>
    %271 = arith.addf %267, %270 : vector<8x512xf32>
    %cst_122 = arith.constant 0.000000e+00 : f32
    %272 = vector.broadcast %cst_122 : f32 to vector<8x512xf32>
    %273 = arith.maximumf %271, %272 : vector<8x512xf32>
    %274 = arith.truncf %273 : vector<8x512xf32> to vector<8x512xbf16>
    %c1_123 = arith.constant 1 : index
    %c0_124 = arith.constant 0 : index
    %c0_125 = arith.constant 0 : index
    %275 = vector.load %arg15[%c1_123, %c0_124, %c0_125] : memref<2x512x256xbf16, #tpu.memory_space<vmem>>, vector<1x512x256xbf16>
    %276 = vector.shape_cast %275 : vector<1x512x256xbf16> to vector<512x256xbf16>
    %cst_126 = arith.constant dense<0.000000e+00> : vector<8x256xf32>
    %277 = tpu.matmul %274, %276, %cst_126 {dimension_numbers = #tpu.dot_dimension_numbers<[1], [0], [0], [1], [0, 0, 1, 1], [], []>} : vector<8x512xbf16>, vector<512x256xbf16>, vector<8x256xf32> -> vector<8x256xf32>
    %c1_127 = arith.constant 1 : index
    %c0_128 = arith.constant 0 : index
    %c0_129 = arith.constant 0 : index
    %278 = vector.load %arg16[%c1_127, %c0_128, %c0_129] : memref<2x1x256xf32, #tpu.memory_space<vmem>>, vector<1x1x256xf32>
    %279 = vector.shape_cast %278 : vector<1x1x256xf32> to vector<1x256xf32>
    %280 = vector.broadcast %279 : vector<1x256xf32> to vector<8x256xf32>
    %281 = arith.addf %277, %280 : vector<8x256xf32>
    %282 = arith.addf %263, %281 : vector<8x256xf32>
    %c1_130 = arith.constant 1 : index
    %c0_131 = arith.constant 0 : index
    %c0_132 = arith.constant 0 : index
    %283 = vector.load %arg11[%c1_130, %c0_131, %c0_132] : memref<2x1x256xf32, #tpu.memory_space<vmem>>, vector<1x1x256xf32>
    %284 = vector.shape_cast %283 : vector<1x1x256xf32> to vector<1x256xf32>
    %c1_133 = arith.constant 1 : index
    %c0_134 = arith.constant 0 : index
    %c0_135 = arith.constant 0 : index
    %285 = vector.load %arg12[%c1_133, %c0_134, %c0_135] : memref<2x1x256xf32, #tpu.memory_space<vmem>>, vector<1x1x256xf32>
    %286 = vector.shape_cast %285 : vector<1x1x256xf32> to vector<1x256xf32>
    %cst_136 = arith.constant dense<0.000000e+00> : vector<8xf32>
    %287 = vector.multi_reduction <add>, %282, %cst_136 [1] : vector<8x256xf32> to vector<8xf32>
    %288 = vector.shape_cast %287 : vector<8xf32> to vector<8x1xf32>
    %cst_137 = arith.constant 2.560000e+02 : f32
    %289 = vector.broadcast %cst_137 : f32 to vector<8x1xf32>
    %290 = arith.divf %288, %289 : vector<8x1xf32>
    %291 = vector.broadcast %290 : vector<8x1xf32> to vector<8x256xf32>
    %292 = arith.subf %282, %291 : vector<8x256xf32>
    %293 = arith.mulf %292, %292 : vector<8x256xf32>
    %cst_138 = arith.constant dense<0.000000e+00> : vector<8xf32>
    %294 = vector.multi_reduction <add>, %293, %cst_138 [1] : vector<8x256xf32> to vector<8xf32>
    %295 = vector.shape_cast %294 : vector<8xf32> to vector<8x1xf32>
    %cst_139 = arith.constant 2.560000e+02 : f32
    %296 = vector.broadcast %cst_139 : f32 to vector<8x1xf32>
    %297 = arith.divf %295, %296 : vector<8x1xf32>
    %298 = vector.broadcast %290 : vector<8x1xf32> to vector<8x256xf32>
    %299 = arith.subf %282, %298 : vector<8x256xf32>
    %cst_140 = arith.constant 9.99999974E-6 : f32
    %300 = vector.broadcast %cst_140 : f32 to vector<8x1xf32>
    %301 = arith.addf %297, %300 : vector<8x1xf32>
    %302 = math.rsqrt %301 : vector<8x1xf32>
    %303 = vector.broadcast %302 : vector<8x1xf32> to vector<8x256xf32>
    %304 = arith.mulf %299, %303 : vector<8x256xf32>
    %305 = vector.broadcast %284 : vector<1x256xf32> to vector<8x256xf32>
    %306 = arith.mulf %304, %305 : vector<8x256xf32>
    %307 = vector.broadcast %286 : vector<1x256xf32> to vector<8x256xf32>
    %308 = arith.addf %306, %307 : vector<8x256xf32>
    %c0_141 = arith.constant 0 : index
    %c0_142 = arith.constant 0 : index
    %309 = vector.load %arg17[%c0_141, %c0_142] : memref<1x256xf32, #tpu.memory_space<vmem>>, vector<1x256xf32>
    %310 = vector.broadcast %309 : vector<1x256xf32> to vector<8x256xf32>
    %311 = arith.mulf %308, %310 : vector<8x256xf32>
    %cst_143 = arith.constant dense<0.000000e+00> : vector<8xf32>
    %312 = vector.multi_reduction <add>, %311, %cst_143 [1] : vector<8x256xf32> to vector<8xf32>
    %313 = vector.shape_cast %312 : vector<8xf32> to vector<8x1xf32>
    %c0_144 = arith.constant 0 : index
    %c0_145 = arith.constant 0 : index
    %314 = vector.load %arg18[%c0_144, %c0_145] : memref<1x1xf32, #tpu.memory_space<vmem>>, vector<1x1xf32>
    %315 = vector.broadcast %314 : vector<1x1xf32> to vector<8x1xf32>
    %316 = arith.addf %313, %315 : vector<8x1xf32>
    %c0_146 = arith.constant 0 : index
    %c0_147 = arith.constant 0 : index
    %c0_148 = arith.constant 0 : index
    %317 = vector.load %arg19[%c0_146, %c0_147, %c0_148] : memref<1x8x1xf32, #tpu.memory_space<vmem>>, vector<1x8x1xf32>
    %318 = vector.shape_cast %317 : vector<1x8x1xf32> to vector<8x1xf32>
    %319 = vector.shape_cast %316 : vector<8x1xf32> to vector<1x8x1xf32>
    tpu.vector_store %arg19[%c0_146, %c0_147, %c0_148], %319 {strides = array<i32>} : memref<1x8x1xf32, #tpu.memory_space<vmem>>, vector<1x8x1xf32>,
    return
  }
  func.func @transform_0(%arg0: i32) -> (i32, i32, i32) {
    %c0_i32 = arith.constant 0 : i32
    %c0_i32_0 = arith.constant 0 : i32
    %c0_i32_1 = arith.constant 0 : i32
    return %arg0, %c0_i32, %c0_i32_0 : i32, i32, i32
  }
  func.func @transform_1(%arg0: i32) -> (i32, i32) {
    %c0_i32 = arith.constant 0 : i32
    %c0_i32_0 = arith.constant 0 : i32
    %c0_i32_1 = arith.constant 0 : i32
    return %c0_i32, %c0_i32_0 : i32, i32
  }
  func.func @transform_2(%arg0: i32) -> (i32, i32) {
    %c0_i32 = arith.constant 0 : i32
    %c0_i32_0 = arith.constant 0 : i32
    %c0_i32_1 = arith.constant 0 : i32
    return %c0_i32, %c0_i32_0 : i32, i32
  }
  func.func @transform_3(%arg0: i32) -> (i32, i32) {
    %c0_i32 = arith.constant 0 : i32
    %c0_i32_0 = arith.constant 0 : i32
    %c0_i32_1 = arith.constant 0 : i32
    return %c0_i32, %c0_i32_0 : i32, i32
  }
  func.func @transform_4(%arg0: i32) -> (i32, i32, i32) {
    %c0_i32 = arith.constant 0 : i32
    %c0_i32_0 = arith.constant 0 : i32
    %c0_i32_1 = arith.constant 0 : i32
    %c0_i32_2 = arith.constant 0 : i32
    return %c0_i32, %c0_i32_0, %c0_i32_1 : i32, i32, i32
  }
  func.func @transform_5(%arg0: i32) -> (i32, i32, i32) {
    %c0_i32 = arith.constant 0 : i32
    %c0_i32_0 = arith.constant 0 : i32
    %c0_i32_1 = arith.constant 0 : i32
    %c0_i32_2 = arith.constant 0 : i32
    return %c0_i32, %c0_i32_0, %c0_i32_1 : i32, i32, i32
  }
  func.func @transform_6(%arg0: i32) -> (i32, i32, i32) {
    %c0_i32 = arith.constant 0 : i32
    %c0_i32_0 = arith.constant 0 : i32
    %c0_i32_1 = arith.constant 0 : i32
    %c0_i32_2 = arith.constant 0 : i32
    return %c0_i32, %c0_i32_0, %c0_i32_1 : i32, i32, i32
  }
  func.func @transform_7(%arg0: i32) -> (i32, i32, i32) {
    %c0_i32 = arith.constant 0 : i32
    %c0_i32_0 = arith.constant 0 : i32
    %c0_i32_1 = arith.constant 0 : i32
    %c0_i32_2 = arith.constant 0 : i32
    return %c0_i32, %c0_i32_0, %c0_i32_1 : i32, i32, i32
  }
  func.func @transform_8(%arg0: i32) -> (i32, i32, i32) {
    %c0_i32 = arith.constant 0 : i32
    %c0_i32_0 = arith.constant 0 : i32
    %c0_i32_1 = arith.constant 0 : i32
    %c0_i32_2 = arith.constant 0 : i32
    return %c0_i32, %c0_i32_0, %c0_i32_1 : i32, i32, i32
  }
  func.func @transform_9(%arg0: i32) -> (i32, i32, i32) {
    %c0_i32 = arith.constant 0 : i32
    %c0_i32_0 = arith.constant 0 : i32
    %c0_i32_1 = arith.constant 0 : i32
    %c0_i32_2 = arith.constant 0 : i32
    return %c0_i32, %c0_i32_0, %c0_i32_1 : i32, i32, i32
  }
  func.func @transform_10(%arg0: i32) -> (i32, i32, i32) {
    %c0_i32 = arith.constant 0 : i32
    %c0_i32_0 = arith.constant 0 : i32
    %c0_i32_1 = arith.constant 0 : i32
    %c0_i32_2 = arith.constant 0 : i32
    return %c0_i32, %c0_i32_0, %c0_i32_1 : i32, i32, i32
  }
  func.func @transform_11(%arg0: i32) -> (i32, i32, i32) {
    %c0_i32 = arith.constant 0 : i32
    %c0_i32_0 = arith.constant 0 : i32
    %c0_i32_1 = arith.constant 0 : i32
    %c0_i32_2 = arith.constant 0 : i32
    return %c0_i32, %c0_i32_0, %c0_i32_1 : i32, i32, i32
  }
  func.func @transform_12(%arg0: i32) -> (i32, i32, i32) {
    %c0_i32 = arith.constant 0 : i32
    %c0_i32_0 = arith.constant 0 : i32
    %c0_i32_1 = arith.constant 0 : i32
    %c0_i32_2 = arith.constant 0 : i32
    return %c0_i32, %c0_i32_0, %c0_i32_1 : i32, i32, i32
  }
  func.func @transform_13(%arg0: i32) -> (i32, i32, i32) {
    %c0_i32 = arith.constant 0 : i32
    %c0_i32_0 = arith.constant 0 : i32
    %c0_i32_1 = arith.constant 0 : i32
    %c0_i32_2 = arith.constant 0 : i32
    return %c0_i32, %c0_i32_0, %c0_i32_1 : i32, i32, i32
  }
  func.func @transform_14(%arg0: i32) -> (i32, i32, i32) {
    %c0_i32 = arith.constant 0 : i32
    %c0_i32_0 = arith.constant 0 : i32
    %c0_i32_1 = arith.constant 0 : i32
    %c0_i32_2 = arith.constant 0 : i32
    return %c0_i32, %c0_i32_0, %c0_i32_1 : i32, i32, i32
  }
  func.func @transform_15(%arg0: i32) -> (i32, i32, i32) {
    %c0_i32 = arith.constant 0 : i32
    %c0_i32_0 = arith.constant 0 : i32
    %c0_i32_1 = arith.constant 0 : i32
    %c0_i32_2 = arith.constant 0 : i32
    return %c0_i32, %c0_i32_0, %c0_i32_1 : i32, i32, i32
  }
  func.func @transform_16(%arg0: i32) -> (i32, i32) {
    %c0_i32 = arith.constant 0 : i32
    %c0_i32_0 = arith.constant 0 : i32
    %c0_i32_1 = arith.constant 0 : i32
    return %c0_i32, %c0_i32_0 : i32, i32
  }
  func.func @transform_17(%arg0: i32) -> (i32, i32) {
    %c0_i32 = arith.constant 0 : i32
    %c0_i32_0 = arith.constant 0 : i32
    %c0_i32_1 = arith.constant 0 : i32
    return %c0_i32, %c0_i32_0 : i32, i32
  }
  func.func @transform_18(%arg0: i32) -> (i32, i32, i32) {
    %c0_i32 = arith.constant 0 : i32
    %c0_i32_0 = arith.constant 0 : i32
    %c0_i32_1 = arith.constant 0 : i32
    return %arg0, %c0_i32, %c0_i32_0 : i32, i32, i32
  }
}

</mosaic_0001>

<llo_original>
// kernel: transformer_forward.1
$region0: #{transformer_forward.1}
  #allocation0 [shape = 'u32[]', space=smem, size = 0x4, offset = 0x4, fixed_abs, tag = 'smem constant byte address 0x4 - core index']
  #allocation1 [shape = 'u32[144,128]{1,0:T(1,128)}', space=vmem, size = 0x12000, scoped, tag = 'internal scratch']
  #allocation2 [shape = 'f32[1,1]{1,0:T(1,128)S(1)}', space=vmem, size = 0x200, scoped, tag = 'scoped memory for transformer_forward.1']
  %s0 = inlined_call_operand.vmem [shape: f32[2,8,128], index: 0, kind: input, shape index: {}]
  %s1 = inlined_call_operand.hbm [shape: bf16[128,256], index: 1, kind: input, shape index: {}]
  %s2 = inlined_call_operand.hbm [shape: f32[1,256], index: 2, kind: input, shape index: {}]
  %s3 = inlined_call_operand.vmem [shape: f32[1,256], index: 3, kind: input, shape index: {}]
  %s4 = inlined_call_operand.hbm [shape: bf16[2,256,768], index: 4, kind: input, shape index: {}]
  %s5 = inlined_call_operand.vmem [shape: f32[2,1,768], index: 5, kind: input, shape index: {}]
  %s6 = inlined_call_operand.hbm [shape: bf16[2,256,256], index: 6, kind: input, shape index: {}]
  %s7 = inlined_call_operand.vmem [shape: f32[2,1,256], index: 7, kind: input, shape index: {}]
  %s8 = inlined_call_operand.vmem [shape: f32[2,1,256], index: 8, kind: input, shape index: {}]
  %s9 = inlined_call_operand.vmem [shape: f32[2,1,256], index: 9, kind: input, shape index: {}]
  %s10 = inlined_call_operand.vmem [shape: f32[2,1,256], index: 10, kind: input, shape index: {}]
  %s11 = inlined_call_operand.vmem [shape: f32[2,1,256], index: 11, kind: input, shape index: {}]
  %s12 = inlined_call_operand.hbm [shape: bf16[2,256,512], index: 12, kind: input, shape index: {}]
  %s13 = inlined_call_operand.vmem [shape: f32[2,1,512], index: 13, kind: input, shape index: {}]
  %s14 = inlined_call_operand.hbm [shape: bf16[2,512,256], index: 14, kind: input, shape index: {}]
  %s15 = inlined_call_operand.vmem [shape: f32[2,1,256], index: 15, kind: input, shape index: {}]
  %s16 = inlined_call_operand.vmem [shape: f32[1,256], index: 16, kind: input, shape index: {}]
  %s17 = inlined_call_operand.<no memory space> [shape: f32[1,1], index: 17, kind: input, shape index: {}]
  %s18 = inlined_call_operand.vmem [shape: f32[2,8,1], index: 18, kind: output, shape index: {}]
  %s19 = sld [smem:[#allocation0]]
  $region129: #{transformer_forward.1} parent=0
    _
  %s21 = ssub.s32 1, %s19
  %s22 = scalar_select 0, %s21, %s19
  %v23 = vstv %s17
  %24 = vst [vmem:[#allocation2] sm:$0x1] %v23
  $region1: #{transformer_forward.1} parent=0
    #allocation3 [shape = 'u8[65536]{0}', space=vmem, size = 0x10000, scoped, tag = 'input window, operand 1, single buffered']
    #allocation4 [shape = 's32[2]{0}', space=sflag, size = 0x8, scoped, tag = 'scoped memory for transformer_forward.1']
    #allocation5 [shape = 'u8[1024]{0}', space=vmem, size = 0x400, scoped, tag = 'input window, operand 2, single buffered']
    #allocation6 [shape = 's32[1]{0}', space=sflag, size = 0x4, scoped, tag = 'scoped memory for transformer_forward.1']
    #allocation7 [shape = 'u8[786432]{0}', space=vmem, size = 0xc0000, scoped, tag = 'input window, operand 4, single buffered']
    #allocation8 [shape = 'u8[262144]{0}', space=vmem, size = 0x40000, scoped, tag = 'input window, operand 6, single buffered']
    #allocation9 [shape = 's32[1]{0}', space=sflag, size = 0x4, scoped, tag = 'scoped memory for transformer_forward.1']
    #allocation10 [shape = 'u8[524288]{0}', space=vmem, size = 0x80000, scoped, tag = 'input window, operand 12, single buffered']
    #allocation11 [shape = 'u8[524288]{0}', space=vmem, size = 0x80000, scoped, tag = 'input window, operand 14, single buffered']
    #allocation12 [shape = 's32[1]{0}', space=sflag, size = 0x4, scoped, tag = 'scoped memory for transformer_forward.1']
    %25 = vsyncpa [#allocation4], 0
    %26 = vsyncpa [#allocation6], 0
    %27 = vsyncpa [#allocation9], 0
    %28 = vsyncpa [#allocation12], 0
    loop: start=0, step=1, limit=4
    $region2: #{transformer_forward.1} parent=1 // loop_pre_header
      _
    $region3: #{transformer_forward.1} parent=1 // loop_header
      %s30 = sphi 0, %s34
      %p31 = scmp.ge.s32.totalorder %s30, 4
      %s40 = sphi 0, %s42
      %s43 = sphi 0, %s40
      %s44 = sphi 0, %s43
      %s60 = sphi 0, %s44
      %s64 = sphi 0, %s64
      %s66 = sphi 0, %s64
      %s67 = sphi 0, %s66
      %s81 = sphi 0, %s67
      %s85 = sphi 0, %s85
      %s87 = sphi 0, %s85
      %s88 = sphi 0, %s87
      %s102 = sphi 0, %s88
      %s106 = sphi 0, %s106
      %s108 = sphi 0, %s106
      %s109 = sphi 0, %s108
      %s123 = sphi 0, %s109
      %s127 = sphi 0, %s127
      %s129 = sphi 0, %s127
      %s130 = sphi 0, %s129
      %s144 = sphi 0, %s130
      %s148 = sphi 0, %s148
      %s150 = sphi 0, %s148
      %s151 = sphi 0, %s150
      %s165 = sphi 0, %s151
      %s169 = sphi 0, %s169
      %s171 = sphi 0, %s169
      %s172 = sphi 0, %s171
      %s186 = sphi 0, %s172
      %s190 = sphi 0, %s190
      %s192 = sphi 0, %s190
      %s193 = sphi 0, %s192
      %s207 = sphi 0, %s193
      %s211 = sphi 0, %s211
      %s213 = sphi 0, %s211
      %s214 = sphi 0, %s213
      %s228 = sphi 0, %s214
      %s232 = sphi 0, %s232
      %s234 = sphi 0, %s232
      %s235 = sphi 0, %s234
      %s249 = sphi 0, %s235
      %s253 = sphi 0, %s253
      %s255 = sphi 0, %s253
      %s256 = sphi 0, %s255
      %s270 = sphi 0, %s256
      %s274 = sphi 0, %s274
      %s276 = sphi 0, %s274
      %s277 = sphi 0, %s276
      %s291 = sphi 0, %s277
      %s295 = sphi 0, %s295
      %s297 = sphi 0, %s295
      %s298 = sphi 0, %s297
      %s312 = sphi 0, %s298
      %s316 = sphi 0, %s316
      %s318 = sphi 0, %s316
      %s319 = sphi 0, %s318
      %s333 = sphi 0, %s319
      %s337 = sphi 0, %s337
      %s339 = sphi 0, %s337
      %s340 = sphi 0, %s339
      %s354 = sphi 0, %s340
      %s358 = sphi 0, %s358
      %s360 = sphi 0, %s358
      %s361 = sphi 0, %s360
      %s375 = sphi 0, %s361
      %s379 = sphi 0, %s379
      %s381 = sphi 0, %s379
      %s382 = sphi 0, %s381
      %s396 = sphi 0, %s382
      %s400 = sphi 0, %s400
      %s402 = sphi 0, %s400
      %s403 = sphi 0, %s402
      %s417 = sphi 0, %s403
      %s423 = sphi 0, %s425
      %s426 = sphi 0, %s423
      %s427 = sphi 0, %s426
      %s443 = sphi 0, %s427
    $region4: #{transformer_forward.1} parent=1 // loop_header_branch
      %33 = sbr.rel (%p31) target = $region8
    $region5: #{transformer_forward.1} parent=1 // loop_body
      %s35 = ssub.s32 %s30, 1
      %s36 = ssub.s32 %s30, 2
      %s37 = sadd.s32 %s30, 1
      %s38 = ssub.s32 %s30, %s37
      %p39 = scmp.eq.s32.totalorder %s38, 0
      %s41 = sadd.s32 %s40, 1
      %s42 = scalar_select %p39, %s40, %s41
      %p45 = pneg %p39
      %p46 = scmp.eq.s32.totalorder %s30, 1
      %p47 = por %p45, %p46
      %p48 = scmp.ne.s32.totalorder %s40, %s43
      %p49 = scmp.eq.s32.totalorder %s30, 0
      %p50 = por %p48, %p49
      %p51 = scmp.ne.s32.totalorder %s40, %s43
      %p52 = scmp.eq.s32.totalorder %s35, 1
      %p53 = por %p51, %p52
      %p54 = scmp.ne.s32.totalorder %s43, %s44
      %p55 = scmp.eq.s32.totalorder %s35, 0
      %p56 = por %p54, %p55
      %p57 = scmp.ne.s32.totalorder %s43, %s44
      %p58 = scmp.eq.s32.totalorder %s36, 1
      %p59 = por %p57, %p58
      %p61 = scmp.ne.s32.totalorder %s44, %s60
      %p62 = scmp.eq.s32.totalorder %s36, 0
      %p63 = por %p61, %p62
      %s65 = sadd.s32 %s64, 1
      %p68 = scmp.eq.s32.totalorder %s30, 1
      %p69 = scmp.ne.s32.totalorder %s64, %s66
      %p70 = scmp.eq.s32.totalorder %s30, 0
      %p71 = por %p69, %p70
      %p72 = scmp.ne.s32.totalorder %s64, %s66
      %p73 = scmp.eq.s32.totalorder %s35, 1
      %p74 = por %p72, %p73
      %p75 = scmp.ne.s32.totalorder %s66, %s67
      %p76 = scmp.eq.s32.totalorder %s35, 0
      %p77 = por %p75, %p76
      %p78 = scmp.ne.s32.totalorder %s66, %s67
      %p79 = scmp.eq.s32.totalorder %s36, 1
      %p80 = por %p78, %p79
      %p82 = scmp.ne.s32.totalorder %s67, %s81
      %p83 = scmp.eq.s32.totalorder %s36, 0
      %p84 = por %p82, %p83
      %s86 = sadd.s32 %s85, 1
      %p89 = scmp.eq.s32.totalorder %s30, 1
      %p90 = scmp.ne.s32.totalorder %s85, %s87
      %p91 = scmp.eq.s32.totalorder %s30, 0
      %p92 = por %p90, %p91
      %p93 = scmp.ne.s32.totalorder %s85, %s87
      %p94 = scmp.eq.s32.totalorder %s35, 1
      %p95 = por %p93, %p94
      %p96 = scmp.ne.s32.totalorder %s87, %s88
      %p97 = scmp.eq.s32.totalorder %s35, 0
      %p98 = por %p96, %p97
      %p99 = scmp.ne.s32.totalorder %s87, %s88
      %p100 = scmp.eq.s32.totalorder %s36, 1
      %p101 = por %p99, %p100
      %p103 = scmp.ne.s32.totalorder %s88, %s102
      %p104 = scmp.eq.s32.totalorder %s36, 0
      %p105 = por %p103, %p104
      %s107 = sadd.s32 %s106, 1
      %p110 = scmp.eq.s32.totalorder %s30, 1
      %p111 = scmp.ne.s32.totalorder %s106, %s108
      %p112 = scmp.eq.s32.totalorder %s30, 0
      %p113 = por %p111, %p112
      %p114 = scmp.ne.s32.totalorder %s106, %s108
      %p115 = scmp.eq.s32.totalorder %s35, 1
      %p116 = por %p114, %p115
      %p117 = scmp.ne.s32.totalorder %s108, %s109
      %p118 = scmp.eq.s32.totalorder %s35, 0
      %p119 = por %p117, %p118
      %p120 = scmp.ne.s32.totalorder %s108, %s109
      %p121 = scmp.eq.s32.totalorder %s36, 1
      %p122 = por %p120, %p121
      %p124 = scmp.ne.s32.totalorder %s109, %s123
      %p125 = scmp.eq.s32.totalorder %s36, 0
      %p126 = por %p124, %p125
      %s128 = sadd.s32 %s127, 1
      %p131 = scmp.eq.s32.totalorder %s30, 1
      %p132 = scmp.ne.s32.totalorder %s127, %s129
      %p133 = scmp.eq.s32.totalorder %s30, 0
      %p134 = por %p132, %p133
      %p135 = scmp.ne.s32.totalorder %s127, %s129
      %p136 = scmp.eq.s32.totalorder %s35, 1
      %p137 = por %p135, %p136
      %p138 = scmp.ne.s32.totalorder %s129, %s130
      %p139 = scmp.eq.s32.totalorder %s35, 0
      %p140 = por %p138, %p139
      %p141 = scmp.ne.s32.totalorder %s129, %s130
      %p142 = scmp.eq.s32.totalorder %s36, 1
      %p143 = por %p141, %p142
      %p145 = scmp.ne.s32.totalorder %s130, %s144
      %p146 = scmp.eq.s32.totalorder %s36, 0
      %p147 = por %p145, %p146
      %s149 = sadd.s32 %s148, 1
      %p152 = scmp.eq.s32.totalorder %s30, 1
      %p153 = scmp.ne.s32.totalorder %s148, %s150
      %p154 = scmp.eq.s32.totalorder %s30, 0
      %p155 = por %p153, %p154
      %p156 = scmp.ne.s32.totalorder %s148, %s150
      %p157 = scmp.eq.s32.totalorder %s35, 1
      %p158 = por %p156, %p157
      %p159 = scmp.ne.s32.totalorder %s150, %s151
      %p160 = scmp.eq.s32.totalorder %s35, 0
      %p161 = por %p159, %p160
      %p162 = scmp.ne.s32.totalorder %s150, %s151
      %p163 = scmp.eq.s32.totalorder %s36, 1
      %p164 = por %p162, %p163
      %p166 = scmp.ne.s32.totalorder %s151, %s165
      %p167 = scmp.eq.s32.totalorder %s36, 0
      %p168 = por %p166, %p167
      %s170 = sadd.s32 %s169, 1
      %p173 = scmp.eq.s32.totalorder %s30, 1
      %p174 = scmp.ne.s32.totalorder %s169, %s171
      %p175 = scmp.eq.s32.totalorder %s30, 0
      %p176 = por %p174, %p175
      %p177 = scmp.ne.s32.totalorder %s169, %s171
      %p178 = scmp.eq.s32.totalorder %s35, 1
      %p179 = por %p177, %p178
      %p180 = scmp.ne.s32.totalorder %s171, %s172
      %p181 = scmp.eq.s32.totalorder %s35, 0
      %p182 = por %p180, %p181
      %p183 = scmp.ne.s32.totalorder %s171, %s172
      %p184 = scmp.eq.s32.totalorder %s36, 1
      %p185 = por %p183, %p184
      %p187 = scmp.ne.s32.totalorder %s172, %s186
      %p188 = scmp.eq.s32.totalorder %s36, 0
      %p189 = por %p187, %p188
      %s191 = sadd.s32 %s190, 1
      %p194 = scmp.eq.s32.totalorder %s30, 1
      %p195 = scmp.ne.s32.totalorder %s190, %s192
      %p196 = scmp.eq.s32.totalorder %s30, 0
      %p197 = por %p195, %p196
      %p198 = scmp.ne.s32.totalorder %s190, %s192
      %p199 = scmp.eq.s32.totalorder %s35, 1
      %p200 = por %p198, %p199
      %p201 = scmp.ne.s32.totalorder %s192, %s193
      %p202 = scmp.eq.s32.totalorder %s35, 0
      %p203 = por %p201, %p202
      %p204 = scmp.ne.s32.totalorder %s192, %s193
      %p205 = scmp.eq.s32.totalorder %s36, 1
      %p206 = por %p204, %p205
      %p208 = scmp.ne.s32.totalorder %s193, %s207
      %p209 = scmp.eq.s32.totalorder %s36, 0
      %p210 = por %p208, %p209
      %s212 = sadd.s32 %s211, 1
      %p215 = scmp.eq.s32.totalorder %s30, 1
      %p216 = scmp.ne.s32.totalorder %s211, %s213
      %p217 = scmp.eq.s32.totalorder %s30, 0
      %p218 = por %p216, %p217
      %p219 = scmp.ne.s32.totalorder %s211, %s213
      %p220 = scmp.eq.s32.totalorder %s35, 1
      %p221 = por %p219, %p220
      %p222 = scmp.ne.s32.totalorder %s213, %s214
      %p223 = scmp.eq.s32.totalorder %s35, 0
      %p224 = por %p222, %p223
      %p225 = scmp.ne.s32.totalorder %s213, %s214
      %p226 = scmp.eq.s32.totalorder %s36, 1
      %p227 = por %p225, %p226
      %p229 = scmp.ne.s32.totalorder %s214, %s228
      %p230 = scmp.eq.s32.totalorder %s36, 0
      %p231 = por %p229, %p230
      %s233 = sadd.s32 %s232, 1
      %p236 = scmp.eq.s32.totalorder %s30, 1
      %p237 = scmp.ne.s32.totalorder %s232, %s234
      %p238 = scmp.eq.s32.totalorder %s30, 0
      %p239 = por %p237, %p238
      %p240 = scmp.ne.s32.totalorder %s232, %s234
      %p241 = scmp.eq.s32.totalorder %s35, 1
      %p242 = por %p240, %p241
      %p243 = scmp.ne.s32.totalorder %s234, %s235
      %p244 = scmp.eq.s32.totalorder %s35, 0
      %p245 = por %p243, %p244
      %p246 = scmp.ne.s32.totalorder %s234, %s235
      %p247 = scmp.eq.s32.totalorder %s36, 1
      %p248 = por %p246, %p247
      %p250 = scmp.ne.s32.totalorder %s235, %s249
      %p251 = scmp.eq.s32.totalorder %s36, 0
      %p252 = por %p250, %p251
      %s254 = sadd.s32 %s253, 1
      %p257 = scmp.eq.s32.totalorder %s30, 1
      %p258 = scmp.ne.s32.totalorder %s253, %s255
      %p259 = scmp.eq.s32.totalorder %s30, 0
      %p260 = por %p258, %p259
      %p261 = scmp.ne.s32.totalorder %s253, %s255
      %p262 = scmp.eq.s32.totalorder %s35, 1
      %p263 = por %p261, %p262
      %p264 = scmp.ne.s32.totalorder %s255, %s256
      %p265 = scmp.eq.s32.totalorder %s35, 0
      %p266 = por %p264, %p265
      %p267 = scmp.ne.s32.totalorder %s255, %s256
      %p268 = scmp.eq.s32.totalorder %s36, 1
      %p269 = por %p267, %p268
      %p271 = scmp.ne.s32.totalorder %s256, %s270
      %p272 = scmp.eq.s32.totalorder %s36, 0
      %p273 = por %p271, %p272
      %s275 = sadd.s32 %s274, 1
      %p278 = scmp.eq.s32.totalorder %s30, 1
      %p279 = scmp.ne.s32.totalorder %s274, %s276
      %p280 = scmp.eq.s32.totalorder %s30, 0
      %p281 = por %p279, %p280
      %p282 = scmp.ne.s32.totalorder %s274, %s276
      %p283 = scmp.eq.s32.totalorder %s35, 1
      %p284 = por %p282, %p283
      %p285 = scmp.ne.s32.totalorder %s276, %s277
      %p286 = scmp.eq.s32.totalorder %s35, 0
      %p287 = por %p285, %p286
      %p288 = scmp.ne.s32.totalorder %s276, %s277
      %p289 = scmp.eq.s32.totalorder %s36, 1
      %p290 = por %p288, %p289
      %p292 = scmp.ne.s32.totalorder %s277, %s291
      %p293 = scmp.eq.s32.totalorder %s36, 0
      %p294 = por %p292, %p293
      %s296 = sadd.s32 %s295, 1
      %p299 = scmp.eq.s32.totalorder %s30, 1
      %p300 = scmp.ne.s32.totalorder %s295, %s297
      %p301 = scmp.eq.s32.totalorder %s30, 0
      %p302 = por %p300, %p301
      %p303 = scmp.ne.s32.totalorder %s295, %s297
      %p304 = scmp.eq.s32.totalorder %s35, 1
      %p305 = por %p303, %p304
      %p306 = scmp.ne.s32.totalorder %s297, %s298
      %p307 = scmp.eq.s32.totalorder %s35, 0
      %p308 = por %p306, %p307
      %p309 = scmp.ne.s32.totalorder %s297, %s298
      %p310 = scmp.eq.s32.totalorder %s36, 1
      %p311 = por %p309, %p310
      %p313 = scmp.ne.s32.totalorder %s298, %s312
      %p314 = scmp.eq.s32.totalorder %s36, 0
      %p315 = por %p313, %p314
      %s317 = sadd.s32 %s316, 1
      %p320 = scmp.eq.s32.totalorder %s30, 1
      %p321 = scmp.ne.s32.totalorder %s316, %s318
      %p322 = scmp.eq.s32.totalorder %s30, 0
      %p323 = por %p321, %p322
      %p324 = scmp.ne.s32.totalorder %s316, %s318
      %p325 = scmp.eq.s32.totalorder %s35, 1
      %p326 = por %p324, %p325
      %p327 = scmp.ne.s32.totalorder %s318, %s319
      %p328 = scmp.eq.s32.totalorder %s35, 0
      %p329 = por %p327, %p328
      %p330 = scmp.ne.s32.totalorder %s318, %s319
      %p331 = scmp.eq.s32.totalorder %s36, 1
      %p332 = por %p330, %p331
      %p334 = scmp.ne.s32.totalorder %s319, %s333
      %p335 = scmp.eq.s32.totalorder %s36, 0
      %p336 = por %p334, %p335
      %s338 = sadd.s32 %s337, 1
      %p341 = scmp.eq.s32.totalorder %s30, 1
      %p342 = scmp.ne.s32.totalorder %s337, %s339
      %p343 = scmp.eq.s32.totalorder %s30, 0
      %p344 = por %p342, %p343
      %p345 = scmp.ne.s32.totalorder %s337, %s339
      %p346 = scmp.eq.s32.totalorder %s35, 1
      %p347 = por %p345, %p346
      %p348 = scmp.ne.s32.totalorder %s339, %s340
      %p349 = scmp.eq.s32.totalorder %s35, 0
      %p350 = por %p348, %p349
      %p351 = scmp.ne.s32.totalorder %s339, %s340
      %p352 = scmp.eq.s32.totalorder %s36, 1
      %p353 = por %p351, %p352
      %p355 = scmp.ne.s32.totalorder %s340, %s354
      %p356 = scmp.eq.s32.totalorder %s36, 0
      %p357 = por %p355, %p356
      %s359 = sadd.s32 %s358, 1
      %p362 = scmp.eq.s32.totalorder %s30, 1
      %p363 = scmp.ne.s32.totalorder %s358, %s360
      %p364 = scmp.eq.s32.totalorder %s30, 0
      %p365 = por %p363, %p364
      %p366 = scmp.ne.s32.totalorder %s358, %s360
      %p367 = scmp.eq.s32.totalorder %s35, 1
      %p368 = por %p366, %p367
      %p369 = scmp.ne.s32.totalorder %s360, %s361
      %p370 = scmp.eq.s32.totalorder %s35, 0
      %p371 = por %p369, %p370
      %p372 = scmp.ne.s32.totalorder %s360, %s361
      %p373 = scmp.eq.s32.totalorder %s36, 1
      %p374 = por %p372, %p373
      %p376 = scmp.ne.s32.totalorder %s361, %s375
      %p377 = scmp.eq.s32.totalorder %s36, 0
      %p378 = por %p376, %p377
      %s380 = sadd.s32 %s379, 1
      %p383 = scmp.eq.s32.totalorder %s30, 1
      %p384 = scmp.ne.s32.totalorder %s379, %s381
      %p385 = scmp.eq.s32.totalorder %s30, 0
      %p386 = por %p384, %p385
      %p387 = scmp.ne.s32.totalorder %s379, %s381
      %p388 = scmp.eq.s32.totalorder %s35, 1
      %p389 = por %p387, %p388
      %p390 = scmp.ne.s32.totalorder %s381, %s382
      %p391 = scmp.eq.s32.totalorder %s35, 0
      %p392 = por %p390, %p391
      %p393 = scmp.ne.s32.totalorder %s381, %s382
      %p394 = scmp.eq.s32.totalorder %s36, 1
      %p395 = por %p393, %p394
      %p397 = scmp.ne.s32.totalorder %s382, %s396
      %p398 = scmp.eq.s32.totalorder %s36, 0
      %p399 = por %p397, %p398
      %s401 = sadd.s32 %s400, 1
      %p404 = scmp.eq.s32.totalorder %s30, 1
      %p405 = scmp.ne.s32.totalorder %s400, %s402
      %p406 = scmp.eq.s32.totalorder %s30, 0
      %p407 = por %p405, %p406
      %p408 = scmp.ne.s32.totalorder %s400, %s402
      %p409 = scmp.eq.s32.totalorder %s35, 1
      %p410 = por %p408, %p409
      %p411 = scmp.ne.s32.totalorder %s402, %s403
      %p412 = scmp.eq.s32.totalorder %s35, 0
      %p413 = por %p411, %p412
      %p414 = scmp.ne.s32.totalorder %s402, %s403
      %p415 = scmp.eq.s32.totalorder %s36, 1
      %p416 = por %p414, %p415
      %p418 = scmp.ne.s32.totalorder %s403, %s417
      %p419 = scmp.eq.s32.totalorder %s36, 0
      %p420 = por %p418, %p419
      %s421 = ssub.s32 %s30, %s37
      %p422 = scmp.eq.s32.totalorder %s421, 0
      %s424 = sadd.s32 %s423, 1
      %s425 = scalar_select %p422, %s423, %s424
      %p428 = pneg %p422
      %p429 = scmp.eq.s32.totalorder %s30, 1
      %p430 = por %p428, %p429
      %p431 = scmp.ne.s32.totalorder %s423, %s426
      %p432 = scmp.eq.s32.totalorder %s30, 0
      %p433 = por %p431, %p432
      %p434 = scmp.ne.s32.totalorder %s423, %s426
      %p435 = scmp.eq.s32.totalorder %s35, 1
      %p436 = por %p434, %p435
      %p437 = scmp.ne.s32.totalorder %s426, %s427
      %p438 = scmp.eq.s32.totalorder %s35, 0
      %p439 = por %p437, %p438
      %p440 = scmp.ne.s32.totalorder %s426, %s427
      %p441 = scmp.eq.s32.totalorder %s36, 1
      %p442 = por %p440, %p441
      %p444 = scmp.ne.s32.totalorder %s427, %s443
      %p445 = scmp.eq.s32.totalorder %s36, 0
      %p446 = por %p444, %p445
      %p447 = scmp.le.s32.totalorder 1, %s30
      %p448 = scmp.lt.s32.totalorder %s30, 3
      %p449 = pnand %p447, %p448
      %p450 = pneg %p449
      // Predicated region
      $region9: #{transformer_forward.1} parent=5 // pred_check
        _
      $region10: #{transformer_forward.1} parent=5 // pred_check_branch
        %452 = sbr.rel (%p449) target = $region12
      $region11: #{transformer_forward.1} parent=5 // pred_region
        %s453 = ssub.s32 %s30, 1
        // Predicated region
        $region13: #{transformer_forward.1} parent=11 // pred_check
          %p454 = pneg %p77
        $region14: #{transformer_forward.1} parent=11 // pred_check_branch
          %456 = sbr.rel (%p454) target = $region16
        $region15: #{transformer_forward.1} parent=11 // pred_region
          %s458 = ssub.s32 2048, 2048
          %459 = vsyncadd [#allocation4], %s458
          %s460 = sshll.u32 [#allocation3], 4
          %s461 = int_to_ptr.vmem [resolvable:$true] %s460
          %466 = dma.hbm_to_vmem [thread:$0]  %s1, 2048, %s461, [#allocation4], 128, 128, 8
        $region16: #{transformer_forward.1} parent=11 // pred_fallthru
          _
        // Predicated region
        $region17: #{transformer_forward.1} parent=11 // pred_check
          %p467 = pneg %p98
        $region18: #{transformer_forward.1} parent=11 // pred_check_branch
          %469 = sbr.rel (%p467) target = $region20
        $region19: #{transformer_forward.1} parent=11 // pred_region
          %s471 = ssub.s32 32, 32
          %472 = vsyncadd [#allocation6], %s471
          %s474 = sshll.u32 [#allocation5], 4
          %s475 = int_to_ptr.vmem [resolvable:$true] %s474
          %477 = dma.hbm_to_vmem [thread:$0]  %s2, 32, %s475, [#allocation6]
        $region20: #{transformer_forward.1} parent=11 // pred_fallthru
          _
        // Predicated region
        $region21: #{transformer_forward.1} parent=11 // pred_check
          %p478 = pneg %p119
        $region22: #{transformer_forward.1} parent=11 // pred_check_branch
          %480 = sbr.rel (%p478) target = $region24
        $region23: #{transformer_forward.1} parent=11 // pred_region
          _
        $region24: #{transformer_forward.1} parent=11 // pred_fallthru
          _
        // Predicated region
        $region25: #{transformer_forward.1} parent=11 // pred_check
          %p481 = pneg %p140
        $region26: #{transformer_forward.1} parent=11 // pred_check_branch
          %483 = sbr.rel (%p481) target = $region28
        $region27: #{transformer_forward.1} parent=11 // pred_region
          %s485 = ssub.s32 24576, 24576
          %486 = vsyncadd [#allocation6], %s485
          %s487 = sshll.u32 [#allocation7], 4
          %s488 = int_to_ptr.vmem [resolvable:$true] %s487
          %493 = dma.hbm_to_vmem [thread:$0]  %s4, 24576, %s488, [#allocation6], 384, 384, 24
        $region28: #{transformer_forward.1} parent=11 // pred_fallthru
          _
        // Predicated region
        $region29: #{transformer_forward.1} parent=11 // pred_check
          %p494 = pneg %p161
        $region30: #{transformer_forward.1} parent=11 // pred_check_branch
          %496 = sbr.rel (%p494) target = $region32
        $region31: #{transformer_forward.1} parent=11 // pred_region
          _
        $region32: #{transformer_forward.1} parent=11 // pred_fallthru
          _
        // Predicated region
        $region33: #{transformer_forward.1} parent=11 // pred_check
          %p497 = pneg %p182
        $region34: #{transformer_forward.1} parent=11 // pred_check_branch
          %499 = sbr.rel (%p497) target = $region36
        $region35: #{transformer_forward.1} parent=11 // pred_region
          %s501 = ssub.s32 8192, 8192
          %502 = vsyncadd [#allocation9], %s501
          %s503 = sshll.u32 [#allocation8], 4
          %s504 = int_to_ptr.vmem [resolvable:$true] %s503
          %509 = dma.hbm_to_vmem [thread:$0]  %s6, 8192, %s504, [#allocation9], 128, 128, 8
        $region36: #{transformer_forward.1} parent=11 // pred_fallthru
          _
        // Predicated region
        $region37: #{transformer_forward.1} parent=11 // pred_check
          %p510 = pneg %p203
        $region38: #{transformer_forward.1} parent=11 // pred_check_branch
          %512 = sbr.rel (%p510) target = $region40
        $region39: #{transformer_forward.1} parent=11 // pred_region
          _
        $region40: #{transformer_forward.1} parent=11 // pred_fallthru
          _
        // Predicated region
        $region41: #{transformer_forward.1} parent=11 // pred_check
          %p513 = pneg %p224
        $region42: #{transformer_forward.1} parent=11 // pred_check_branch
          %515 = sbr.rel (%p513) target = $region44
        $region43: #{transformer_forward.1} parent=11 // pred_region
          _
        $region44: #{transformer_forward.1} parent=11 // pred_fallthru
          _
        // Predicated region
        $region45: #{transformer_forward.1} parent=11 // pred_check
          %p516 = pneg %p245
        $region46: #{transformer_forward.1} parent=11 // pred_check_branch
          %518 = sbr.rel (%p516) target = $region48
        $region47: #{transformer_forward.1} parent=11 // pred_region
          _
        $region48: #{transformer_forward.1} parent=11 // pred_fallthru
          _
        // Predicated region
        $region49: #{transformer_forward.1} parent=11 // pred_check
          %p519 = pneg %p266
        $region50: #{transformer_forward.1} parent=11 // pred_check_branch
          %521 = sbr.rel (%p519) target = $region52
        $region51: #{transformer_forward.1} parent=11 // pred_region
          _
        $region52: #{transformer_forward.1} parent=11 // pred_fallthru
          _
        // Predicated region
        $region53: #{transformer_forward.1} parent=11 // pred_check
          %p522 = pneg %p287
        $region54: #{transformer_forward.1} parent=11 // pred_check_branch
          %524 = sbr.rel (%p522) target = $region56
        $region55: #{transformer_forward.1} parent=11 // pred_region
          _
        $region56: #{transformer_forward.1} parent=11 // pred_fallthru
          _
        // Predicated region
        $region57: #{transformer_forward.1} parent=11 // pred_check
          %p525 = pneg %p308
        $region58: #{transformer_forward.1} parent=11 // pred_check_branch
          %527 = sbr.rel (%p525) target = $region60
        $region59: #{transformer_forward.1} parent=11 // pred_region
          %s529 = ssub.s32 16384, 16384
          %530 = vsyncadd [#allocation9], %s529
          %s531 = sshll.u32 [#allocation10], 4
          %s532 = int_to_ptr.vmem [resolvable:$true] %s531
          %537 = dma.hbm_to_vmem [thread:$0]  %s12, 16384, %s532, [#allocation9], 256, 256, 16
        $region60: #{transformer_forward.1} parent=11 // pred_fallthru
          _
        // Predicated region
        $region61: #{transformer_forward.1} parent=11 // pred_check
          %p538 = pneg %p329
        $region62: #{transformer_forward.1} parent=11 // pred_check_branch
          %540 = sbr.rel (%p538) target = $region64
        $region63: #{transformer_forward.1} parent=11 // pred_region
          _
        $region64: #{transformer_forward.1} parent=11 // pred_fallthru
          _
        // Predicated region
        $region65: #{transformer_forward.1} parent=11 // pred_check
          %p541 = pneg %p350
        $region66: #{transformer_forward.1} parent=11 // pred_check_branch
          %543 = sbr.rel (%p541) target = $region68
        $region67: #{transformer_forward.1} parent=11 // pred_region
          %s545 = ssub.s32 16384, 16384
          %546 = vsyncadd [#allocation12], %s545
          %s547 = sshll.u32 [#allocation11], 4
          %s548 = int_to_ptr.vmem [resolvable:$true] %s547
          %553 = dma.hbm_to_vmem [thread:$0]  %s14, 16384, %s548, [#allocation12], 128, 128, 8
        $region68: #{transformer_forward.1} parent=11 // pred_fallthru
          _
        // Predicated region
        $region69: #{transformer_forward.1} parent=11 // pred_check
          %p554 = pneg %p371
        $region70: #{transformer_forward.1} parent=11 // pred_check_branch
          %556 = sbr.rel (%p554) target = $region72
        $region71: #{transformer_forward.1} parent=11 // pred_region
          _
        $region72: #{transformer_forward.1} parent=11 // pred_fallthru
          _
        // Predicated region
        $region73: #{transformer_forward.1} parent=11 // pred_check
          %p557 = pneg %p392
        $region74: #{transformer_forward.1} parent=11 // pred_check_branch
          %559 = sbr.rel (%p557) target = $region76
        $region75: #{transformer_forward.1} parent=11 // pred_region
          _
        $region76: #{transformer_forward.1} parent=11 // pred_fallthru
          _
        // Predicated region
        $region77: #{transformer_forward.1} parent=11 // pred_check
          %p560 = pneg %p413
        $region78: #{transformer_forward.1} parent=11 // pred_check_branch
          %562 = sbr.rel (%p560) target = $region80
        $region79: #{transformer_forward.1} parent=11 // pred_region
          _
        $region80: #{transformer_forward.1} parent=11 // pred_fallthru
          _
      $region12: #{transformer_forward.1} parent=5 // pred_fallthru
        _
      %p563 = scmp.lt.s32.totalorder %s30, 2
      // Predicated region
      $region81: #{transformer_forward.1} parent=5 // pred_check
        %p564 = pneg %p563
      $region82: #{transformer_forward.1} parent=5 // pred_check_branch
        %566 = sbr.rel (%p564) target = $region84
      $region83: #{transformer_forward.1} parent=5 // pred_region
        // Predicated region
        $region85: #{transformer_forward.1} parent=83 // pred_check
          %p567 = pneg %p50
        $region86: #{transformer_forward.1} parent=83 // pred_check_branch
          %569 = sbr.rel (%p567) target = $region88
        $region87: #{transformer_forward.1} parent=83 // pred_region
          %p570 = scmp.lt.s32.totalorder %s30, 1
          %s571 = scalar_select %p570, %s30, 1
          %s572 = smul.addr %s571, 8
          %s573 = scalar_lea.vmem %s0, %s572
        $region88: #{transformer_forward.1} parent=83 // pred_fallthru
          _
      $region84: #{transformer_forward.1} parent=5 // pred_fallthru
        _
      %p574 = scmp.le.s32.totalorder 1, %s30
      %p575 = scmp.lt.s32.totalorder %s30, 3
      %p576 = pnand %p574, %p575
      %p577 = pneg %p576
      // Predicated region
      $region89: #{transformer_forward.1} parent=5 // pred_check
        _
      $region90: #{transformer_forward.1} parent=5 // pred_check_branch
        %579 = sbr.rel (%p576) target = $region92
      $region91: #{transformer_forward.1} parent=5 // pred_region
        %s580 = ssub.s32 %s30, 1
        // Predicated region
        $region93: #{transformer_forward.1} parent=91 // pred_check
          %p581 = pneg %p77
        $region94: #{transformer_forward.1} parent=91 // pred_check_branch
          %583 = sbr.rel (%p581) target = $region96
        $region95: #{transformer_forward.1} parent=91 // pred_region
          %584 = dma.done [#allocation4], 2048
        $region96: #{transformer_forward.1} parent=91 // pred_fallthru
          _
        // Predicated region
        $region97: #{transformer_forward.1} parent=91 // pred_check
          %p585 = pneg %p98
        $region98: #{transformer_forward.1} parent=91 // pred_check_branch
          %587 = sbr.rel (%p585) target = $region100
        $region99: #{transformer_forward.1} parent=91 // pred_region
          %588 = dma.done [#allocation6], 32
        $region100: #{transformer_forward.1} parent=91 // pred_fallthru
          _
        // Predicated region
        $region101: #{transformer_forward.1} parent=91 // pred_check
          %p589 = pneg %p140
        $region102: #{transformer_forward.1} parent=91 // pred_check_branch
          %591 = sbr.rel (%p589) target = $region104
        $region103: #{transformer_forward.1} parent=91 // pred_region
          %592 = dma.done [#allocation6], 24576
        $region104: #{transformer_forward.1} parent=91 // pred_fallthru
          _
        // Predicated region
        $region105: #{transformer_forward.1} parent=91 // pred_check
          %p593 = pneg %p182
        $region106: #{transformer_forward.1} parent=91 // pred_check_branch
          %595 = sbr.rel (%p593) target = $region108
        $region107: #{transformer_forward.1} parent=91 // pred_region
          %596 = dma.done [#allocation9], 8192
        $region108: #{transformer_forward.1} parent=91 // pred_fallthru
          _
        // Predicated region
        $region109: #{transformer_forward.1} parent=91 // pred_check
          %p597 = pneg %p308
        $region110: #{transformer_forward.1} parent=91 // pred_check_branch
          %599 = sbr.rel (%p597) target = $region112
        $region111: #{transformer_forward.1} parent=91 // pred_region
          %600 = dma.done [#allocation9], 16384
        $region112: #{transformer_forward.1} parent=91 // pred_fallthru
          _
        // Predicated region
        $region113: #{transformer_forward.1} parent=91 // pred_check
          %p601 = pneg %p350
        $region114: #{transformer_forward.1} parent=91 // pred_check_branch
          %603 = sbr.rel (%p601) target = $region116
        $region115: #{transformer_forward.1} parent=91 // pred_region
          %604 = dma.done [#allocation12], 16384
        $region116: #{transformer_forward.1} parent=91 // pred_fallthru
          _
        %p605 = scmp.lt.s32.totalorder %s35, 1
        %s606 = scalar_select %p605, %s35, 1
        %s607 = smul.addr %s606, 8
        %s608 = scalar_lea.vmem %s0, %s607
        %p609 = pneg %p56
        %p610 = pneg %p53
        %p611 = pneg %p77
        %p612 = pneg %p74
        %p613 = pneg %p98
        %p614 = pneg %p95
        %p615 = pneg %p119
        %p616 = pneg %p116
        %p617 = pneg %p140
        %p618 = pneg %p137
        %p619 = pneg %p161
        %p620 = pneg %p158
        %p621 = pneg %p182
        %p622 = pneg %p179
        %p623 = pneg %p203
        %p624 = pneg %p200
        %p625 = pneg %p224
        %p626 = pneg %p221
        %p627 = pneg %p245
        %p628 = pneg %p242
        %p629 = pneg %p266
        %p630 = pneg %p263
        %p631 = pneg %p287
        %p632 = pneg %p284
        %p633 = pneg %p308
        %p634 = pneg %p305
        %p635 = pneg %p329
        %p636 = pneg %p326
        %p637 = pneg %p350
        %p638 = pneg %p347
        %p639 = pneg %p371
        %p640 = pneg %p368
        %p641 = pneg %p392
        %p642 = pneg %p389
        %p643 = pneg %p413
        %p644 = pneg %p410
        %p645 = pneg %p439
        %p646 = pneg %p436
        %p647 = scmp.lt.s32.totalorder %s35, 1
        %s648 = scalar_select %p647, %s35, 1
        %s649 = smul.addr %s648, 8
        %s650 = scalar_lea.vmem %s18, %s649
        %p651 = scmp.lt.s32.totalorder %s35, 1
        %s652 = scalar_select %p651, %s35, 1
        %s653 = smul.addr %s652, 8
        %s654 = scalar_lea.vmem %s0, %s653
        %p655 = scmp.lt.s32.totalorder %s35, 1
        %s656 = scalar_select %p655, %s35, 1
        %s657 = smul.addr %s656, 8
        %s658 = scalar_lea.vmem %s18, %s657
        %v660 = vld [vmem:[%s654] sm:$0xff]
        %v661 = vpack.c.bf16 %v660, %v660
        %v662 = vld [vmem:[#allocation3] sm:$0xff]
        %v663 = vld [vmem:[#allocation3 + $0x8] sm:$0xff]
        %v664 = vld [vmem:[#allocation3 + $0x10] sm:$0xff]
        %v665 = vld [vmem:[#allocation3 + $0x18] sm:$0xff]
        %v666 = vld [vmem:[#allocation3 + $0x20] sm:$0xff]
        %v667 = vld [vmem:[#allocation3 + $0x28] sm:$0xff]
        %v668 = vld [vmem:[#allocation3 + $0x30] sm:$0xff]
        %v669 = vld [vmem:[#allocation3 + $0x38] sm:$0xff]
        %v670 = vld [vmem:[#allocation3 + $0x40] sm:$0xff]
        %v671 = vld [vmem:[#allocation3 + $0x48] sm:$0xff]
        %v672 = vld [vmem:[#allocation3 + $0x50] sm:$0xff]
        %v673 = vld [vmem:[#allocation3 + $0x58] sm:$0xff]
        %v674 = vld [vmem:[#allocation3 + $0x60] sm:$0xff]
        %v675 = vld [vmem:[#allocation3 + $0x68] sm:$0xff]
        %v676 = vld [vmem:[#allocation3 + $0x70] sm:$0xff]
        %v677 = vld [vmem:[#allocation3 + $0x78] sm:$0xff]
        %v678 = vld [vmem:[#allocation5] sm:$0x3]
        %v680 = vlaneseq
        %v681 = vshrl.u32 %v680, 7
        %v682 = vsub.s32 0, %v681
        %v683 = vrot.slane %v678, %v682
        %v684 = vlaneseq
        %v685 = vshrl.u32 %v684, 7
        %v686 = vsub.s32 1, %v685
        %v687 = vrot.slane %v678, %v686
        %v706 = vunpack.c.l.b16 %v662
        %v707 = vunpack.c.h.b16 %v662
        %v708 = vunpack.c.l.b16 %v663
        %v709 = vunpack.c.h.b16 %v663
        %v710 = vunpack.c.l.b16 %v664
        %v711 = vunpack.c.h.b16 %v664
        %v712 = vunpack.c.l.b16 %v665
        %v713 = vunpack.c.h.b16 %v665
        %v714 = vunpack.c.l.b16 %v666
        %v715 = vunpack.c.h.b16 %v666
        %v716 = vunpack.c.l.b16 %v667
        %v717 = vunpack.c.h.b16 %v667
        %v718 = vunpack.c.l.b16 %v668
        %v719 = vunpack.c.h.b16 %v668
        %v720 = vunpack.c.l.b16 %v669
        %v721 = vunpack.c.h.b16 %v669
        %v722 = vunpack.c.l.b16 %v670
        %v723 = vunpack.c.h.b16 %v670
        %v724 = vunpack.c.l.b16 %v671
        %v725 = vunpack.c.h.b16 %v671
        %v726 = vunpack.c.l.b16 %v672
        %v727 = vunpack.c.h.b16 %v672
        %v728 = vunpack.c.l.b16 %v673
        %v729 = vunpack.c.h.b16 %v673
        %v730 = vunpack.c.l.b16 %v674
        %v731 = vunpack.c.h.b16 %v674
        %v732 = vunpack.c.l.b16 %v675
        %v733 = vunpack.c.h.b16 %v675
        %v734 = vunpack.c.l.b16 %v676
        %v735 = vunpack.c.h.b16 %v676
        %v736 = vunpack.c.l.b16 %v677
        %v737 = vunpack.c.h.b16 %v677
        %v738 = vpack.c.b16 %v708, %v706
        %v739 = vpack.c.b16 %v709, %v707
        %v740 = vpack.c.b16 %v712, %v710
        %v741 = vpack.c.b16 %v713, %v711
        %v742 = vpack.c.b16 %v716, %v714
        %v743 = vpack.c.b16 %v717, %v715
        %v744 = vpack.c.b16 %v720, %v718
        %v745 = vpack.c.b16 %v721, %v719
        %v746 = vpack.c.b16 %v724, %v722
        %v747 = vpack.c.b16 %v725, %v723
        %v748 = vpack.c.b16 %v728, %v726
        %v749 = vpack.c.b16 %v729, %v727
        %v750 = vpack.c.b16 %v732, %v730
        %v751 = vpack.c.b16 %v733, %v731
        %v752 = vpack.c.b16 %v736, %v734
        %v753 = vpack.c.b16 %v737, %v735
        %770 = vmatprep.subr.bf16.mxu0 %v739
        %771 = vmatpush1.bf16.msra.mxu0 %v738
        %772 = vmatprep.subr.bf16.mxu0 %v741
        %773 = vmatpush1.bf16.msra.mxu0 %v740
        %774 = vmatprep.subr.bf16.mxu0 %v743
        %775 = vmatpush1.bf16.msra.mxu0 %v742
        %776 = vmatprep.subr.bf16.mxu0 %v745
        %777 = vmatpush1.bf16.msra.mxu0 %v744
        %778 = vmatprep.subr.bf16.mxu0 %v747
        %779 = vmatpush1.bf16.msra.mxu0 %v746
        %780 = vmatprep.subr.bf16.mxu0 %v749
        %781 = vmatpush1.bf16.msra.mxu0 %v748
        %782 = vmatprep.subr.bf16.mxu0 %v751
        %783 = vmatpush1.bf16.msra.mxu0 %v750
        %784 = vmatprep.subr.bf16.mxu0 %v753
        %785 = vmatpush1.bf16.msra.mxu0 %v752
        %786 = vmatprep.subr.bf16.mxu0 0
        %787 = vmatpush1.bf16.msra.mxu0 0
        %788 = vmatprep.subr.bf16.mxu0 0
        %789 = vmatpush1.bf16.msra.mxu0 0
        %790 = vmatprep.subr.bf16.mxu0 0
        %791 = vmatpush1.bf16.msra.mxu0 0
        %792 = vmatprep.subr.bf16.mxu0 0
        %793 = vmatpush1.bf16.msra.mxu0 0
        %794 = vmatprep.subr.bf16.mxu0 0
        %795 = vmatpush1.bf16.msra.mxu0 0
        %796 = vmatprep.subr.bf16.mxu0 0
        %797 = vmatpush1.bf16.msra.mxu0 0
        %798 = vmatprep.subr.bf16.mxu0 0
        %799 = vmatpush1.bf16.msra.mxu0 0
        %800 = vmatprep.subr.bf16.mxu0 0
        %801 = vmatpush1.bf16.msra.mxu0 0
        %802 = vmatprep.mubr.bf16.mxu0 0
        %803 = vmatmul.mubr.bf16.gmra.mrb[0].mxu0 %v661
        %v804 = vpop.f32.mrb[0].mxu0
        %v805 = vadd.f32 %v683, %v804
        %v806 = vpop.f32.mrb[0].mxu0
        %v807 = vadd.f32 %v687, %v806
        %v808 = vpop.f32.mrb[0].mxu0
        %v809 = vpop.f32.mrb[0].mxu0
        %810 = vdwg.mxu0
        %v811 = vld [vmem:[%s3] sm:$0x3]
        %v813 = vlaneseq
        %v814 = vshrl.u32 %v813, 7
        %v815 = vsub.s32 0, %v814
        %v816 = vrot.slane %v811, %v815
        %v817 = vlaneseq
        %v818 = vshrl.u32 %v817, 7
        %v819 = vsub.s32 1, %v818
        %v820 = vrot.slane %v811, %v819
        %v823 = vadd.f32 %v805, %v816
        %v824 = vadd.f32 %v807, %v820
        %v825 = vpack.c.bf16 %v823, %v823
        %v826 = vpack.c.bf16 %v824, %v824
        %v827 = vld [vmem:[#allocation7] sm:$0xff]
        %v828 = vld [vmem:[#allocation7 + $0x8] sm:$0xff]
        %v829 = vld [vmem:[#allocation7 + $0x10] sm:$0xff]
        %v830 = vld [vmem:[#allocation7 + $0x18] sm:$0xff]
        %v831 = vld [vmem:[#allocation7 + $0x20] sm:$0xff]
        %v832 = vld [vmem:[#allocation7 + $0x28] sm:$0xff]
        %v833 = vld [vmem:[#allocation7 + $0x30] sm:$0xff]
        %v834 = vld [vmem:[#allocation7 + $0x38] sm:$0xff]
        %v835 = vld [vmem:[#allocation7 + $0x40] sm:$0xff]
        %v836 = vld [vmem:[#allocation7 + $0x48] sm:$0xff]
        %v837 = vld [vmem:[#allocation7 + $0x50] sm:$0xff]
        %v838 = vld [vmem:[#allocation7 + $0x58] sm:$0xff]
        %v839 = vld [vmem:[#allocation7 + $0x60] sm:$0xff]
        %v840 = vld [vmem:[#allocation7 + $0x68] sm:$0xff]
        %v841 = vld [vmem:[#allocation7 + $0x70] sm:$0xff]
        %v842 = vld [vmem:[#allocation7 + $0x78] sm:$0xff]
        %v843 = vld [vmem:[#allocation7 + $0x80] sm:$0xff]
        %v844 = vld [vmem:[#allocation7 + $0x88] sm:$0xff]
        %v845 = vld [vmem:[#allocation7 + $0x90] sm:$0xff]
        %v846 = vld [vmem:[#allocation7 + $0x98] sm:$0xff]
        %v847 = vld [vmem:[#allocation7 + $0xa0] sm:$0xff]
        %v848 = vld [vmem:[#allocation7 + $0xa8] sm:$0xff]
        %v849 = vld [vmem:[#allocation7 + $0xb0] sm:$0xff]
        %v850 = vld [vmem:[#allocation7 + $0xb8] sm:$0xff]
        %v851 = vld [vmem:[#allocation7 + $0xc0] sm:$0xff]
        %v852 = vld [vmem:[#allocation7 + $0xc8] sm:$0xff]
        %v853 = vld [vmem:[#allocation7 + $0xd0] sm:$0xff]
        %v854 = vld [vmem:[#allocation7 + $0xd8] sm:$0xff]
        %v855 = vld [vmem:[#allocation7 + $0xe0] sm:$0xff]
        %v856 = vld [vmem:[#allocation7 + $0xe8] sm:$0xff]
        %v857 = vld [vmem:[#allocation7 + $0xf0] sm:$0xff]
        %v858 = vld [vmem:[#allocation7 + $0xf8] sm:$0xff]
        %v859 = vld [vmem:[#allocation7 + $0x100] sm:$0xff]
        %v860 = vld [vmem:[#allocation7 + $0x108] sm:$0xff]
        %v861 = vld [vmem:[#allocation7 + $0x110] sm:$0xff]
        %v862 = vld [vmem:[#allocation7 + $0x118] sm:$0xff]
        %v863 = vld [vmem:[#allocation7 + $0x120] sm:$0xff]
        %v864 = vld [vmem:[#allocation7 + $0x128] sm:$0xff]
        %v865 = vld [vmem:[#allocation7 + $0x130] sm:$0xff]
        %v866 = vld [vmem:[#allocation7 + $0x138] sm:$0xff]
        %v867 = vld [vmem:[#allocation7 + $0x140] sm:$0xff]
        %v868 = vld [vmem:[#allocation7 + $0x148] sm:$0xff]
        %v869 = vld [vmem:[#allocation7 + $0x150] sm:$0xff]
        %v870 = vld [vmem:[#allocation7 + $0x158] sm:$0xff]
        %v871 = vld [vmem:[#allocation7 + $0x160] sm:$0xff]
        %v872 = vld [vmem:[#allocation7 + $0x168] sm:$0xff]
        %v873 = vld [vmem:[#allocation7 + $0x170] sm:$0xff]
        %v874 = vld [vmem:[#allocation7 + $0x178] sm:$0xff]
        %v875 = vld [vmem:[#allocation7 + $0x180] sm:$0xff]
        %v876 = vld [vmem:[#allocation7 + $0x188] sm:$0xff]
        %v877 = vld [vmem:[#allocation7 + $0x190] sm:$0xff]
        %v878 = vld [vmem:[#allocation7 + $0x198] sm:$0xff]
        %v879 = vld [vmem:[#allocation7 + $0x1a0] sm:$0xff]
        %v880 = vld [vmem:[#allocation7 + $0x1a8] sm:$0xff]
        %v881 = vld [vmem:[#allocation7 + $0x1b0] sm:$0xff]
        %v882 = vld [vmem:[#allocation7 + $0x1b8] sm:$0xff]
        %v883 = vld [vmem:[#allocation7 + $0x1c0] sm:$0xff]
        %v884 = vld [vmem:[#allocation7 + $0x1c8] sm:$0xff]
        %v885 = vld [vmem:[#allocation7 + $0x1d0] sm:$0xff]
        %v886 = vld [vmem:[#allocation7 + $0x1d8] sm:$0xff]
        %v887 = vld [vmem:[#allocation7 + $0x1e0] sm:$0xff]
        %v888 = vld [vmem:[#allocation7 + $0x1e8] sm:$0xff]
        %v889 = vld [vmem:[#allocation7 + $0x1f0] sm:$0xff]
        %v890 = vld [vmem:[#allocation7 + $0x1f8] sm:$0xff]
        %v891 = vld [vmem:[#allocation7 + $0x200] sm:$0xff]
        %v892 = vld [vmem:[#allocation7 + $0x208] sm:$0xff]
        %v893 = vld [vmem:[#allocation7 + $0x210] sm:$0xff]
        %v894 = vld [vmem:[#allocation7 + $0x218] sm:$0xff]
        %v895 = vld [vmem:[#allocation7 + $0x220] sm:$0xff]
        %v896 = vld [vmem:[#allocation7 + $0x228] sm:$0xff]
        %v897 = vld [vmem:[#allocation7 + $0x230] sm:$0xff]
        %v898 = vld [vmem:[#allocation7 + $0x238] sm:$0xff]
        %v899 = vld [vmem:[#allocation7 + $0x240] sm:$0xff]
        %v900 = vld [vmem:[#allocation7 + $0x248] sm:$0xff]
        %v901 = vld [vmem:[#allocation7 + $0x250] sm:$0xff]
        %v902 = vld [vmem:[#allocation7 + $0x258] sm:$0xff]
        %v903 = vld [vmem:[#allocation7 + $0x260] sm:$0xff]
        %v904 = vld [vmem:[#allocation7 + $0x268] sm:$0xff]
        %v905 = vld [vmem:[#allocation7 + $0x270] sm:$0xff]
        %v906 = vld [vmem:[#allocation7 + $0x278] sm:$0xff]
        %v907 = vld [vmem:[#allocation7 + $0x280] sm:$0xff]
        %v908 = vld [vmem:[#allocation7 + $0x288] sm:$0xff]
        %v909 = vld [vmem:[#allocation7 + $0x290] sm:$0xff]
        %v910 = vld [vmem:[#allocation7 + $0x298] sm:$0xff]
        %v911 = vld [vmem:[#allocation7 + $0x2a0] sm:$0xff]
        %v912 = vld [vmem:[#allocation7 + $0x2a8] sm:$0xff]
        %v913 = vld [vmem:[#allocation7 + $0x2b0] sm:$0xff]
        %v914 = vld [vmem:[#allocation7 + $0x2b8] sm:$0xff]
        %v915 = vld [vmem:[#allocation7 + $0x2c0] sm:$0xff]
        %v916 = vld [vmem:[#allocation7 + $0x2c8] sm:$0xff]
        %v917 = vld [vmem:[#allocation7 + $0x2d0] sm:$0xff]
        %v918 = vld [vmem:[#allocation7 + $0x2d8] sm:$0xff]
        %v919 = vld [vmem:[#allocation7 + $0x2e0] sm:$0xff]
        %v920 = vld [vmem:[#allocation7 + $0x2e8] sm:$0xff]
        %v921 = vld [vmem:[#allocation7 + $0x2f0] sm:$0xff]
        %v922 = vld [vmem:[#allocation7 + $0x2f8] sm:$0xff]
        %v923 = vld [vmem:[%s5] sm:$0x3f]
        %v925 = vlaneseq
        %v926 = vshrl.u32 %v925, 7
        %v927 = vsub.s32 0, %v926
        %v928 = vrot.slane %v923, %v927
        %v929 = vlaneseq
        %v930 = vshrl.u32 %v929, 7
        %v931 = vsub.s32 1, %v930
        %v932 = vrot.slane %v923, %v931
        %v933 = vlaneseq
        %v934 = vshrl.u32 %v933, 7
        %v935 = vsub.s32 2, %v934
        %v936 = vrot.slane %v923, %v935
        %v937 = vlaneseq
        %v938 = vshrl.u32 %v937, 7
        %v939 = vsub.s32 3, %v938
        %v940 = vrot.slane %v923, %v939
        %v941 = vlaneseq
        %v942 = vshrl.u32 %v941, 7
        %v943 = vsub.s32 4, %v942
        %v944 = vrot.slane %v923, %v943
        %v945 = vlaneseq
        %v946 = vshrl.u32 %v945, 7
        %v947 = vsub.s32 5, %v946
        %v948 = vrot.slane %v923, %v947
        %v1051 = vunpack.c.l.b16 %v827
        %v1052 = vunpack.c.h.b16 %v827
        %v1053 = vunpack.c.l.b16 %v828
        %v1054 = vunpack.c.h.b16 %v828
        %v1055 = vunpack.c.l.b16 %v829
        %v1056 = vunpack.c.h.b16 %v829
        %v1057 = vunpack.c.l.b16 %v830
        %v1058 = vunpack.c.h.b16 %v830
        %v1059 = vunpack.c.l.b16 %v831
        %v1060 = vunpack.c.h.b16 %v831
        %v1061 = vunpack.c.l.b16 %v832
        %v1062 = vunpack.c.h.b16 %v832
        %v1063 = vunpack.c.l.b16 %v833
        %v1064 = vunpack.c.h.b16 %v833
        %v1065 = vunpack.c.l.b16 %v834
        %v1066 = vunpack.c.h.b16 %v834
        %v1067 = vunpack.c.l.b16 %v835
        %v1068 = vunpack.c.h.b16 %v835
        %v1069 = vunpack.c.l.b16 %v836
        %v1070 = vunpack.c.h.b16 %v836
        %v1071 = vunpack.c.l.b16 %v837
        %v1072 = vunpack.c.h.b16 %v837
        %v1073 = vunpack.c.l.b16 %v838
        %v1074 = vunpack.c.h.b16 %v838
        %v1075 = vunpack.c.l.b16 %v839
        %v1076 = vunpack.c.h.b16 %v839
        %v1077 = vunpack.c.l.b16 %v840
        %v1078 = vunpack.c.h.b16 %v840
        %v1079 = vunpack.c.l.b16 %v841
        %v1080 = vunpack.c.h.b16 %v841
        %v1081 = vunpack.c.l.b16 %v842
        %v1082 = vunpack.c.h.b16 %v842
        %v1083 = vunpack.c.l.b16 %v843
        %v1084 = vunpack.c.h.b16 %v843
        %v1085 = vunpack.c.l.b16 %v844
        %v1086 = vunpack.c.h.b16 %v844
        %v1087 = vunpack.c.l.b16 %v845
        %v1088 = vunpack.c.h.b16 %v845
        %v1089 = vunpack.c.l.b16 %v846
        %v1090 = vunpack.c.h.b16 %v846
        %v1091 = vunpack.c.l.b16 %v847
        %v1092 = vunpack.c.h.b16 %v847
        %v1093 = vunpack.c.l.b16 %v848
        %v1094 = vunpack.c.h.b16 %v848
        %v1095 = vunpack.c.l.b16 %v849
        %v1096 = vunpack.c.h.b16 %v849
        %v1097 = vunpack.c.l.b16 %v850
        %v1098 = vunpack.c.h.b16 %v850
        %v1099 = vunpack.c.l.b16 %v851
        %v1100 = vunpack.c.h.b16 %v851
        %v1101 = vunpack.c.l.b16 %v852
        %v1102 = vunpack.c.h.b16 %v852
        %v1103 = vunpack.c.l.b16 %v853
        %v1104 = vunpack.c.h.b16 %v853
        %v1105 = vunpack.c.l.b16 %v854
        %v1106 = vunpack.c.h.b16 %v854
        %v1107 = vunpack.c.l.b16 %v855
        %v1108 = vunpack.c.h.b16 %v855
        %v1109 = vunpack.c.l.b16 %v856
        %v1110 = vunpack.c.h.b16 %v856
        %v1111 = vunpack.c.l.b16 %v857
        %v1112 = vunpack.c.h.b16 %v857
        %v1113 = vunpack.c.l.b16 %v858
        %v1114 = vunpack.c.h.b16 %v858
        %v1115 = vunpack.c.l.b16 %v859
        %v1116 = vunpack.c.h.b16 %v859
        %v1117 = vunpack.c.l.b16 %v860
        %v1118 = vunpack.c.h.b16 %v860
        %v1119 = vunpack.c.l.b16 %v861
        %v1120 = vunpack.c.h.b16 %v861
        %v1121 = vunpack.c.l.b16 %v862
        %v1122 = vunpack.c.h.b16 %v862
        %v1123 = vunpack.c.l.b16 %v863
        %v1124 = vunpack.c.h.b16 %v863
        %v1125 = vunpack.c.l.b16 %v864
        %v1126 = vunpack.c.h.b16 %v864
        %v1127 = vunpack.c.l.b16 %v865
        %v1128 = vunpack.c.h.b16 %v865
        %v1129 = vunpack.c.l.b16 %v866
        %v1130 = vunpack.c.h.b16 %v866
        %v1131 = vunpack.c.l.b16 %v867
        %v1132 = vunpack.c.h.b16 %v867
        %v1133 = vunpack.c.l.b16 %v868
        %v1134 = vunpack.c.h.b16 %v868
        %v1135 = vunpack.c.l.b16 %v869
        %v1136 = vunpack.c.h.b16 %v869
        %v1137 = vunpack.c.l.b16 %v870
        %v1138 = vunpack.c.h.b16 %v870
        %v1139 = vunpack.c.l.b16 %v871
        %v1140 = vunpack.c.h.b16 %v871
        %v1141 = vunpack.c.l.b16 %v872
        %v1142 = vunpack.c.h.b16 %v872
        %v1143 = vunpack.c.l.b16 %v873
        %v1144 = vunpack.c.h.b16 %v873
        %v1145 = vunpack.c.l.b16 %v874
        %v1146 = vunpack.c.h.b16 %v874
        %v1147 = vunpack.c.l.b16 %v875
        %v1148 = vunpack.c.h.b16 %v875
        %v1149 = vunpack.c.l.b16 %v876
        %v1150 = vunpack.c.h.b16 %v876
        %v1151 = vunpack.c.l.b16 %v877
        %v1152 = vunpack.c.h.b16 %v877
        %v1153 = vunpack.c.l.b16 %v878
        %v1154 = vunpack.c.h.b16 %v878
        %v1155 = vunpack.c.l.b16 %v879
        %v1156 = vunpack.c.h.b16 %v879
        %v1157 = vunpack.c.l.b16 %v880
        %v1158 = vunpack.c.h.b16 %v880
        %v1159 = vunpack.c.l.b16 %v881
        %v1160 = vunpack.c.h.b16 %v881
        %v1161 = vunpack.c.l.b16 %v882
        %v1162 = vunpack.c.h.b16 %v882
        %v1163 = vunpack.c.l.b16 %v883
        %v1164 = vunpack.c.h.b16 %v883
        %v1165 = vunpack.c.l.b16 %v884
        %v1166 = vunpack.c.h.b16 %v884
        %v1167 = vunpack.c.l.b16 %v885
        %v1168 = vunpack.c.h.b16 %v885
        %v1169 = vunpack.c.l.b16 %v886
        %v1170 = vunpack.c.h.b16 %v886
        %v1171 = vunpack.c.l.b16 %v887
        %v1172 = vunpack.c.h.b16 %v887
        %v1173 = vunpack.c.l.b16 %v888
        %v1174 = vunpack.c.h.b16 %v888
        %v1175 = vunpack.c.l.b16 %v889
        %v1176 = vunpack.c.h.b16 %v889
        %v1177 = vunpack.c.l.b16 %v890
        %v1178 = vunpack.c.h.b16 %v890
        %v1179 = vunpack.c.l.b16 %v891
        %v1180 = vunpack.c.h.b16 %v891
        %v1181 = vunpack.c.l.b16 %v892
        %v1182 = vunpack.c.h.b16 %v892
        %v1183 = vunpack.c.l.b16 %v893
        %v1184 = vunpack.c.h.b16 %v893
        %v1185 = vunpack.c.l.b16 %v894
        %v1186 = vunpack.c.h.b16 %v894
        %v1187 = vunpack.c.l.b16 %v895
        %v1188 = vunpack.c.h.b16 %v895
        %v1189 = vunpack.c.l.b16 %v896
        %v1190 = vunpack.c.h.b16 %v896
        %v1191 = vunpack.c.l.b16 %v897
        %v1192 = vunpack.c.h.b16 %v897
        %v1193 = vunpack.c.l.b16 %v898
        %v1194 = vunpack.c.h.b16 %v898
        %v1195 = vunpack.c.l.b16 %v899
        %v1196 = vunpack.c.h.b16 %v899
        %v1197 = vunpack.c.l.b16 %v900
        %v1198 = vunpack.c.h.b16 %v900
        %v1199 = vunpack.c.l.b16 %v901
        %v1200 = vunpack.c.h.b16 %v901
        %v1201 = vunpack.c.l.b16 %v902
        %v1202 = vunpack.c.h.b16 %v902
        %v1203 = vunpack.c.l.b16 %v903
        %v1204 = vunpack.c.h.b16 %v903
        %v1205 = vunpack.c.l.b16 %v904
        %v1206 = vunpack.c.h.b16 %v904
        %v1207 = vunpack.c.l.b16 %v905
        %v1208 = vunpack.c.h.b16 %v905
        %v1209 = vunpack.c.l.b16 %v906
        %v1210 = vunpack.c.h.b16 %v906
        %v1211 = vunpack.c.l.b16 %v907
        %v1212 = vunpack.c.h.b16 %v907
        %v1213 = vunpack.c.l.b16 %v908
        %v1214 = vunpack.c.h.b16 %v908
        %v1215 = vunpack.c.l.b16 %v909
        %v1216 = vunpack.c.h.b16 %v909
        %v1217 = vunpack.c.l.b16 %v910
        %v1218 = vunpack.c.h.b16 %v910
        %v1219 = vunpack.c.l.b16 %v911
        %v1220 = vunpack.c.h.b16 %v911
        %v1221 = vunpack.c.l.b16 %v912
        %v1222 = vunpack.c.h.b16 %v912
        %v1223 = vunpack.c.l.b16 %v913
        %v1224 = vunpack.c.h.b16 %v913
        %v1225 = vunpack.c.l.b16 %v914
        %v1226 = vunpack.c.h.b16 %v914
        %v1227 = vunpack.c.l.b16 %v915
        %v1228 = vunpack.c.h.b16 %v915
        %v1229 = vunpack.c.l.b16 %v916
        %v1230 = vunpack.c.h.b16 %v916
        %v1231 = vunpack.c.l.b16 %v917
        %v1232 = vunpack.c.h.b16 %v917
        %v1233 = vunpack.c.l.b16 %v918
        %v1234 = vunpack.c.h.b16 %v918
        %v1235 = vunpack.c.l.b16 %v919
        %v1236 = vunpack.c.h.b16 %v919
        %v1237 = vunpack.c.l.b16 %v920
        %v1238 = vunpack.c.h.b16 %v920
        %v1239 = vunpack.c.l.b16 %v921
        %v1240 = vunpack.c.h.b16 %v921
        %v1241 = vunpack.c.l.b16 %v922
        %v1242 = vunpack.c.h.b16 %v922
        %v1243 = vpack.c.b16 %v1057, %v1051
        %v1244 = vpack.c.b16 %v1058, %v1052
        %v1245 = vpack.c.b16 %v1059, %v1053
        %v1246 = vpack.c.b16 %v1060, %v1054
        %v1247 = vpack.c.b16 %v1061, %v1055
        %v1248 = vpack.c.b16 %v1062, %v1056
        %v1249 = vpack.c.b16 %v1069, %v1063
        %v1250 = vpack.c.b16 %v1070, %v1064
        %v1251 = vpack.c.b16 %v1071, %v1065
        %v1252 = vpack.c.b16 %v1072, %v1066
        %v1253 = vpack.c.b16 %v1073, %v1067
        %v1254 = vpack.c.b16 %v1074, %v1068
        %v1255 = vpack.c.b16 %v1081, %v1075
        %v1256 = vpack.c.b16 %v1082, %v1076
        %v1257 = vpack.c.b16 %v1083, %v1077
        %v1258 = vpack.c.b16 %v1084, %v1078
        %v1259 = vpack.c.b16 %v1085, %v1079
        %v1260 = vpack.c.b16 %v1086, %v1080
        %v1261 = vpack.c.b16 %v1093, %v1087
        %v1262 = vpack.c.b16 %v1094, %v1088
        %v1263 = vpack.c.b16 %v1095, %v1089
        %v1264 = vpack.c.b16 %v1096, %v1090
        %v1265 = vpack.c.b16 %v1097, %v1091
        %v1266 = vpack.c.b16 %v1098, %v1092
        %v1267 = vpack.c.b16 %v1105, %v1099
        %v1268 = vpack.c.b16 %v1106, %v1100
        %v1269 = vpack.c.b16 %v1107, %v1101
        %v1270 = vpack.c.b16 %v1108, %v1102
        %v1271 = vpack.c.b16 %v1109, %v1103
        %v1272 = vpack.c.b16 %v1110, %v1104
        %v1273 = vpack.c.b16 %v1117, %v1111
        %v1274 = vpack.c.b16 %v1118, %v1112
        %v1275 = vpack.c.b16 %v1119, %v1113
        %v1276 = vpack.c.b16 %v1120, %v1114
        %v1277 = vpack.c.b16 %v1121, %v1115
        %v1278 = vpack.c.b16 %v1122, %v1116
        %v1279 = vpack.c.b16 %v1129, %v1123
        %v1280 = vpack.c.b16 %v1130, %v1124
        %v1281 = vpack.c.b16 %v1131, %v1125
        %v1282 = vpack.c.b16 %v1132, %v1126
        %v1283 = vpack.c.b16 %v1133, %v1127
        %v1284 = vpack.c.b16 %v1134, %v1128
        %v1285 = vpack.c.b16 %v1141, %v1135
        %v1286 = vpack.c.b16 %v1142, %v1136
        %v1287 = vpack.c.b16 %v1143, %v1137
        %v1288 = vpack.c.b16 %v1144, %v1138
        %v1289 = vpack.c.b16 %v1145, %v1139
        %v1290 = vpack.c.b16 %v1146, %v1140
        %v1291 = vpack.c.b16 %v1153, %v1147
        %v1292 = vpack.c.b16 %v1154, %v1148
        %v1293 = vpack.c.b16 %v1155, %v1149
        %v1294 = vpack.c.b16 %v1156, %v1150
        %v1295 = vpack.c.b16 %v1157, %v1151
        %v1296 = vpack.c.b16 %v1158, %v1152
        %v1297 = vpack.c.b16 %v1165, %v1159
        %v1298 = vpack.c.b16 %v1166, %v1160
        %v1299 = vpack.c.b16 %v1167, %v1161
        %v1300 = vpack.c.b16 %v1168, %v1162
        %v1301 = vpack.c.b16 %v1169, %v1163
        %v1302 = vpack.c.b16 %v1170, %v1164
        %v1303 = vpack.c.b16 %v1177, %v1171
        %v1304 = vpack.c.b16 %v1178, %v1172
        %v1305 = vpack.c.b16 %v1179, %v1173
        %v1306 = vpack.c.b16 %v1180, %v1174
        %v1307 = vpack.c.b16 %v1181, %v1175
        %v1308 = vpack.c.b16 %v1182, %v1176
        %v1309 = vpack.c.b16 %v1189, %v1183
        %v1310 = vpack.c.b16 %v1190, %v1184
        %v1311 = vpack.c.b16 %v1191, %v1185
        %v1312 = vpack.c.b16 %v1192, %v1186
        %v1313 = vpack.c.b16 %v1193, %v1187
        %v1314 = vpack.c.b16 %v1194, %v1188
        %v1315 = vpack.c.b16 %v1201, %v1195
        %v1316 = vpack.c.b16 %v1202, %v1196
        %v1317 = vpack.c.b16 %v1203, %v1197
        %v1318 = vpack.c.b16 %v1204, %v1198
        %v1319 = vpack.c.b16 %v1205, %v1199
        %v1320 = vpack.c.b16 %v1206, %v1200
        %v1321 = vpack.c.b16 %v1213, %v1207
        %v1322 = vpack.c.b16 %v1214, %v1208
        %v1323 = vpack.c.b16 %v1215, %v1209
        %v1324 = vpack.c.b16 %v1216, %v1210
        %v1325 = vpack.c.b16 %v1217, %v1211
        %v1326 = vpack.c.b16 %v1218, %v1212
        %v1327 = vpack.c.b16 %v1225, %v1219
        %v1328 = vpack.c.b16 %v1226, %v1220
        %v1329 = vpack.c.b16 %v1227, %v1221
        %v1330 = vpack.c.b16 %v1228, %v1222
        %v1331 = vpack.c.b16 %v1229, %v1223
        %v1332 = vpack.c.b16 %v1230, %v1224
        %v1333 = vpack.c.b16 %v1237, %v1231
        %v1334 = vpack.c.b16 %v1238, %v1232
        %v1335 = vpack.c.b16 %v1239, %v1233
        %v1336 = vpack.c.b16 %v1240, %v1234
        %v1337 = vpack.c.b16 %v1241, %v1235
        %v1338 = vpack.c.b16 %v1242, %v1236
        %1435 = vmatprep.subr.bf16.mxu0 %v1244
        %1436 = vmatpush1.bf16.msra.mxu0 %v1243
        %1437 = vmatprep.subr.bf16.mxu0 %v1250
        %1438 = vmatpush1.bf16.msra.mxu0 %v1249
        %1439 = vmatprep.subr.bf16.mxu0 %v1256
        %1440 = vmatpush1.bf16.msra.mxu0 %v1255
        %1441 = vmatprep.subr.bf16.mxu0 %v1262
        %1442 = vmatpush1.bf16.msra.mxu0 %v1261
        %1443 = vmatprep.subr.bf16.mxu0 %v1268
        %1444 = vmatpush1.bf16.msra.mxu0 %v1267
        %1445 = vmatprep.subr.bf16.mxu0 %v1274
        %1446 = vmatpush1.bf16.msra.mxu0 %v1273
        %1447 = vmatprep.subr.bf16.mxu0 %v1280
        %1448 = vmatpush1.bf16.msra.mxu0 %v1279
        %1449 = vmatprep.subr.bf16.mxu0 %v1286
        %1450 = vmatpush1.bf16.msra.mxu0 %v1285
        %1451 = vmatprep.subr.bf16.mxu0 %v1292
        %1452 = vmatpush1.bf16.msra.mxu0 %v1291
        %1453 = vmatprep.subr.bf16.mxu0 %v1298
        %1454 = vmatpush1.bf16.msra.mxu0 %v1297
        %1455 = vmatprep.subr.bf16.mxu0 %v1304
        %1456 = vmatpush1.bf16.msra.mxu0 %v1303
        %1457 = vmatprep.subr.bf16.mxu0 %v1310
        %1458 = vmatpush1.bf16.msra.mxu0 %v1309
        %1459 = vmatprep.subr.bf16.mxu0 %v1316
        %1460 = vmatpush1.bf16.msra.mxu0 %v1315
        %1461 = vmatprep.subr.bf16.mxu0 %v1322
        %1462 = vmatpush1.bf16.msra.mxu0 %v1321
        %1463 = vmatprep.subr.bf16.mxu0 %v1328
        %1464 = vmatpush1.bf16.msra.mxu0 %v1327
        %1465 = vmatprep.subr.bf16.mxu0 %v1334
        %1466 = vmatpush1.bf16.msra.mxu0 %v1333
        %1467 = vmatprep.mubr.bf16.mxu0 %v826
        %1468 = vmatmul.mubr.bf16.gmra.mrb[0].mxu0 %v825
        %v1469 = vpop.f32.mrb[0].mxu0
        %v1470 = vadd.f32 %v928, %v1469
        %v1471 = vpop.f32.mrb[0].mxu0
        %v1472 = vadd.f32 %v932, %v1471
        %v1473 = vpop.f32.mrb[0].mxu0
        %v1474 = vpop.f32.mrb[0].mxu0
        %1475 = vdwg.mxu0
        %1476 = vmatprep.subr.bf16.mxu0 %v1246
        %1477 = vmatpush1.bf16.msra.mxu0 %v1245
        %1478 = vmatprep.subr.bf16.mxu0 %v1252
        %1479 = vmatpush1.bf16.msra.mxu0 %v1251
        %1480 = vmatprep.subr.bf16.mxu0 %v1258
        %1481 = vmatpush1.bf16.msra.mxu0 %v1257
        %1482 = vmatprep.subr.bf16.mxu0 %v1264
        %1483 = vmatpush1.bf16.msra.mxu0 %v1263
        %1484 = vmatprep.subr.bf16.mxu0 %v1270
        %1485 = vmatpush1.bf16.msra.mxu0 %v1269
        %1486 = vmatprep.subr.bf16.mxu0 %v1276
        %1487 = vmatpush1.bf16.msra.mxu0 %v1275
        %1488 = vmatprep.subr.bf16.mxu0 %v1282
        %1489 = vmatpush1.bf16.msra.mxu0 %v1281
        %1490 = vmatprep.subr.bf16.mxu0 %v1288
        %1491 = vmatpush1.bf16.msra.mxu0 %v1287
        %1492 = vmatprep.subr.bf16.mxu0 %v1294
        %1493 = vmatpush1.bf16.msra.mxu0 %v1293
        %1494 = vmatprep.subr.bf16.mxu0 %v1300
        %1495 = vmatpush1.bf16.msra.mxu0 %v1299
        %1496 = vmatprep.subr.bf16.mxu0 %v1306
        %1497 = vmatpush1.bf16.msra.mxu0 %v1305
        %1498 = vmatprep.subr.bf16.mxu0 %v1312
        %1499 = vmatpush1.bf16.msra.mxu0 %v1311
        %1500 = vmatprep.subr.bf16.mxu0 %v1318
        %1501 = vmatpush1.bf16.msra.mxu0 %v1317
        %1502 = vmatprep.subr.bf16.mxu0 %v1324
        %1503 = vmatpush1.bf16.msra.mxu0 %v1323
        %1504 = vmatprep.subr.bf16.mxu0 %v1330
        %1505 = vmatpush1.bf16.msra.mxu0 %v1329
        %1506 = vmatprep.subr.bf16.mxu0 %v1336
        %1507 = vmatpush1.bf16.msra.mxu0 %v1335
        %1508 = vmatprep.mubr.bf16.mxu0 %v826
        %1509 = vmatmul.mubr.bf16.gmra.mrb[0].mxu0 %v825
        %v1510 = vpop.f32.mrb[0].mxu0
        %v1511 = vadd.f32 %v936, %v1510
        %v1512 = vpop.f32.mrb[0].mxu0
        %v1513 = vadd.f32 %v940, %v1512
        %v1514 = vpop.f32.mrb[0].mxu0
        %v1515 = vpop.f32.mrb[0].mxu0
        %1516 = vdwg.mxu0
        %1517 = vmatprep.subr.bf16.mxu0 %v1248
        %1518 = vmatpush1.bf16.msra.mxu0 %v1247
        %1519 = vmatprep.subr.bf16.mxu0 %v1254
        %1520 = vmatpush1.bf16.msra.mxu0 %v1253
        %1521 = vmatprep.subr.bf16.mxu0 %v1260
        %1522 = vmatpush1.bf16.msra.mxu0 %v1259
        %1523 = vmatprep.subr.bf16.mxu0 %v1266
        %1524 = vmatpush1.bf16.msra.mxu0 %v1265
        %1525 = vmatprep.subr.bf16.mxu0 %v1272
        %1526 = vmatpush1.bf16.msra.mxu0 %v1271
        %1527 = vmatprep.subr.bf16.mxu0 %v1278
        %1528 = vmatpush1.bf16.msra.mxu0 %v1277
        %1529 = vmatprep.subr.bf16.mxu0 %v1284
        %1530 = vmatpush1.bf16.msra.mxu0 %v1283
        %1531 = vmatprep.subr.bf16.mxu0 %v1290
        %1532 = vmatpush1.bf16.msra.mxu0 %v1289
        %1533 = vmatprep.subr.bf16.mxu0 %v1296
        %1534 = vmatpush1.bf16.msra.mxu0 %v1295
        %1535 = vmatprep.subr.bf16.mxu0 %v1302
        %1536 = vmatpush1.bf16.msra.mxu0 %v1301
        %1537 = vmatprep.subr.bf16.mxu0 %v1308
        %1538 = vmatpush1.bf16.msra.mxu0 %v1307
        %1539 = vmatprep.subr.bf16.mxu0 %v1314
        %1540 = vmatpush1.bf16.msra.mxu0 %v1313
        %1541 = vmatprep.subr.bf16.mxu0 %v1320
        %1542 = vmatpush1.bf16.msra.mxu0 %v1319
        %1543 = vmatprep.subr.bf16.mxu0 %v1326
        %1544 = vmatpush1.bf16.msra.mxu0 %v1325
        %1545 = vmatprep.subr.bf16.mxu0 %v1332
        %1546 = vmatpush1.bf16.msra.mxu0 %v1331
        %1547 = vmatprep.subr.bf16.mxu0 %v1338
        %1548 = vmatpush1.bf16.msra.mxu0 %v1337
        %1549 = vmatprep.mubr.bf16.mxu0 %v826
        %1550 = vmatmul.mubr.bf16.gmra.mrb[0].mxu0 %v825
        %v1551 = vpop.f32.mrb[0].mxu0
        %v1552 = vadd.f32 %v944, %v1551
        %v1553 = vpop.f32.mrb[0].mxu0
        %v1554 = vadd.f32 %v948, %v1553
        %v1555 = vpop.f32.mrb[0].mxu0
        %v1556 = vpop.f32.mrb[0].mxu0
        %1557 = vdwg.mxu0
        %vm1558 = vcmask 523264
        %v1560 = vsel %vm1558, %v1470, 0
        %v1563 = vsel %vm1558, %v1511, 0
        %1565 = vmatprep.subr.mxu0 0.0
        %1566 = vmatpush1.xpose.msra.mxu0 %v1563
        %1567 = vmatprep.subr.mxu0 0.0
        %1568 = vmatpush1.xpose.msra.mxu0 0.0
        %1569 = vmatprep.subr.mxu0 0.0
        %1570 = vmatpush1.xpose.msra.mxu0 0.0
        %1571 = vmatprep.subr.mxu0 0.0
        %1572 = vmatpush1.xpose.msra.mxu0 0.0
        %1573 = vmatprep.subr.mxu0 0.0
        %1574 = vmatpush1.xpose.msra.mxu0 0.0
        %1575 = vmatprep.subr.mxu0 0.0
        %1576 = vmatpush1.xpose.msra.mxu0 0.0
        %1577 = vmatprep.subr.mxu0 0.0
        %1578 = vmatpush1.xpose.msra.mxu0 0.0
        %1579 = vmatprep.subr.mxu0 0.0
        %1580 = vmatpush1.xpose.msra.mxu0 0.0
        %1581 = vmatprep.subr.mxu0 0.0
        %1582 = vmatpush1.xpose.msra.mxu0 0.0
        %1583 = vmatprep.subr.mxu0 0.0
        %1584 = vmatpush1.xpose.msra.mxu0 0.0
        %1585 = vmatprep.subr.mxu0 0.0
        %1586 = vmatpush1.xpose.msra.mxu0 0.0
        %1587 = vmatprep.subr.mxu0 0.0
        %1588 = vmatpush1.xpose.msra.mxu0 0.0
        %1589 = vmatprep.subr.mxu0 0.0
        %1590 = vmatpush1.xpose.msra.mxu0 0.0
        %1591 = vmatprep.subr.mxu0 0.0
        %1592 = vmatpush1.xpose.msra.mxu0 0.0
        %1593 = vmatprep.subr.mxu0 0.0
        %1594 = vmatpush1.xpose.msra.mxu0 0.0
        %1595 = vmatprep.subr.mxu0 0.0
        %1596 = vmatpush1.xpose.msra.mxu0 0.0
        %1597 = vmatprep.subr.mxu0 0.0
        %1598 = vmatpush1.xpose.msra.mxu0 0.0
        %1599 = vmatprep.subr.mxu0 0.0
        %1600 = vmatpush1.xpose.msra.mxu0 0.0
        %1601 = vmatprep.subr.mxu0 0.0
        %1602 = vmatpush1.xpose.msra.mxu0 0.0
        %1603 = vmatprep.subr.mxu0 0.0
        %1604 = vmatpush1.xpose.msra.mxu0 0.0
        %1605 = vmatprep.subr.mxu0 0.0
        %1606 = vmatpush1.xpose.msra.mxu0 0.0
        %1607 = vmatprep.subr.mxu0 0.0
        %1608 = vmatpush1.xpose.msra.mxu0 0.0
        %1609 = vmatprep.subr.mxu0 0.0
        %1610 = vmatpush1.xpose.msra.mxu0 0.0
        %1611 = vmatprep.subr.mxu0 0.0
        %1612 = vmatpush1.xpose.msra.mxu0 0.0
        %1613 = vmatprep.subr.mxu0 0.0
        %1614 = vmatpush1.xpose.msra.mxu0 0.0
        %1615 = vmatprep.subr.mxu0 0.0
        %1616 = vmatpush1.xpose.msra.mxu0 0.0
        %1617 = vmatprep.subr.mxu0 0.0
        %1618 = vmatpush1.xpose.msra.mxu0 0.0
        %1619 = vmatprep.subr.mxu0 0.0
        %1620 = vmatpush1.xpose.msra.mxu0 0.0
        %1621 = vmatprep.subr.mxu0 0.0
        %1622 = vmatpush1.xpose.msra.mxu0 0.0
        %1623 = vmatprep.subr.mxu0 0.0
        %1624 = vmatpush1.xpose.msra.mxu0 0.0
        %1625 = vmatprep.subr.mxu0 0.0
        %1626 = vmatpush1.xpose.msra.mxu0 0.0
        %1627 = vmatprep.subr.mxu0 0.0
        %1628 = vmatpush1.xpose.msra.mxu0 0.0
        %1629 = vmatprep.mubr.f32.mxu0 0.0
        %1630 = vmatmul.mubr.f32.gmra.mrb[0].mxu0 %v1560
        %v1631 = vpop.f32.mrb[0].mxu0
        %v1632 = vadd.f32 0.0, %v1631
        %v1633 = vpop.f32.mrb[0].mxu0
        %1634 = vdwg.mxu0
        %vm1635 = vcmask 64512
        %v1636 = vsel %vm1635, %v1632, -inf
        %1637 = vmax.xlane.f32.xlu0 %v1636
        %v1638 = vpop.xlane.xlu0 %1637
        %v1639 = vsub.f32 %v1632, %v1638
        %v1640 = vmul.f32 %v1639, 1.442695
        %v1641 = vpow.pop %v1640
        %v1642 = vsel %vm1635, %v1641, 0.0
        %1643 = vadd.xlane.f32.xlu0 %v1642
        %v1644 = vpop.xlane.xlu0 %1643
        %v1645 = vrcp.pop %v1644
        %v1646 = vmul.f32 %v1641, %v1645
        %v1648 = vsel %vm1635, %v1646, 0
        %1650 = vmatprep.subr.mxu0 0.0
        %1651 = vmatpush1.msra.mxu0 %v1552
        %1652 = vmatprep.subr.mxu0 0.0
        %1653 = vmatpush1.msra.mxu0 0.0
        %1654 = vmatprep.subr.mxu0 0.0
        %1655 = vmatpush1.msra.mxu0 0.0
        %1656 = vmatprep.subr.mxu0 0.0
        %1657 = vmatpush1.msra.mxu0 0.0
        %1658 = vmatprep.subr.mxu0 0.0
        %1659 = vmatpush1.msra.mxu0 0.0
        %1660 = vmatprep.subr.mxu0 0.0
        %1661 = vmatpush1.msra.mxu0 0.0
        %1662 = vmatprep.subr.mxu0 0.0
        %1663 = vmatpush1.msra.mxu0 0.0
        %1664 = vmatprep.subr.mxu0 0.0
        %1665 = vmatpush1.msra.mxu0 0.0
        %1666 = vmatprep.subr.mxu0 0.0
        %1667 = vmatpush1.msra.mxu0 0.0
        %1668 = vmatprep.subr.mxu0 0.0
        %1669 = vmatpush1.msra.mxu0 0.0
        %1670 = vmatprep.subr.mxu0 0.0
        %1671 = vmatpush1.msra.mxu0 0.0
        %1672 = vmatprep.subr.mxu0 0.0
        %1673 = vmatpush1.msra.mxu0 0.0
        %1674 = vmatprep.subr.mxu0 0.0
        %1675 = vmatpush1.msra.mxu0 0.0
        %1676 = vmatprep.subr.mxu0 0.0
        %1677 = vmatpush1.msra.mxu0 0.0
        %1678 = vmatprep.subr.mxu0 0.0
        %1679 = vmatpush1.msra.mxu0 0.0
        %1680 = vmatprep.subr.mxu0 0.0
        %1681 = vmatpush1.msra.mxu0 0.0
        %1682 = vmatprep.subr.mxu0 0.0
        %1683 = vmatpush1.msra.mxu0 0.0
        %1684 = vmatprep.subr.mxu0 0.0
        %1685 = vmatpush1.msra.mxu0 0.0
        %1686 = vmatprep.subr.mxu0 0.0
        %1687 = vmatpush1.msra.mxu0 0.0
        %1688 = vmatprep.subr.mxu0 0.0
        %1689 = vmatpush1.msra.mxu0 0.0
        %1690 = vmatprep.subr.mxu0 0.0
        %1691 = vmatpush1.msra.mxu0 0.0
        %1692 = vmatprep.subr.mxu0 0.0
        %1693 = vmatpush1.msra.mxu0 0.0
        %1694 = vmatprep.subr.mxu0 0.0
        %1695 = vmatpush1.msra.mxu0 0.0
        %1696 = vmatprep.subr.mxu0 0.0
        %1697 = vmatpush1.msra.mxu0 0.0
        %1698 = vmatprep.subr.mxu0 0.0
        %1699 = vmatpush1.msra.mxu0 0.0
        %1700 = vmatprep.subr.mxu0 0.0
        %1701 = vmatpush1.msra.mxu0 0.0
        %1702 = vmatprep.subr.mxu0 0.0
        %1703 = vmatpush1.msra.mxu0 0.0
        %1704 = vmatprep.subr.mxu0 0.0
        %1705 = vmatpush1.msra.mxu0 0.0
        %1706 = vmatprep.subr.mxu0 0.0
        %1707 = vmatpush1.msra.mxu0 0.0
        %1708 = vmatprep.subr.mxu0 0.0
        %1709 = vmatpush1.msra.mxu0 0.0
        %1710 = vmatprep.subr.mxu0 0.0
        %1711 = vmatpush1.msra.mxu0 0.0
        %1712 = vmatprep.subr.mxu0 0.0
        %1713 = vmatpush1.msra.mxu0 0.0
        %1714 = vmatprep.mubr.f32.mxu0 0.0
        %1715 = vmatmul.mubr.f32.gmra.mrb[0].mxu0 %v1648
        %v1716 = vpop.f32.mrb[0].mxu0
        %v1717 = vadd.f32 0.0, %v1716
        %v1718 = vpop.f32.mrb[0].mxu0
        %1719 = vdwg.mxu0
        %1720 = vrot.lane.b32.xlu0 %v1470, 64
        %v1721 = vpop.permute.xlu0 %1720
        %1722 = vrot.lane.b32.xlu0 %v1511, 64
        %v1723 = vpop.permute.xlu0 %1722
        %v1724 = vsel %vm1558, %v1721, 0
        %v1726 = vsel %vm1558, %v1723, 0
        %1728 = vmatprep.subr.mxu0 0.0
        %1729 = vmatpush1.xpose.msra.mxu0 %v1726
        %1730 = vmatprep.subr.mxu0 0.0
        %1731 = vmatpush1.xpose.msra.mxu0 0.0
        %1732 = vmatprep.subr.mxu0 0.0
        %1733 = vmatpush1.xpose.msra.mxu0 0.0
        %1734 = vmatprep.subr.mxu0 0.0
        %1735 = vmatpush1.xpose.msra.mxu0 0.0
        %1736 = vmatprep.subr.mxu0 0.0
        %1737 = vmatpush1.xpose.msra.mxu0 0.0
        %1738 = vmatprep.subr.mxu0 0.0
        %1739 = vmatpush1.xpose.msra.mxu0 0.0
        %1740 = vmatprep.subr.mxu0 0.0
        %1741 = vmatpush1.xpose.msra.mxu0 0.0
        %1742 = vmatprep.subr.mxu0 0.0
        %1743 = vmatpush1.xpose.msra.mxu0 0.0
        %1744 = vmatprep.subr.mxu0 0.0
        %1745 = vmatpush1.xpose.msra.mxu0 0.0
        %1746 = vmatprep.subr.mxu0 0.0
        %1747 = vmatpush1.xpose.msra.mxu0 0.0
        %1748 = vmatprep.subr.mxu0 0.0
        %1749 = vmatpush1.xpose.msra.mxu0 0.0
        %1750 = vmatprep.subr.mxu0 0.0
        %1751 = vmatpush1.xpose.msra.mxu0 0.0
        %1752 = vmatprep.subr.mxu0 0.0
        %1753 = vmatpush1.xpose.msra.mxu0 0.0
        %1754 = vmatprep.subr.mxu0 0.0
        %1755 = vmatpush1.xpose.msra.mxu0 0.0
        %1756 = vmatprep.subr.mxu0 0.0
        %1757 = vmatpush1.xpose.msra.mxu0 0.0
        %1758 = vmatprep.subr.mxu0 0.0
        %1759 = vmatpush1.xpose.msra.mxu0 0.0
        %1760 = vmatprep.subr.mxu0 0.0
        %1761 = vmatpush1.xpose.msra.mxu0 0.0
        %1762 = vmatprep.subr.mxu0 0.0
        %1763 = vmatpush1.xpose.msra.mxu0 0.0
        %1764 = vmatprep.subr.mxu0 0.0
        %1765 = vmatpush1.xpose.msra.mxu0 0.0
        %1766 = vmatprep.subr.mxu0 0.0
        %1767 = vmatpush1.xpose.msra.mxu0 0.0
        %1768 = vmatprep.subr.mxu0 0.0
        %1769 = vmatpush1.xpose.msra.mxu0 0.0
        %1770 = vmatprep.subr.mxu0 0.0
        %1771 = vmatpush1.xpose.msra.mxu0 0.0
        %1772 = vmatprep.subr.mxu0 0.0
        %1773 = vmatpush1.xpose.msra.mxu0 0.0
        %1774 = vmatprep.subr.mxu0 0.0
        %1775 = vmatpush1.xpose.msra.mxu0 0.0
        %1776 = vmatprep.subr.mxu0 0.0
        %1777 = vmatpush1.xpose.msra.mxu0 0.0
        %1778 = vmatprep.subr.mxu0 0.0
        %1779 = vmatpush1.xpose.msra.mxu0 0.0
        %1780 = vmatprep.subr.mxu0 0.0
        %1781 = vmatpush1.xpose.msra.mxu0 0.0
        %1782 = vmatprep.subr.mxu0 0.0
        %1783 = vmatpush1.xpose.msra.mxu0 0.0
        %1784 = vmatprep.subr.mxu0 0.0
        %1785 = vmatpush1.xpose.msra.mxu0 0.0
        %1786 = vmatprep.subr.mxu0 0.0
        %1787 = vmatpush1.xpose.msra.mxu0 0.0
        %1788 = vmatprep.subr.mxu0 0.0
        %1789 = vmatpush1.xpose.msra.mxu0 0.0
        %1790 = vmatprep.subr.mxu0 0.0
        %1791 = vmatpush1.xpose.msra.mxu0 0.0
        %1792 = vmatprep.mubr.f32.mxu0 0.0
        %1793 = vmatmul.mubr.f32.gmra.mrb[0].mxu0 %v1724
        %v1794 = vpop.f32.mrb[0].mxu0
        %v1795 = vadd.f32 0.0, %v1794
        %v1796 = vpop.f32.mrb[0].mxu0
        %1797 = vdwg.mxu0
        %v1798 = vsel %vm1635, %v1795, -inf
        %1799 = vmax.xlane.f32.xlu0 %v1798
        %v1800 = vpop.xlane.xlu0 %1799
        %v1801 = vsub.f32 %v1795, %v1800
        %v1802 = vmul.f32 %v1801, 1.442695
        %v1803 = vpow.pop %v1802
        %v1804 = vsel %vm1635, %v1803, 0.0
        %1805 = vadd.xlane.f32.xlu0 %v1804
        %v1806 = vpop.xlane.xlu0 %1805
        %v1807 = vrcp.pop %v1806
        %v1808 = vmul.f32 %v1803, %v1807
        %1810 = vrot.lane.b32.xlu0 %v1552, 64
        %v1811 = vpop.permute.xlu0 %1810
        %v1814 = vsel %vm1635, %v1808, 0
        %1816 = vmatprep.subr.mxu0 0.0
        %1817 = vmatpush1.msra.mxu0 %v1811
        %1818 = vmatprep.subr.mxu0 0.0
        %1819 = vmatpush1.msra.mxu0 0.0
        %1820 = vmatprep.subr.mxu0 0.0
        %1821 = vmatpush1.msra.mxu0 0.0
        %1822 = vmatprep.subr.mxu0 0.0
        %1823 = vmatpush1.msra.mxu0 0.0
        %1824 = vmatprep.subr.mxu0 0.0
        %1825 = vmatpush1.msra.mxu0 0.0
        %1826 = vmatprep.subr.mxu0 0.0
        %1827 = vmatpush1.msra.mxu0 0.0
        %1828 = vmatprep.subr.mxu0 0.0
        %1829 = vmatpush1.msra.mxu0 0.0
        %1830 = vmatprep.subr.mxu0 0.0
        %1831 = vmatpush1.msra.mxu0 0.0
        %1832 = vmatprep.subr.mxu0 0.0
        %1833 = vmatpush1.msra.mxu0 0.0
        %1834 = vmatprep.subr.mxu0 0.0
        %1835 = vmatpush1.msra.mxu0 0.0
        %1836 = vmatprep.subr.mxu0 0.0
        %1837 = vmatpush1.msra.mxu0 0.0
        %1838 = vmatprep.subr.mxu0 0.0
        %1839 = vmatpush1.msra.mxu0 0.0
        %1840 = vmatprep.subr.mxu0 0.0
        %1841 = vmatpush1.msra.mxu0 0.0
        %1842 = vmatprep.subr.mxu0 0.0
        %1843 = vmatpush1.msra.mxu0 0.0
        %1844 = vmatprep.subr.mxu0 0.0
        %1845 = vmatpush1.msra.mxu0 0.0
        %1846 = vmatprep.subr.mxu0 0.0
        %1847 = vmatpush1.msra.mxu0 0.0
        %1848 = vmatprep.subr.mxu0 0.0
        %1849 = vmatpush1.msra.mxu0 0.0
        %1850 = vmatprep.subr.mxu0 0.0
        %1851 = vmatpush1.msra.mxu0 0.0
        %1852 = vmatprep.subr.mxu0 0.0
        %1853 = vmatpush1.msra.mxu0 0.0
        %1854 = vmatprep.subr.mxu0 0.0
        %1855 = vmatpush1.msra.mxu0 0.0
        %1856 = vmatprep.subr.mxu0 0.0
        %1857 = vmatpush1.msra.mxu0 0.0
        %1858 = vmatprep.subr.mxu0 0.0
        %1859 = vmatpush1.msra.mxu0 0.0
        %1860 = vmatprep.subr.mxu0 0.0
        %1861 = vmatpush1.msra.mxu0 0.0
        %1862 = vmatprep.subr.mxu0 0.0
        %1863 = vmatpush1.msra.mxu0 0.0
        %1864 = vmatprep.subr.mxu0 0.0
        %1865 = vmatpush1.msra.mxu0 0.0
        %1866 = vmatprep.subr.mxu0 0.0
        %1867 = vmatpush1.msra.mxu0 0.0
        %1868 = vmatprep.subr.mxu0 0.0
        %1869 = vmatpush1.msra.mxu0 0.0
        %1870 = vmatprep.subr.mxu0 0.0
        %1871 = vmatpush1.msra.mxu0 0.0
        %1872 = vmatprep.subr.mxu0 0.0
        %1873 = vmatpush1.msra.mxu0 0.0
        %1874 = vmatprep.subr.mxu0 0.0
        %1875 = vmatpush1.msra.mxu0 0.0
        %1876 = vmatprep.subr.mxu0 0.0
        %1877 = vmatpush1.msra.mxu0 0.0
        %1878 = vmatprep.subr.mxu0 0.0
        %1879 = vmatpush1.msra.mxu0 0.0
        %1880 = vmatprep.mubr.f32.mxu0 0.0
        %1881 = vmatmul.mubr.f32.gmra.mrb[0].mxu0 %v1814
        %v1882 = vpop.f32.mrb[0].mxu0
        %v1883 = vadd.f32 0.0, %v1882
        %v1884 = vpop.f32.mrb[0].mxu0
        %1885 = vdwg.mxu0
        %v1887 = vsel %vm1558, %v1472, 0
        %v1890 = vsel %vm1558, %v1513, 0
        %1892 = vmatprep.subr.mxu0 0.0
        %1893 = vmatpush1.xpose.msra.mxu0 %v1890
        %1894 = vmatprep.subr.mxu0 0.0
        %1895 = vmatpush1.xpose.msra.mxu0 0.0
        %1896 = vmatprep.subr.mxu0 0.0
        %1897 = vmatpush1.xpose.msra.mxu0 0.0
        %1898 = vmatprep.subr.mxu0 0.0
        %1899 = vmatpush1.xpose.msra.mxu0 0.0
        %1900 = vmatprep.subr.mxu0 0.0
        %1901 = vmatpush1.xpose.msra.mxu0 0.0
        %1902 = vmatprep.subr.mxu0 0.0
        %1903 = vmatpush1.xpose.msra.mxu0 0.0
        %1904 = vmatprep.subr.mxu0 0.0
        %1905 = vmatpush1.xpose.msra.mxu0 0.0
        %1906 = vmatprep.subr.mxu0 0.0
        %1907 = vmatpush1.xpose.msra.mxu0 0.0
        %1908 = vmatprep.subr.mxu0 0.0
        %1909 = vmatpush1.xpose.msra.mxu0 0.0
        %1910 = vmatprep.subr.mxu0 0.0
        %1911 = vmatpush1.xpose.msra.mxu0 0.0
        %1912 = vmatprep.subr.mxu0 0.0
        %1913 = vmatpush1.xpose.msra.mxu0 0.0
        %1914 = vmatprep.subr.mxu0 0.0
        %1915 = vmatpush1.xpose.msra.mxu0 0.0
        %1916 = vmatprep.subr.mxu0 0.0
        %1917 = vmatpush1.xpose.msra.mxu0 0.0
        %1918 = vmatprep.subr.mxu0 0.0
        %1919 = vmatpush1.xpose.msra.mxu0 0.0
        %1920 = vmatprep.subr.mxu0 0.0
        %1921 = vmatpush1.xpose.msra.mxu0 0.0
        %1922 = vmatprep.subr.mxu0 0.0
        %1923 = vmatpush1.xpose.msra.mxu0 0.0
        %1924 = vmatprep.subr.mxu0 0.0
        %1925 = vmatpush1.xpose.msra.mxu0 0.0
        %1926 = vmatprep.subr.mxu0 0.0
        %1927 = vmatpush1.xpose.msra.mxu0 0.0
        %1928 = vmatprep.subr.mxu0 0.0
        %1929 = vmatpush1.xpose.msra.mxu0 0.0
        %1930 = vmatprep.subr.mxu0 0.0
        %1931 = vmatpush1.xpose.msra.mxu0 0.0
        %1932 = vmatprep.subr.mxu0 0.0
        %1933 = vmatpush1.xpose.msra.mxu0 0.0
        %1934 = vmatprep.subr.mxu0 0.0
        %1935 = vmatpush1.xpose.msra.mxu0 0.0
        %1936 = vmatprep.subr.mxu0 0.0
        %1937 = vmatpush1.xpose.msra.mxu0 0.0
        %1938 = vmatprep.subr.mxu0 0.0
        %1939 = vmatpush1.xpose.msra.mxu0 0.0
        %1940 = vmatprep.subr.mxu0 0.0
        %1941 = vmatpush1.xpose.msra.mxu0 0.0
        %1942 = vmatprep.subr.mxu0 0.0
        %1943 = vmatpush1.xpose.msra.mxu0 0.0
        %1944 = vmatprep.subr.mxu0 0.0
        %1945 = vmatpush1.xpose.msra.mxu0 0.0
        %1946 = vmatprep.subr.mxu0 0.0
        %1947 = vmatpush1.xpose.msra.mxu0 0.0
        %1948 = vmatprep.subr.mxu0 0.0
        %1949 = vmatpush1.xpose.msra.mxu0 0.0
        %1950 = vmatprep.subr.mxu0 0.0
        %1951 = vmatpush1.xpose.msra.mxu0 0.0
        %1952 = vmatprep.subr.mxu0 0.0
        %1953 = vmatpush1.xpose.msra.mxu0 0.0
        %1954 = vmatprep.subr.mxu0 0.0
        %1955 = vmatpush1.xpose.msra.mxu0 0.0
        %1956 = vmatprep.mubr.f32.mxu0 0.0
        %1957 = vmatmul.mubr.f32.gmra.mrb[0].mxu0 %v1887
        %v1958 = vpop.f32.mrb[0].mxu0
        %v1959 = vadd.f32 0.0, %v1958
        %v1960 = vpop.f32.mrb[0].mxu0
        %1961 = vdwg.mxu0
        %v1962 = vsel %vm1635, %v1959, -inf
        %1963 = vmax.xlane.f32.xlu0 %v1962
        %v1964 = vpop.xlane.xlu0 %1963
        %v1965 = vsub.f32 %v1959, %v1964
        %v1966 = vmul.f32 %v1965, 1.442695
        %v1967 = vpow.pop %v1966
        %v1968 = vsel %vm1635, %v1967, 0.0
        %1969 = vadd.xlane.f32.xlu0 %v1968
        %v1970 = vpop.xlane.xlu0 %1969
        %v1971 = vrcp.pop %v1970
        %v1972 = vmul.f32 %v1967, %v1971
        %v1974 = vsel %vm1635, %v1972, 0
        %1976 = vmatprep.subr.mxu0 0.0
        %1977 = vmatpush1.msra.mxu0 %v1554
        %1978 = vmatprep.subr.mxu0 0.0
        %1979 = vmatpush1.msra.mxu0 0.0
        %1980 = vmatprep.subr.mxu0 0.0
        %1981 = vmatpush1.msra.mxu0 0.0
        %1982 = vmatprep.subr.mxu0 0.0
        %1983 = vmatpush1.msra.mxu0 0.0
        %1984 = vmatprep.subr.mxu0 0.0
        %1985 = vmatpush1.msra.mxu0 0.0
        %1986 = vmatprep.subr.mxu0 0.0
        %1987 = vmatpush1.msra.mxu0 0.0
        %1988 = vmatprep.subr.mxu0 0.0
        %1989 = vmatpush1.msra.mxu0 0.0
        %1990 = vmatprep.subr.mxu0 0.0
        %1991 = vmatpush1.msra.mxu0 0.0
        %1992 = vmatprep.subr.mxu0 0.0
        %1993 = vmatpush1.msra.mxu0 0.0
        %1994 = vmatprep.subr.mxu0 0.0
        %1995 = vmatpush1.msra.mxu0 0.0
        %1996 = vmatprep.subr.mxu0 0.0
        %1997 = vmatpush1.msra.mxu0 0.0
        %1998 = vmatprep.subr.mxu0 0.0
        %1999 = vmatpush1.msra.mxu0 0.0
        %2000 = vmatprep.subr.mxu0 0.0
        %2001 = vmatpush1.msra.mxu0 0.0
        %2002 = vmatprep.subr.mxu0 0.0
        %2003 = vmatpush1.msra.mxu0 0.0
        %2004 = vmatprep.subr.mxu0 0.0
        %2005 = vmatpush1.msra.mxu0 0.0
        %2006 = vmatprep.subr.mxu0 0.0
        %2007 = vmatpush1.msra.mxu0 0.0
        %2008 = vmatprep.subr.mxu0 0.0
        %2009 = vmatpush1.msra.mxu0 0.0
        %2010 = vmatprep.subr.mxu0 0.0
        %2011 = vmatpush1.msra.mxu0 0.0
        %2012 = vmatprep.subr.mxu0 0.0
        %2013 = vmatpush1.msra.mxu0 0.0
        %2014 = vmatprep.subr.mxu0 0.0
        %2015 = vmatpush1.msra.mxu0 0.0
        %2016 = vmatprep.subr.mxu0 0.0
        %2017 = vmatpush1.msra.mxu0 0.0
        %2018 = vmatprep.subr.mxu0 0.0
        %2019 = vmatpush1.msra.mxu0 0.0
        %2020 = vmatprep.subr.mxu0 0.0
        %2021 = vmatpush1.msra.mxu0 0.0
        %2022 = vmatprep.subr.mxu0 0.0
        %2023 = vmatpush1.msra.mxu0 0.0
        %2024 = vmatprep.subr.mxu0 0.0
        %2025 = vmatpush1.msra.mxu0 0.0
        %2026 = vmatprep.subr.mxu0 0.0
        %2027 = vmatpush1.msra.mxu0 0.0
        %2028 = vmatprep.subr.mxu0 0.0
        %2029 = vmatpush1.msra.mxu0 0.0
        %2030 = vmatprep.subr.mxu0 0.0
        %2031 = vmatpush1.msra.mxu0 0.0
        %2032 = vmatprep.subr.mxu0 0.0
        %2033 = vmatpush1.msra.mxu0 0.0
        %2034 = vmatprep.subr.mxu0 0.0
        %2035 = vmatpush1.msra.mxu0 0.0
        %2036 = vmatprep.subr.mxu0 0.0
        %2037 = vmatpush1.msra.mxu0 0.0
        %2038 = vmatprep.subr.mxu0 0.0
        %2039 = vmatpush1.msra.mxu0 0.0
        %2040 = vmatprep.mubr.f32.mxu0 0.0
        %2041 = vmatmul.mubr.f32.gmra.mrb[0].mxu0 %v1974
        %v2042 = vpop.f32.mrb[0].mxu0
        %v2043 = vadd.f32 0.0, %v2042
        %v2044 = vpop.f32.mrb[0].mxu0
        %2045 = vdwg.mxu0
        %2046 = vrot.lane.b32.xlu0 %v1472, 64
        %v2047 = vpop.permute.xlu0 %2046
        %2048 = vrot.lane.b32.xlu0 %v1513, 64
        %v2049 = vpop.permute.xlu0 %2048
        %v2050 = vsel %vm1558, %v2047, 0
        %v2052 = vsel %vm1558, %v2049, 0
        %2054 = vmatprep.subr.mxu0 0.0
        %2055 = vmatpush1.xpose.msra.mxu0 %v2052
        %2056 = vmatprep.subr.mxu0 0.0
        %2057 = vmatpush1.xpose.msra.mxu0 0.0
        %2058 = vmatprep.subr.mxu0 0.0
        %2059 = vmatpush1.xpose.msra.mxu0 0.0
        %2060 = vmatprep.subr.mxu0 0.0
        %2061 = vmatpush1.xpose.msra.mxu0 0.0
        %2062 = vmatprep.subr.mxu0 0.0
        %2063 = vmatpush1.xpose.msra.mxu0 0.0
        %2064 = vmatprep.subr.mxu0 0.0
        %2065 = vmatpush1.xpose.msra.mxu0 0.0
        %2066 = vmatprep.subr.mxu0 0.0
        %2067 = vmatpush1.xpose.msra.mxu0 0.0
        %2068 = vmatprep.subr.mxu0 0.0
        %2069 = vmatpush1.xpose.msra.mxu0 0.0
        %2070 = vmatprep.subr.mxu0 0.0
        %2071 = vmatpush1.xpose.msra.mxu0 0.0
        %2072 = vmatprep.subr.mxu0 0.0
        %2073 = vmatpush1.xpose.msra.mxu0 0.0
        %2074 = vmatprep.subr.mxu0 0.0
        %2075 = vmatpush1.xpose.msra.mxu0 0.0
        %2076 = vmatprep.subr.mxu0 0.0
        %2077 = vmatpush1.xpose.msra.mxu0 0.0
        %2078 = vmatprep.subr.mxu0 0.0
        %2079 = vmatpush1.xpose.msra.mxu0 0.0
        %2080 = vmatprep.subr.mxu0 0.0
        %2081 = vmatpush1.xpose.msra.mxu0 0.0
        %2082 = vmatprep.subr.mxu0 0.0
        %2083 = vmatpush1.xpose.msra.mxu0 0.0
        %2084 = vmatprep.subr.mxu0 0.0
        %2085 = vmatpush1.xpose.msra.mxu0 0.0
        %2086 = vmatprep.subr.mxu0 0.0
        %2087 = vmatpush1.xpose.msra.mxu0 0.0
        %2088 = vmatprep.subr.mxu0 0.0
        %2089 = vmatpush1.xpose.msra.mxu0 0.0
        %2090 = vmatprep.subr.mxu0 0.0
        %2091 = vmatpush1.xpose.msra.mxu0 0.0
        %2092 = vmatprep.subr.mxu0 0.0
        %2093 = vmatpush1.xpose.msra.mxu0 0.0
        %2094 = vmatprep.subr.mxu0 0.0
        %2095 = vmatpush1.xpose.msra.mxu0 0.0
        %2096 = vmatprep.subr.mxu0 0.0
        %2097 = vmatpush1.xpose.msra.mxu0 0.0
        %2098 = vmatprep.subr.mxu0 0.0
        %2099 = vmatpush1.xpose.msra.mxu0 0.0
        %2100 = vmatprep.subr.mxu0 0.0
        %2101 = vmatpush1.xpose.msra.mxu0 0.0
        %2102 = vmatprep.subr.mxu0 0.0
        %2103 = vmatpush1.xpose.msra.mxu0 0.0
        %2104 = vmatprep.subr.mxu0 0.0
        %2105 = vmatpush1.xpose.msra.mxu0 0.0
        %2106 = vmatprep.subr.mxu0 0.0
        %2107 = vmatpush1.xpose.msra.mxu0 0.0
        %2108 = vmatprep.subr.mxu0 0.0
        %2109 = vmatpush1.xpose.msra.mxu0 0.0
        %2110 = vmatprep.subr.mxu0 0.0
        %2111 = vmatpush1.xpose.msra.mxu0 0.0
        %2112 = vmatprep.subr.mxu0 0.0
        %2113 = vmatpush1.xpose.msra.mxu0 0.0
        %2114 = vmatprep.subr.mxu0 0.0
        %2115 = vmatpush1.xpose.msra.mxu0 0.0
        %2116 = vmatprep.subr.mxu0 0.0
        %2117 = vmatpush1.xpose.msra.mxu0 0.0
        %2118 = vmatprep.mubr.f32.mxu0 0.0
        %2119 = vmatmul.mubr.f32.gmra.mrb[0].mxu0 %v2050
        %v2120 = vpop.f32.mrb[0].mxu0
        %v2121 = vadd.f32 0.0, %v2120
        %v2122 = vpop.f32.mrb[0].mxu0
        %2123 = vdwg.mxu0
        %v2124 = vsel %vm1635, %v2121, -inf
        %2125 = vmax.xlane.f32.xlu0 %v2124
        %v2126 = vpop.xlane.xlu0 %2125
        %v2127 = vsub.f32 %v2121, %v2126
        %v2128 = vmul.f32 %v2127, 1.442695
        %v2129 = vpow.pop %v2128
        %v2130 = vsel %vm1635, %v2129, 0.0
        %2131 = vadd.xlane.f32.xlu0 %v2130
        %v2132 = vpop.xlane.xlu0 %2131
        %v2133 = vrcp.pop %v2132
        %v2134 = vmul.f32 %v2129, %v2133
        %2136 = vrot.lane.b32.xlu0 %v1554, 64
        %v2137 = vpop.permute.xlu0 %2136
        %v2140 = vsel %vm1635, %v2134, 0
        %2142 = vmatprep.subr.mxu0 0.0
        %2143 = vmatpush1.msra.mxu0 %v2137
        %2144 = vmatprep.subr.mxu0 0.0
        %2145 = vmatpush1.msra.mxu0 0.0
        %2146 = vmatprep.subr.mxu0 0.0
        %2147 = vmatpush1.msra.mxu0 0.0
        %2148 = vmatprep.subr.mxu0 0.0
        %2149 = vmatpush1.msra.mxu0 0.0
        %2150 = vmatprep.subr.mxu0 0.0
        %2151 = vmatpush1.msra.mxu0 0.0
        %2152 = vmatprep.subr.mxu0 0.0
        %2153 = vmatpush1.msra.mxu0 0.0
        %2154 = vmatprep.subr.mxu0 0.0
        %2155 = vmatpush1.msra.mxu0 0.0
        %2156 = vmatprep.subr.mxu0 0.0
        %2157 = vmatpush1.msra.mxu0 0.0
        %2158 = vmatprep.subr.mxu0 0.0
        %2159 = vmatpush1.msra.mxu0 0.0
        %2160 = vmatprep.subr.mxu0 0.0
        %2161 = vmatpush1.msra.mxu0 0.0
        %2162 = vmatprep.subr.mxu0 0.0
        %2163 = vmatpush1.msra.mxu0 0.0
        %2164 = vmatprep.subr.mxu0 0.0
        %2165 = vmatpush1.msra.mxu0 0.0
        %2166 = vmatprep.subr.mxu0 0.0
        %2167 = vmatpush1.msra.mxu0 0.0
        %2168 = vmatprep.subr.mxu0 0.0
        %2169 = vmatpush1.msra.mxu0 0.0
        %2170 = vmatprep.subr.mxu0 0.0
        %2171 = vmatpush1.msra.mxu0 0.0
        %2172 = vmatprep.subr.mxu0 0.0
        %2173 = vmatpush1.msra.mxu0 0.0
        %2174 = vmatprep.subr.mxu0 0.0
        %2175 = vmatpush1.msra.mxu0 0.0
        %2176 = vmatprep.subr.mxu0 0.0
        %2177 = vmatpush1.msra.mxu0 0.0
        %2178 = vmatprep.subr.mxu0 0.0
        %2179 = vmatpush1.msra.mxu0 0.0
        %2180 = vmatprep.subr.mxu0 0.0
        %2181 = vmatpush1.msra.mxu0 0.0
        %2182 = vmatprep.subr.mxu0 0.0
        %2183 = vmatpush1.msra.mxu0 0.0
        %2184 = vmatprep.subr.mxu0 0.0
        %2185 = vmatpush1.msra.mxu0 0.0
        %2186 = vmatprep.subr.mxu0 0.0
        %2187 = vmatpush1.msra.mxu0 0.0
        %2188 = vmatprep.subr.mxu0 0.0
        %2189 = vmatpush1.msra.mxu0 0.0
        %2190 = vmatprep.subr.mxu0 0.0
        %2191 = vmatpush1.msra.mxu0 0.0
        %2192 = vmatprep.subr.mxu0 0.0
        %2193 = vmatpush1.msra.mxu0 0.0
        %2194 = vmatprep.subr.mxu0 0.0
        %2195 = vmatpush1.msra.mxu0 0.0
        %2196 = vmatprep.subr.mxu0 0.0
        %2197 = vmatpush1.msra.mxu0 0.0
        %2198 = vmatprep.subr.mxu0 0.0
        %2199 = vmatpush1.msra.mxu0 0.0
        %2200 = vmatprep.subr.mxu0 0.0
        %2201 = vmatpush1.msra.mxu0 0.0
        %2202 = vmatprep.subr.mxu0 0.0
        %2203 = vmatpush1.msra.mxu0 0.0
        %2204 = vmatprep.subr.mxu0 0.0
        %2205 = vmatpush1.msra.mxu0 0.0
        %2206 = vmatprep.mubr.f32.mxu0 0.0
        %2207 = vmatmul.mubr.f32.gmra.mrb[0].mxu0 %v2140
        %v2208 = vpop.f32.mrb[0].mxu0
        %v2209 = vadd.f32 0.0, %v2208
        %v2210 = vpop.f32.mrb[0].mxu0
        %2211 = vdwg.mxu0
        %2213 = vrot.lane.b32.xlu0 %v1883, 64
        %v2214 = vpop.permute.xlu0 %2213
        %2217 = vrot.lane.b32.xlu0 %v2209, 64
        %v2218 = vpop.permute.xlu0 %2217
        %v2220 = vsel %vm1558, %v1717, %v2214
        %v2221 = vsel %vm1558, %v2043, %v2218
        %v2222 = vpack.c.bf16 %v2220, %v2220
        %v2223 = vpack.c.bf16 %v2221, %v2221
        %v2224 = vld [vmem:[#allocation8] sm:$0xff]
        %v2225 = vld [vmem:[#allocation8 + $0x8] sm:$0xff]
        %v2226 = vld [vmem:[#allocation8 + $0x10] sm:$0xff]
        %v2227 = vld [vmem:[#allocation8 + $0x18] sm:$0xff]
        %v2228 = vld [vmem:[#allocation8 + $0x20] sm:$0xff]
        %v2229 = vld [vmem:[#allocation8 + $0x28] sm:$0xff]
        %v2230 = vld [vmem:[#allocation8 + $0x30] sm:$0xff]
        %v2231 = vld [vmem:[#allocation8 + $0x38] sm:$0xff]
        %v2232 = vld [vmem:[#allocation8 + $0x40] sm:$0xff]
        %v2233 = vld [vmem:[#allocation8 + $0x48] sm:$0xff]
        %v2234 = vld [vmem:[#allocation8 + $0x50] sm:$0xff]
        %v2235 = vld [vmem:[#allocation8 + $0x58] sm:$0xff]
        %v2236 = vld [vmem:[#allocation8 + $0x60] sm:$0xff]
        %v2237 = vld [vmem:[#allocation8 + $0x68] sm:$0xff]
        %v2238 = vld [vmem:[#allocation8 + $0x70] sm:$0xff]
        %v2239 = vld [vmem:[#allocation8 + $0x78] sm:$0xff]
        %v2240 = vld [vmem:[#allocation8 + $0x80] sm:$0xff]
        %v2241 = vld [vmem:[#allocation8 + $0x88] sm:$0xff]
        %v2242 = vld [vmem:[#allocation8 + $0x90] sm:$0xff]
        %v2243 = vld [vmem:[#allocation8 + $0x98] sm:$0xff]
        %v2244 = vld [vmem:[#allocation8 + $0xa0] sm:$0xff]
        %v2245 = vld [vmem:[#allocation8 + $0xa8] sm:$0xff]
        %v2246 = vld [vmem:[#allocation8 + $0xb0] sm:$0xff]
        %v2247 = vld [vmem:[#allocation8 + $0xb8] sm:$0xff]
        %v2248 = vld [vmem:[#allocation8 + $0xc0] sm:$0xff]
        %v2249 = vld [vmem:[#allocation8 + $0xc8] sm:$0xff]
        %v2250 = vld [vmem:[#allocation8 + $0xd0] sm:$0xff]
        %v2251 = vld [vmem:[#allocation8 + $0xd8] sm:$0xff]
        %v2252 = vld [vmem:[#allocation8 + $0xe0] sm:$0xff]
        %v2253 = vld [vmem:[#allocation8 + $0xe8] sm:$0xff]
        %v2254 = vld [vmem:[#allocation8 + $0xf0] sm:$0xff]
        %v2255 = vld [vmem:[#allocation8 + $0xf8] sm:$0xff]
        %v2256 = vld [vmem:[%s7] sm:$0x3]
        %v2258 = vlaneseq
        %v2259 = vshrl.u32 %v2258, 7
        %v2260 = vsub.s32 0, %v2259
        %v2261 = vrot.slane %v2256, %v2260
        %v2262 = vlaneseq
        %v2263 = vshrl.u32 %v2262, 7
        %v2264 = vsub.s32 1, %v2263
        %v2265 = vrot.slane %v2256, %v2264
        %v2300 = vunpack.c.l.b16 %v2224
        %v2301 = vunpack.c.h.b16 %v2224
        %v2302 = vunpack.c.l.b16 %v2225
        %v2303 = vunpack.c.h.b16 %v2225
        %v2304 = vunpack.c.l.b16 %v2226
        %v2305 = vunpack.c.h.b16 %v2226
        %v2306 = vunpack.c.l.b16 %v2227
        %v2307 = vunpack.c.h.b16 %v2227
        %v2308 = vunpack.c.l.b16 %v2228
        %v2309 = vunpack.c.h.b16 %v2228
        %v2310 = vunpack.c.l.b16 %v2229
        %v2311 = vunpack.c.h.b16 %v2229
        %v2312 = vunpack.c.l.b16 %v2230
        %v2313 = vunpack.c.h.b16 %v2230
        %v2314 = vunpack.c.l.b16 %v2231
        %v2315 = vunpack.c.h.b16 %v2231
        %v2316 = vunpack.c.l.b16 %v2232
        %v2317 = vunpack.c.h.b16 %v2232
        %v2318 = vunpack.c.l.b16 %v2233
        %v2319 = vunpack.c.h.b16 %v2233
        %v2320 = vunpack.c.l.b16 %v2234
        %v2321 = vunpack.c.h.b16 %v2234
        %v2322 = vunpack.c.l.b16 %v2235
        %v2323 = vunpack.c.h.b16 %v2235
        %v2324 = vunpack.c.l.b16 %v2236
        %v2325 = vunpack.c.h.b16 %v2236
        %v2326 = vunpack.c.l.b16 %v2237
        %v2327 = vunpack.c.h.b16 %v2237
        %v2328 = vunpack.c.l.b16 %v2238
        %v2329 = vunpack.c.h.b16 %v2238
        %v2330 = vunpack.c.l.b16 %v2239
        %v2331 = vunpack.c.h.b16 %v2239
        %v2332 = vunpack.c.l.b16 %v2240
        %v2333 = vunpack.c.h.b16 %v2240
        %v2334 = vunpack.c.l.b16 %v2241
        %v2335 = vunpack.c.h.b16 %v2241
        %v2336 = vunpack.c.l.b16 %v2242
        %v2337 = vunpack.c.h.b16 %v2242
        %v2338 = vunpack.c.l.b16 %v2243
        %v2339 = vunpack.c.h.b16 %v2243
        %v2340 = vunpack.c.l.b16 %v2244
        %v2341 = vunpack.c.h.b16 %v2244
        %v2342 = vunpack.c.l.b16 %v2245
        %v2343 = vunpack.c.h.b16 %v2245
        %v2344 = vunpack.c.l.b16 %v2246
        %v2345 = vunpack.c.h.b16 %v2246
        %v2346 = vunpack.c.l.b16 %v2247
        %v2347 = vunpack.c.h.b16 %v2247
        %v2348 = vunpack.c.l.b16 %v2248
        %v2349 = vunpack.c.h.b16 %v2248
        %v2350 = vunpack.c.l.b16 %v2249
        %v2351 = vunpack.c.h.b16 %v2249
        %v2352 = vunpack.c.l.b16 %v2250
        %v2353 = vunpack.c.h.b16 %v2250
        %v2354 = vunpack.c.l.b16 %v2251
        %v2355 = vunpack.c.h.b16 %v2251
        %v2356 = vunpack.c.l.b16 %v2252
        %v2357 = vunpack.c.h.b16 %v2252
        %v2358 = vunpack.c.l.b16 %v2253
        %v2359 = vunpack.c.h.b16 %v2253
        %v2360 = vunpack.c.l.b16 %v2254
        %v2361 = vunpack.c.h.b16 %v2254
        %v2362 = vunpack.c.l.b16 %v2255
        %v2363 = vunpack.c.h.b16 %v2255
        %v2364 = vpack.c.b16 %v2302, %v2300
        %v2365 = vpack.c.b16 %v2303, %v2301
        %v2366 = vpack.c.b16 %v2306, %v2304
        %v2367 = vpack.c.b16 %v2307, %v2305
        %v2368 = vpack.c.b16 %v2310, %v2308
        %v2369 = vpack.c.b16 %v2311, %v2309
        %v2370 = vpack.c.b16 %v2314, %v2312
        %v2371 = vpack.c.b16 %v2315, %v2313
        %v2372 = vpack.c.b16 %v2318, %v2316
        %v2373 = vpack.c.b16 %v2319, %v2317
        %v2374 = vpack.c.b16 %v2322, %v2320
        %v2375 = vpack.c.b16 %v2323, %v2321
        %v2376 = vpack.c.b16 %v2326, %v2324
        %v2377 = vpack.c.b16 %v2327, %v2325
        %v2378 = vpack.c.b16 %v2330, %v2328
        %v2379 = vpack.c.b16 %v2331, %v2329
        %v2380 = vpack.c.b16 %v2334, %v2332
        %v2381 = vpack.c.b16 %v2335, %v2333
        %v2382 = vpack.c.b16 %v2338, %v2336
        %v2383 = vpack.c.b16 %v2339, %v2337
        %v2384 = vpack.c.b16 %v2342, %v2340
        %v2385 = vpack.c.b16 %v2343, %v2341
        %v2386 = vpack.c.b16 %v2346, %v2344
        %v2387 = vpack.c.b16 %v2347, %v2345
        %v2388 = vpack.c.b16 %v2350, %v2348
        %v2389 = vpack.c.b16 %v2351, %v2349
        %v2390 = vpack.c.b16 %v2354, %v2352
        %v2391 = vpack.c.b16 %v2355, %v2353
        %v2392 = vpack.c.b16 %v2358, %v2356
        %v2393 = vpack.c.b16 %v2359, %v2357
        %v2394 = vpack.c.b16 %v2362, %v2360
        %v2395 = vpack.c.b16 %v2363, %v2361
        %2428 = vmatprep.subr.bf16.mxu0 %v2365
        %2429 = vmatpush1.bf16.msra.mxu0 %v2364
        %2430 = vmatprep.subr.bf16.mxu0 %v2367
        %2431 = vmatpush1.bf16.msra.mxu0 %v2366
        %2432 = vmatprep.subr.bf16.mxu0 %v2369
        %2433 = vmatpush1.bf16.msra.mxu0 %v2368
        %2434 = vmatprep.subr.bf16.mxu0 %v2371
        %2435 = vmatpush1.bf16.msra.mxu0 %v2370
        %2436 = vmatprep.subr.bf16.mxu0 %v2373
        %2437 = vmatpush1.bf16.msra.mxu0 %v2372
        %2438 = vmatprep.subr.bf16.mxu0 %v2375
        %2439 = vmatpush1.bf16.msra.mxu0 %v2374
        %2440 = vmatprep.subr.bf16.mxu0 %v2377
        %2441 = vmatpush1.bf16.msra.mxu0 %v2376
        %2442 = vmatprep.subr.bf16.mxu0 %v2379
        %2443 = vmatpush1.bf16.msra.mxu0 %v2378
        %2444 = vmatprep.subr.bf16.mxu0 %v2381
        %2445 = vmatpush1.bf16.msra.mxu0 %v2380
        %2446 = vmatprep.subr.bf16.mxu0 %v2383
        %2447 = vmatpush1.bf16.msra.mxu0 %v2382
        %2448 = vmatprep.subr.bf16.mxu0 %v2385
        %2449 = vmatpush1.bf16.msra.mxu0 %v2384
        %2450 = vmatprep.subr.bf16.mxu0 %v2387
        %2451 = vmatpush1.bf16.msra.mxu0 %v2386
        %2452 = vmatprep.subr.bf16.mxu0 %v2389
        %2453 = vmatpush1.bf16.msra.mxu0 %v2388
        %2454 = vmatprep.subr.bf16.mxu0 %v2391
        %2455 = vmatpush1.bf16.msra.mxu0 %v2390
        %2456 = vmatprep.subr.bf16.mxu0 %v2393
        %2457 = vmatpush1.bf16.msra.mxu0 %v2392
        %2458 = vmatprep.subr.bf16.mxu0 %v2395
        %2459 = vmatpush1.bf16.msra.mxu0 %v2394
        %2460 = vmatprep.mubr.bf16.mxu0 %v2223
        %2461 = vmatmul.mubr.bf16.gmra.mrb[0].mxu0 %v2222
        %v2462 = vpop.f32.mrb[0].mxu0
        %v2463 = vadd.f32 %v2261, %v2462
        %v2464 = vpop.f32.mrb[0].mxu0
        %v2465 = vadd.f32 %v2265, %v2464
        %v2466 = vpop.f32.mrb[0].mxu0
        %v2467 = vpop.f32.mrb[0].mxu0
        %2468 = vdwg.mxu0
        %v2469 = vadd.f32 %v823, %v2463
        %v2470 = vadd.f32 %v824, %v2465
        %v2471 = vld [vmem:[%s8] sm:$0x3]
        %v2472 = vld [vmem:[%s9] sm:$0x3]
        %v2473 = vadd.f32 %v2469, %v2470
        %2474 = vadd.xlane.f32.xlu0 %v2473
        %v2475 = vpop.xlane.xlu0 %2474
        %v2476 = vrcp.pop 256.0
        %v2477 = vmul.f32 %v2475, %v2476
        %v2478 = vsub.f32 %v2469, %v2477
        %v2479 = vsub.f32 %v2470, %v2477
        %v2480 = vmul.f32 %v2478, %v2478
        %v2481 = vmul.f32 %v2479, %v2479
        %v2482 = vadd.f32 %v2480, %v2481
        %2483 = vadd.xlane.f32.xlu0 %v2482
        %v2484 = vpop.xlane.xlu0 %2483
        %v2485 = vmul.f32 %v2484, %v2476
        %v2486 = vadd.f32 %v2485, 1e-05
        %v2487 = vrsqrt.pop %v2486
        %v2488 = vmul.f32 %v2478, %v2487
        %v2489 = vmul.f32 %v2479, %v2487
        %v2491 = vlaneseq
        %v2492 = vshrl.u32 %v2491, 7
        %v2493 = vsub.s32 0, %v2492
        %v2494 = vrot.slane %v2471, %v2493
        %v2495 = vlaneseq
        %v2496 = vshrl.u32 %v2495, 7
        %v2497 = vsub.s32 1, %v2496
        %v2498 = vrot.slane %v2471, %v2497
        %v2501 = vmul.f32 %v2488, %v2494
        %v2502 = vmul.f32 %v2489, %v2498
        %v2504 = vlaneseq
        %v2505 = vshrl.u32 %v2504, 7
        %v2506 = vsub.s32 0, %v2505
        %v2507 = vrot.slane %v2472, %v2506
        %v2508 = vlaneseq
        %v2509 = vshrl.u32 %v2508, 7
        %v2510 = vsub.s32 1, %v2509
        %v2511 = vrot.slane %v2472, %v2510
        %v2514 = vadd.f32 %v2501, %v2507
        %v2515 = vadd.f32 %v2502, %v2511
        %v2516 = vpack.c.bf16 %v2514, %v2514
        %v2517 = vpack.c.bf16 %v2515, %v2515
        %v2518 = vld [vmem:[#allocation10] sm:$0xff]
        %v2519 = vld [vmem:[#allocation10 + $0x8] sm:$0xff]
        %v2520 = vld [vmem:[#allocation10 + $0x10] sm:$0xff]
        %v2521 = vld [vmem:[#allocation10 + $0x18] sm:$0xff]
        %v2522 = vld [vmem:[#allocation10 + $0x20] sm:$0xff]
        %v2523 = vld [vmem:[#allocation10 + $0x28] sm:$0xff]
        %v2524 = vld [vmem:[#allocation10 + $0x30] sm:$0xff]
        %v2525 = vld [vmem:[#allocation10 + $0x38] sm:$0xff]
        %v2526 = vld [vmem:[#allocation10 + $0x40] sm:$0xff]
        %v2527 = vld [vmem:[#allocation10 + $0x48] sm:$0xff]
        %v2528 = vld [vmem:[#allocation10 + $0x50] sm:$0xff]
        %v2529 = vld [vmem:[#allocation10 + $0x58] sm:$0xff]
        %v2530 = vld [vmem:[#allocation10 + $0x60] sm:$0xff]
        %v2531 = vld [vmem:[#allocation10 + $0x68] sm:$0xff]
        %v2532 = vld [vmem:[#allocation10 + $0x70] sm:$0xff]
        %v2533 = vld [vmem:[#allocation10 + $0x78] sm:$0xff]
        %v2534 = vld [vmem:[#allocation10 + $0x80] sm:$0xff]
        %v2535 = vld [vmem:[#allocation10 + $0x88] sm:$0xff]
        %v2536 = vld [vmem:[#allocation10 + $0x90] sm:$0xff]
        %v2537 = vld [vmem:[#allocation10 + $0x98] sm:$0xff]
        %v2538 = vld [vmem:[#allocation10 + $0xa0] sm:$0xff]
        %v2539 = vld [vmem:[#allocation10 + $0xa8] sm:$0xff]
        %v2540 = vld [vmem:[#allocation10 + $0xb0] sm:$0xff]
        %v2541 = vld [vmem:[#allocation10 + $0xb8] sm:$0xff]
        %v2542 = vld [vmem:[#allocation10 + $0xc0] sm:$0xff]
        %v2543 = vld [vmem:[#allocation10 + $0xc8] sm:$0xff]
        %v2544 = vld [vmem:[#allocation10 + $0xd0] sm:$0xff]
        %v2545 = vld [vmem:[#allocation10 + $0xd8] sm:$0xff]
        %v2546 = vld [vmem:[#allocation10 + $0xe0] sm:$0xff]
        %v2547 = vld [vmem:[#allocation10 + $0xe8] sm:$0xff]
        %v2548 = vld [vmem:[#allocation10 + $0xf0] sm:$0xff]
        %v2549 = vld [vmem:[#allocation10 + $0xf8] sm:$0xff]
        %v2550 = vld [vmem:[#allocation10 + $0x100] sm:$0xff]
        %v2551 = vld [vmem:[#allocation10 + $0x108] sm:$0xff]
        %v2552 = vld [vmem:[#allocation10 + $0x110] sm:$0xff]
        %v2553 = vld [vmem:[#allocation10 + $0x118] sm:$0xff]
        %v2554 = vld [vmem:[#allocation10 + $0x120] sm:$0xff]
        %v2555 = vld [vmem:[#allocation10 + $0x128] sm:$0xff]
        %v2556 = vld [vmem:[#allocation10 + $0x130] sm:$0xff]
        %v2557 = vld [vmem:[#allocation10 + $0x138] sm:$0xff]
        %v2558 = vld [vmem:[#allocation10 + $0x140] sm:$0xff]
        %v2559 = vld [vmem:[#allocation10 + $0x148] sm:$0xff]
        %v2560 = vld [vmem:[#allocation10 + $0x150] sm:$0xff]
        %v2561 = vld [vmem:[#allocation10 + $0x158] sm:$0xff]
        %v2562 = vld [vmem:[#allocation10 + $0x160] sm:$0xff]
        %v2563 = vld [vmem:[#allocation10 + $0x168] sm:$0xff]
        %v2564 = vld [vmem:[#allocation10 + $0x170] sm:$0xff]
        %v2565 = vld [vmem:[#allocation10 + $0x178] sm:$0xff]
        %v2566 = vld [vmem:[#allocation10 + $0x180] sm:$0xff]
        %v2567 = vld [vmem:[#allocation10 + $0x188] sm:$0xff]
        %v2568 = vld [vmem:[#allocation10 + $0x190] sm:$0xff]
        %v2569 = vld [vmem:[#allocation10 + $0x198] sm:$0xff]
        %v2570 = vld [vmem:[#allocation10 + $0x1a0] sm:$0xff]
        %v2571 = vld [vmem:[#allocation10 + $0x1a8] sm:$0xff]
        %v2572 = vld [vmem:[#allocation10 + $0x1b0] sm:$0xff]
        %v2573 = vld [vmem:[#allocation10 + $0x1b8] sm:$0xff]
        %v2574 = vld [vmem:[#allocation10 + $0x1c0] sm:$0xff]
        %v2575 = vld [vmem:[#allocation10 + $0x1c8] sm:$0xff]
        %v2576 = vld [vmem:[#allocation10 + $0x1d0] sm:$0xff]
        %v2577 = vld [vmem:[#allocation10 + $0x1d8] sm:$0xff]
        %v2578 = vld [vmem:[#allocation10 + $0x1e0] sm:$0xff]
        %v2579 = vld [vmem:[#allocation10 + $0x1e8] sm:$0xff]
        %v2580 = vld [vmem:[#allocation10 + $0x1f0] sm:$0xff]
        %v2581 = vld [vmem:[#allocation10 + $0x1f8] sm:$0xff]
        %v2582 = vld [vmem:[%s13] sm:$0xf]
        %v2584 = vlaneseq
        %v2585 = vshrl.u32 %v2584, 7
        %v2586 = vsub.s32 0, %v2585
        %v2587 = vrot.slane %v2582, %v2586
        %v2588 = vlaneseq
        %v2589 = vshrl.u32 %v2588, 7
        %v2590 = vsub.s32 1, %v2589
        %v2591 = vrot.slane %v2582, %v2590
        %v2592 = vlaneseq
        %v2593 = vshrl.u32 %v2592, 7
        %v2594 = vsub.s32 2, %v2593
        %v2595 = vrot.slane %v2582, %v2594
        %v2596 = vlaneseq
        %v2597 = vshrl.u32 %v2596, 7
        %v2598 = vsub.s32 3, %v2597
        %v2599 = vrot.slane %v2582, %v2598
        %v2668 = vunpack.c.l.b16 %v2518
        %v2669 = vunpack.c.h.b16 %v2518
        %v2670 = vunpack.c.l.b16 %v2519
        %v2671 = vunpack.c.h.b16 %v2519
        %v2672 = vunpack.c.l.b16 %v2520
        %v2673 = vunpack.c.h.b16 %v2520
        %v2674 = vunpack.c.l.b16 %v2521
        %v2675 = vunpack.c.h.b16 %v2521
        %v2676 = vunpack.c.l.b16 %v2522
        %v2677 = vunpack.c.h.b16 %v2522
        %v2678 = vunpack.c.l.b16 %v2523
        %v2679 = vunpack.c.h.b16 %v2523
        %v2680 = vunpack.c.l.b16 %v2524
        %v2681 = vunpack.c.h.b16 %v2524
        %v2682 = vunpack.c.l.b16 %v2525
        %v2683 = vunpack.c.h.b16 %v2525
        %v2684 = vunpack.c.l.b16 %v2526
        %v2685 = vunpack.c.h.b16 %v2526
        %v2686 = vunpack.c.l.b16 %v2527
        %v2687 = vunpack.c.h.b16 %v2527
        %v2688 = vunpack.c.l.b16 %v2528
        %v2689 = vunpack.c.h.b16 %v2528
        %v2690 = vunpack.c.l.b16 %v2529
        %v2691 = vunpack.c.h.b16 %v2529
        %v2692 = vunpack.c.l.b16 %v2530
        %v2693 = vunpack.c.h.b16 %v2530
        %v2694 = vunpack.c.l.b16 %v2531
        %v2695 = vunpack.c.h.b16 %v2531
        %v2696 = vunpack.c.l.b16 %v2532
        %v2697 = vunpack.c.h.b16 %v2532
        %v2698 = vunpack.c.l.b16 %v2533
        %v2699 = vunpack.c.h.b16 %v2533
        %v2700 = vunpack.c.l.b16 %v2534
        %v2701 = vunpack.c.h.b16 %v2534
        %v2702 = vunpack.c.l.b16 %v2535
        %v2703 = vunpack.c.h.b16 %v2535
        %v2704 = vunpack.c.l.b16 %v2536
        %v2705 = vunpack.c.h.b16 %v2536
        %v2706 = vunpack.c.l.b16 %v2537
        %v2707 = vunpack.c.h.b16 %v2537
        %v2708 = vunpack.c.l.b16 %v2538
        %v2709 = vunpack.c.h.b16 %v2538
        %v2710 = vunpack.c.l.b16 %v2539
        %v2711 = vunpack.c.h.b16 %v2539
        %v2712 = vunpack.c.l.b16 %v2540
        %v2713 = vunpack.c.h.b16 %v2540
        %v2714 = vunpack.c.l.b16 %v2541
        %v2715 = vunpack.c.h.b16 %v2541
        %v2716 = vunpack.c.l.b16 %v2542
        %v2717 = vunpack.c.h.b16 %v2542
        %v2718 = vunpack.c.l.b16 %v2543
        %v2719 = vunpack.c.h.b16 %v2543
        %v2720 = vunpack.c.l.b16 %v2544
        %v2721 = vunpack.c.h.b16 %v2544
        %v2722 = vunpack.c.l.b16 %v2545
        %v2723 = vunpack.c.h.b16 %v2545
        %v2724 = vunpack.c.l.b16 %v2546
        %v2725 = vunpack.c.h.b16 %v2546
        %v2726 = vunpack.c.l.b16 %v2547
        %v2727 = vunpack.c.h.b16 %v2547
        %v2728 = vunpack.c.l.b16 %v2548
        %v2729 = vunpack.c.h.b16 %v2548
        %v2730 = vunpack.c.l.b16 %v2549
        %v2731 = vunpack.c.h.b16 %v2549
        %v2732 = vunpack.c.l.b16 %v2550
        %v2733 = vunpack.c.h.b16 %v2550
        %v2734 = vunpack.c.l.b16 %v2551
        %v2735 = vunpack.c.h.b16 %v2551
        %v2736 = vunpack.c.l.b16 %v2552
        %v2737 = vunpack.c.h.b16 %v2552
        %v2738 = vunpack.c.l.b16 %v2553
        %v2739 = vunpack.c.h.b16 %v2553
        %v2740 = vunpack.c.l.b16 %v2554
        %v2741 = vunpack.c.h.b16 %v2554
        %v2742 = vunpack.c.l.b16 %v2555
        %v2743 = vunpack.c.h.b16 %v2555
        %v2744 = vunpack.c.l.b16 %v2556
        %v2745 = vunpack.c.h.b16 %v2556
        %v2746 = vunpack.c.l.b16 %v2557
        %v2747 = vunpack.c.h.b16 %v2557
        %v2748 = vunpack.c.l.b16 %v2558
        %v2749 = vunpack.c.h.b16 %v2558
        %v2750 = vunpack.c.l.b16 %v2559
        %v2751 = vunpack.c.h.b16 %v2559
        %v2752 = vunpack.c.l.b16 %v2560
        %v2753 = vunpack.c.h.b16 %v2560
        %v2754 = vunpack.c.l.b16 %v2561
        %v2755 = vunpack.c.h.b16 %v2561
        %v2756 = vunpack.c.l.b16 %v2562
        %v2757 = vunpack.c.h.b16 %v2562
        %v2758 = vunpack.c.l.b16 %v2563
        %v2759 = vunpack.c.h.b16 %v2563
        %v2760 = vunpack.c.l.b16 %v2564
        %v2761 = vunpack.c.h.b16 %v2564
        %v2762 = vunpack.c.l.b16 %v2565
        %v2763 = vunpack.c.h.b16 %v2565
        %v2764 = vunpack.c.l.b16 %v2566
        %v2765 = vunpack.c.h.b16 %v2566
        %v2766 = vunpack.c.l.b16 %v2567
        %v2767 = vunpack.c.h.b16 %v2567
        %v2768 = vunpack.c.l.b16 %v2568
        %v2769 = vunpack.c.h.b16 %v2568
        %v2770 = vunpack.c.l.b16 %v2569
        %v2771 = vunpack.c.h.b16 %v2569
        %v2772 = vunpack.c.l.b16 %v2570
        %v2773 = vunpack.c.h.b16 %v2570
        %v2774 = vunpack.c.l.b16 %v2571
        %v2775 = vunpack.c.h.b16 %v2571
        %v2776 = vunpack.c.l.b16 %v2572
        %v2777 = vunpack.c.h.b16 %v2572
        %v2778 = vunpack.c.l.b16 %v2573
        %v2779 = vunpack.c.h.b16 %v2573
        %v2780 = vunpack.c.l.b16 %v2574
        %v2781 = vunpack.c.h.b16 %v2574
        %v2782 = vunpack.c.l.b16 %v2575
        %v2783 = vunpack.c.h.b16 %v2575
        %v2784 = vunpack.c.l.b16 %v2576
        %v2785 = vunpack.c.h.b16 %v2576
        %v2786 = vunpack.c.l.b16 %v2577
        %v2787 = vunpack.c.h.b16 %v2577
        %v2788 = vunpack.c.l.b16 %v2578
        %v2789 = vunpack.c.h.b16 %v2578
        %v2790 = vunpack.c.l.b16 %v2579
        %v2791 = vunpack.c.h.b16 %v2579
        %v2792 = vunpack.c.l.b16 %v2580
        %v2793 = vunpack.c.h.b16 %v2580
        %v2794 = vunpack.c.l.b16 %v2581
        %v2795 = vunpack.c.h.b16 %v2581
        %v2796 = vpack.c.b16 %v2672, %v2668
        %v2797 = vpack.c.b16 %v2673, %v2669
        %v2798 = vpack.c.b16 %v2674, %v2670
        %v2799 = vpack.c.b16 %v2675, %v2671
        %v2800 = vpack.c.b16 %v2680, %v2676
        %v2801 = vpack.c.b16 %v2681, %v2677
        %v2802 = vpack.c.b16 %v2682, %v2678
        %v2803 = vpack.c.b16 %v2683, %v2679
        %v2804 = vpack.c.b16 %v2688, %v2684
        %v2805 = vpack.c.b16 %v2689, %v2685
        %v2806 = vpack.c.b16 %v2690, %v2686
        %v2807 = vpack.c.b16 %v2691, %v2687
        %v2808 = vpack.c.b16 %v2696, %v2692
        %v2809 = vpack.c.b16 %v2697, %v2693
        %v2810 = vpack.c.b16 %v2698, %v2694
        %v2811 = vpack.c.b16 %v2699, %v2695
        %v2812 = vpack.c.b16 %v2704, %v2700
        %v2813 = vpack.c.b16 %v2705, %v2701
        %v2814 = vpack.c.b16 %v2706, %v2702
        %v2815 = vpack.c.b16 %v2707, %v2703
        %v2816 = vpack.c.b16 %v2712, %v2708
        %v2817 = vpack.c.b16 %v2713, %v2709
        %v2818 = vpack.c.b16 %v2714, %v2710
        %v2819 = vpack.c.b16 %v2715, %v2711
        %v2820 = vpack.c.b16 %v2720, %v2716
        %v2821 = vpack.c.b16 %v2721, %v2717
        %v2822 = vpack.c.b16 %v2722, %v2718
        %v2823 = vpack.c.b16 %v2723, %v2719
        %v2824 = vpack.c.b16 %v2728, %v2724
        %v2825 = vpack.c.b16 %v2729, %v2725
        %v2826 = vpack.c.b16 %v2730, %v2726
        %v2827 = vpack.c.b16 %v2731, %v2727
        %v2828 = vpack.c.b16 %v2736, %v2732
        %v2829 = vpack.c.b16 %v2737, %v2733
        %v2830 = vpack.c.b16 %v2738, %v2734
        %v2831 = vpack.c.b16 %v2739, %v2735
        %v2832 = vpack.c.b16 %v2744, %v2740
        %v2833 = vpack.c.b16 %v2745, %v2741
        %v2834 = vpack.c.b16 %v2746, %v2742
        %v2835 = vpack.c.b16 %v2747, %v2743
        %v2836 = vpack.c.b16 %v2752, %v2748
        %v2837 = vpack.c.b16 %v2753, %v2749
        %v2838 = vpack.c.b16 %v2754, %v2750
        %v2839 = vpack.c.b16 %v2755, %v2751
        %v2840 = vpack.c.b16 %v2760, %v2756
        %v2841 = vpack.c.b16 %v2761, %v2757
        %v2842 = vpack.c.b16 %v2762, %v2758
        %v2843 = vpack.c.b16 %v2763, %v2759
        %v2844 = vpack.c.b16 %v2768, %v2764
        %v2845 = vpack.c.b16 %v2769, %v2765
        %v2846 = vpack.c.b16 %v2770, %v2766
        %v2847 = vpack.c.b16 %v2771, %v2767
        %v2848 = vpack.c.b16 %v2776, %v2772
        %v2849 = vpack.c.b16 %v2777, %v2773
        %v2850 = vpack.c.b16 %v2778, %v2774
        %v2851 = vpack.c.b16 %v2779, %v2775
        %v2852 = vpack.c.b16 %v2784, %v2780
        %v2853 = vpack.c.b16 %v2785, %v2781
        %v2854 = vpack.c.b16 %v2786, %v2782
        %v2855 = vpack.c.b16 %v2787, %v2783
        %v2856 = vpack.c.b16 %v2792, %v2788
        %v2857 = vpack.c.b16 %v2793, %v2789
        %v2858 = vpack.c.b16 %v2794, %v2790
        %v2859 = vpack.c.b16 %v2795, %v2791
        %2924 = vmatprep.subr.bf16.mxu0 %v2797
        %2925 = vmatpush1.bf16.msra.mxu0 %v2796
        %2926 = vmatprep.subr.bf16.mxu0 %v2801
        %2927 = vmatpush1.bf16.msra.mxu0 %v2800
        %2928 = vmatprep.subr.bf16.mxu0 %v2805
        %2929 = vmatpush1.bf16.msra.mxu0 %v2804
        %2930 = vmatprep.subr.bf16.mxu0 %v2809
        %2931 = vmatpush1.bf16.msra.mxu0 %v2808
        %2932 = vmatprep.subr.bf16.mxu0 %v2813
        %2933 = vmatpush1.bf16.msra.mxu0 %v2812
        %2934 = vmatprep.subr.bf16.mxu0 %v2817
        %2935 = vmatpush1.bf16.msra.mxu0 %v2816
        %2936 = vmatprep.subr.bf16.mxu0 %v2821
        %2937 = vmatpush1.bf16.msra.mxu0 %v2820
        %2938 = vmatprep.subr.bf16.mxu0 %v2825
        %2939 = vmatpush1.bf16.msra.mxu0 %v2824
        %2940 = vmatprep.subr.bf16.mxu0 %v2829
        %2941 = vmatpush1.bf16.msra.mxu0 %v2828
        %2942 = vmatprep.subr.bf16.mxu0 %v2833
        %2943 = vmatpush1.bf16.msra.mxu0 %v2832
        %2944 = vmatprep.subr.bf16.mxu0 %v2837
        %2945 = vmatpush1.bf16.msra.mxu0 %v2836
        %2946 = vmatprep.subr.bf16.mxu0 %v2841
        %2947 = vmatpush1.bf16.msra.mxu0 %v2840
        %2948 = vmatprep.subr.bf16.mxu0 %v2845
        %2949 = vmatpush1.bf16.msra.mxu0 %v2844
        %2950 = vmatprep.subr.bf16.mxu0 %v2849
        %2951 = vmatpush1.bf16.msra.mxu0 %v2848
        %2952 = vmatprep.subr.bf16.mxu0 %v2853
        %2953 = vmatpush1.bf16.msra.mxu0 %v2852
        %2954 = vmatprep.subr.bf16.mxu0 %v2857
        %2955 = vmatpush1.bf16.msra.mxu0 %v2856
        %2956 = vmatprep.mubr.bf16.mxu0 %v2517
        %2957 = vmatmul.mubr.bf16.gmra.mrb[0].mxu0 %v2516
        %v2958 = vpop.f32.mrb[0].mxu0
        %v2959 = vadd.f32 %v2587, %v2958
        %v2960 = vpop.f32.mrb[0].mxu0
        %v2961 = vadd.f32 %v2591, %v2960
        %v2962 = vpop.f32.mrb[0].mxu0
        %v2963 = vpop.f32.mrb[0].mxu0
        %2964 = vdwg.mxu0
        %2965 = vmatprep.subr.bf16.mxu0 %v2799
        %2966 = vmatpush1.bf16.msra.mxu0 %v2798
        %2967 = vmatprep.subr.bf16.mxu0 %v2803
        %2968 = vmatpush1.bf16.msra.mxu0 %v2802
        %2969 = vmatprep.subr.bf16.mxu0 %v2807
        %2970 = vmatpush1.bf16.msra.mxu0 %v2806
        %2971 = vmatprep.subr.bf16.mxu0 %v2811
        %2972 = vmatpush1.bf16.msra.mxu0 %v2810
        %2973 = vmatprep.subr.bf16.mxu0 %v2815
        %2974 = vmatpush1.bf16.msra.mxu0 %v2814
        %2975 = vmatprep.subr.bf16.mxu0 %v2819
        %2976 = vmatpush1.bf16.msra.mxu0 %v2818
        %2977 = vmatprep.subr.bf16.mxu0 %v2823
        %2978 = vmatpush1.bf16.msra.mxu0 %v2822
        %2979 = vmatprep.subr.bf16.mxu0 %v2827
        %2980 = vmatpush1.bf16.msra.mxu0 %v2826
        %2981 = vmatprep.subr.bf16.mxu0 %v2831
        %2982 = vmatpush1.bf16.msra.mxu0 %v2830
        %2983 = vmatprep.subr.bf16.mxu0 %v2835
        %2984 = vmatpush1.bf16.msra.mxu0 %v2834
        %2985 = vmatprep.subr.bf16.mxu0 %v2839
        %2986 = vmatpush1.bf16.msra.mxu0 %v2838
        %2987 = vmatprep.subr.bf16.mxu0 %v2843
        %2988 = vmatpush1.bf16.msra.mxu0 %v2842
        %2989 = vmatprep.subr.bf16.mxu0 %v2847
        %2990 = vmatpush1.bf16.msra.mxu0 %v2846
        %2991 = vmatprep.subr.bf16.mxu0 %v2851
        %2992 = vmatpush1.bf16.msra.mxu0 %v2850
        %2993 = vmatprep.subr.bf16.mxu0 %v2855
        %2994 = vmatpush1.bf16.msra.mxu0 %v2854
        %2995 = vmatprep.subr.bf16.mxu0 %v2859
        %2996 = vmatpush1.bf16.msra.mxu0 %v2858
        %2997 = vmatprep.mubr.bf16.mxu0 %v2517
        %2998 = vmatmul.mubr.bf16.gmra.mrb[0].mxu0 %v2516
        %v2999 = vpop.f32.mrb[0].mxu0
        %v3000 = vadd.f32 %v2595, %v2999
        %v3001 = vpop.f32.mrb[0].mxu0
        %v3002 = vadd.f32 %v2599, %v3001
        %v3003 = vpop.f32.mrb[0].mxu0
        %v3004 = vpop.f32.mrb[0].mxu0
        %3005 = vdwg.mxu0
        %v3006 = vmax.f32 %v2959, 0.0
        %v3007 = vmax.f32 %v2961, 0.0
        %v3008 = vmax.f32 %v3000, 0.0
        %v3009 = vmax.f32 %v3002, 0.0
        %v3010 = vpack.c.bf16 %v3006, %v3006
        %v3011 = vpack.c.bf16 %v3007, %v3007
        %v3012 = vpack.c.bf16 %v3008, %v3008
        %v3013 = vpack.c.bf16 %v3009, %v3009
        %v3014 = vld [vmem:[#allocation11] sm:$0xff]
        %v3015 = vld [vmem:[#allocation11 + $0x8] sm:$0xff]
        %v3016 = vld [vmem:[#allocation11 + $0x10] sm:$0xff]
        %v3017 = vld [vmem:[#allocation11 + $0x18] sm:$0xff]
        %v3018 = vld [vmem:[#allocation11 + $0x20] sm:$0xff]
        %v3019 = vld [vmem:[#allocation11 + $0x28] sm:$0xff]
        %v3020 = vld [vmem:[#allocation11 + $0x30] sm:$0xff]
        %v3021 = vld [vmem:[#allocation11 + $0x38] sm:$0xff]
        %v3022 = vld [vmem:[#allocation11 + $0x40] sm:$0xff]
        %v3023 = vld [vmem:[#allocation11 + $0x48] sm:$0xff]
        %v3024 = vld [vmem:[#allocation11 + $0x50] sm:$0xff]
        %v3025 = vld [vmem:[#allocation11 + $0x58] sm:$0xff]
        %v3026 = vld [vmem:[#allocation11 + $0x60] sm:$0xff]
        %v3027 = vld [vmem:[#allocation11 + $0x68] sm:$0xff]
        %v3028 = vld [vmem:[#allocation11 + $0x70] sm:$0xff]
        %v3029 = vld [vmem:[#allocation11 + $0x78] sm:$0xff]
        %v3030 = vld [vmem:[#allocation11 + $0x80] sm:$0xff]
        %v3031 = vld [vmem:[#allocation11 + $0x88] sm:$0xff]
        %v3032 = vld [vmem:[#allocation11 + $0x90] sm:$0xff]
        %v3033 = vld [vmem:[#allocation11 + $0x98] sm:$0xff]
        %v3034 = vld [vmem:[#allocation11 + $0xa0] sm:$0xff]
        %v3035 = vld [vmem:[#allocation11 + $0xa8] sm:$0xff]
        %v3036 = vld [vmem:[#allocation11 + $0xb0] sm:$0xff]
        %v3037 = vld [vmem:[#allocation11 + $0xb8] sm:$0xff]
        %v3038 = vld [vmem:[#allocation11 + $0xc0] sm:$0xff]
        %v3039 = vld [vmem:[#allocation11 + $0xc8] sm:$0xff]
        %v3040 = vld [vmem:[#allocation11 + $0xd0] sm:$0xff]
        %v3041 = vld [vmem:[#allocation11 + $0xd8] sm:$0xff]
        %v3042 = vld [vmem:[#allocation11 + $0xe0] sm:$0xff]
        %v3043 = vld [vmem:[#allocation11 + $0xe8] sm:$0xff]
        %v3044 = vld [vmem:[#allocation11 + $0xf0] sm:$0xff]
        %v3045 = vld [vmem:[#allocation11 + $0xf8] sm:$0xff]
        %v3046 = vld [vmem:[#allocation11 + $0x100] sm:$0xff]
        %v3047 = vld [vmem:[#allocation11 + $0x108] sm:$0xff]
        %v3048 = vld [vmem:[#allocation11 + $0x110] sm:$0xff]
        %v3049 = vld [vmem:[#allocation11 + $0x118] sm:$0xff]
        %v3050 = vld [vmem:[#allocation11 + $0x120] sm:$0xff]
        %v3051 = vld [vmem:[#allocation11 + $0x128] sm:$0xff]
        %v3052 = vld [vmem:[#allocation11 + $0x130] sm:$0xff]
        %v3053 = vld [vmem:[#allocation11 + $0x138] sm:$0xff]
        %v3054 = vld [vmem:[#allocation11 + $0x140] sm:$0xff]
        %v3055 = vld [vmem:[#allocation11 + $0x148] sm:$0xff]
        %v3056 = vld [vmem:[#allocation11 + $0x150] sm:$0xff]
        %v3057 = vld [vmem:[#allocation11 + $0x158] sm:$0xff]
        %v3058 = vld [vmem:[#allocation11 + $0x160] sm:$0xff]
        %v3059 = vld [vmem:[#allocation11 + $0x168] sm:$0xff]
        %v3060 = vld [vmem:[#allocation11 + $0x170] sm:$0xff]
        %v3061 = vld [vmem:[#allocation11 + $0x178] sm:$0xff]
        %v3062 = vld [vmem:[#allocation11 + $0x180] sm:$0xff]
        %v3063 = vld [vmem:[#allocation11 + $0x188] sm:$0xff]
        %v3064 = vld [vmem:[#allocation11 + $0x190] sm:$0xff]
        %v3065 = vld [vmem:[#allocation11 + $0x198] sm:$0xff]
        %v3066 = vld [vmem:[#allocation11 + $0x1a0] sm:$0xff]
        %v3067 = vld [vmem:[#allocation11 + $0x1a8] sm:$0xff]
        %v3068 = vld [vmem:[#allocation11 + $0x1b0] sm:$0xff]
        %v3069 = vld [vmem:[#allocation11 + $0x1b8] sm:$0xff]
        %v3070 = vld [vmem:[#allocation11 + $0x1c0] sm:$0xff]
        %v3071 = vld [vmem:[#allocation11 + $0x1c8] sm:$0xff]
        %v3072 = vld [vmem:[#allocation11 + $0x1d0] sm:$0xff]
        %v3073 = vld [vmem:[#allocation11 + $0x1d8] sm:$0xff]
        %v3074 = vld [vmem:[#allocation11 + $0x1e0] sm:$0xff]
        %v3075 = vld [vmem:[#allocation11 + $0x1e8] sm:$0xff]
        %v3076 = vld [vmem:[#allocation11 + $0x1f0] sm:$0xff]
        %v3077 = vld [vmem:[#allocation11 + $0x1f8] sm:$0xff]
        %v3078 = vld [vmem:[%s15] sm:$0x3]
        %v3080 = vlaneseq
        %v3081 = vshrl.u32 %v3080, 7
        %v3082 = vsub.s32 0, %v3081
        %v3083 = vrot.slane %v3078, %v3082
        %v3084 = vlaneseq
        %v3085 = vshrl.u32 %v3084, 7
        %v3086 = vsub.s32 1, %v3085
        %v3087 = vrot.slane %v3078, %v3086
        %v3154 = vunpack.c.l.b16 %v3014
        %v3155 = vunpack.c.h.b16 %v3014
        %v3156 = vunpack.c.l.b16 %v3015
        %v3157 = vunpack.c.h.b16 %v3015
        %v3158 = vunpack.c.l.b16 %v3016
        %v3159 = vunpack.c.h.b16 %v3016
        %v3160 = vunpack.c.l.b16 %v3017
        %v3161 = vunpack.c.h.b16 %v3017
        %v3162 = vunpack.c.l.b16 %v3018
        %v3163 = vunpack.c.h.b16 %v3018
        %v3164 = vunpack.c.l.b16 %v3019
        %v3165 = vunpack.c.h.b16 %v3019
        %v3166 = vunpack.c.l.b16 %v3020
        %v3167 = vunpack.c.h.b16 %v3020
        %v3168 = vunpack.c.l.b16 %v3021
        %v3169 = vunpack.c.h.b16 %v3021
        %v3170 = vunpack.c.l.b16 %v3022
        %v3171 = vunpack.c.h.b16 %v3022
        %v3172 = vunpack.c.l.b16 %v3023
        %v3173 = vunpack.c.h.b16 %v3023
        %v3174 = vunpack.c.l.b16 %v3024
        %v3175 = vunpack.c.h.b16 %v3024
        %v3176 = vunpack.c.l.b16 %v3025
        %v3177 = vunpack.c.h.b16 %v3025
        %v3178 = vunpack.c.l.b16 %v3026
        %v3179 = vunpack.c.h.b16 %v3026
        %v3180 = vunpack.c.l.b16 %v3027
        %v3181 = vunpack.c.h.b16 %v3027
        %v3182 = vunpack.c.l.b16 %v3028
        %v3183 = vunpack.c.h.b16 %v3028
        %v3184 = vunpack.c.l.b16 %v3029
        %v3185 = vunpack.c.h.b16 %v3029
        %v3186 = vunpack.c.l.b16 %v3030
        %v3187 = vunpack.c.h.b16 %v3030
        %v3188 = vunpack.c.l.b16 %v3031
        %v3189 = vunpack.c.h.b16 %v3031
        %v3190 = vunpack.c.l.b16 %v3032
        %v3191 = vunpack.c.h.b16 %v3032
        %v3192 = vunpack.c.l.b16 %v3033
        %v3193 = vunpack.c.h.b16 %v3033
        %v3194 = vunpack.c.l.b16 %v3034
        %v3195 = vunpack.c.h.b16 %v3034
        %v3196 = vunpack.c.l.b16 %v3035
        %v3197 = vunpack.c.h.b16 %v3035
        %v3198 = vunpack.c.l.b16 %v3036
        %v3199 = vunpack.c.h.b16 %v3036
        %v3200 = vunpack.c.l.b16 %v3037
        %v3201 = vunpack.c.h.b16 %v3037
        %v3202 = vunpack.c.l.b16 %v3038
        %v3203 = vunpack.c.h.b16 %v3038
        %v3204 = vunpack.c.l.b16 %v3039
        %v3205 = vunpack.c.h.b16 %v3039
        %v3206 = vunpack.c.l.b16 %v3040
        %v3207 = vunpack.c.h.b16 %v3040
        %v3208 = vunpack.c.l.b16 %v3041
        %v3209 = vunpack.c.h.b16 %v3041
        %v3210 = vunpack.c.l.b16 %v3042
        %v3211 = vunpack.c.h.b16 %v3042
        %v3212 = vunpack.c.l.b16 %v3043
        %v3213 = vunpack.c.h.b16 %v3043
        %v3214 = vunpack.c.l.b16 %v3044
        %v3215 = vunpack.c.h.b16 %v3044
        %v3216 = vunpack.c.l.b16 %v3045
        %v3217 = vunpack.c.h.b16 %v3045
        %v3218 = vunpack.c.l.b16 %v3046
        %v3219 = vunpack.c.h.b16 %v3046
        %v3220 = vunpack.c.l.b16 %v3047
        %v3221 = vunpack.c.h.b16 %v3047
        %v3222 = vunpack.c.l.b16 %v3048
        %v3223 = vunpack.c.h.b16 %v3048
        %v3224 = vunpack.c.l.b16 %v3049
        %v3225 = vunpack.c.h.b16 %v3049
        %v3226 = vunpack.c.l.b16 %v3050
        %v3227 = vunpack.c.h.b16 %v3050
        %v3228 = vunpack.c.l.b16 %v3051
        %v3229 = vunpack.c.h.b16 %v3051
        %v3230 = vunpack.c.l.b16 %v3052
        %v3231 = vunpack.c.h.b16 %v3052
        %v3232 = vunpack.c.l.b16 %v3053
        %v3233 = vunpack.c.h.b16 %v3053
        %v3234 = vunpack.c.l.b16 %v3054
        %v3235 = vunpack.c.h.b16 %v3054
        %v3236 = vunpack.c.l.b16 %v3055
        %v3237 = vunpack.c.h.b16 %v3055
        %v3238 = vunpack.c.l.b16 %v3056
        %v3239 = vunpack.c.h.b16 %v3056
        %v3240 = vunpack.c.l.b16 %v3057
        %v3241 = vunpack.c.h.b16 %v3057
        %v3242 = vunpack.c.l.b16 %v3058
        %v3243 = vunpack.c.h.b16 %v3058
        %v3244 = vunpack.c.l.b16 %v3059
        %v3245 = vunpack.c.h.b16 %v3059
        %v3246 = vunpack.c.l.b16 %v3060
        %v3247 = vunpack.c.h.b16 %v3060
        %v3248 = vunpack.c.l.b16 %v3061
        %v3249 = vunpack.c.h.b16 %v3061
        %v3250 = vunpack.c.l.b16 %v3062
        %v3251 = vunpack.c.h.b16 %v3062
        %v3252 = vunpack.c.l.b16 %v3063
        %v3253 = vunpack.c.h.b16 %v3063
        %v3254 = vunpack.c.l.b16 %v3064
        %v3255 = vunpack.c.h.b16 %v3064
        %v3256 = vunpack.c.l.b16 %v3065
        %v3257 = vunpack.c.h.b16 %v3065
        %v3258 = vunpack.c.l.b16 %v3066
        %v3259 = vunpack.c.h.b16 %v3066
        %v3260 = vunpack.c.l.b16 %v3067
        %v3261 = vunpack.c.h.b16 %v3067
        %v3262 = vunpack.c.l.b16 %v3068
        %v3263 = vunpack.c.h.b16 %v3068
        %v3264 = vunpack.c.l.b16 %v3069
        %v3265 = vunpack.c.h.b16 %v3069
        %v3266 = vunpack.c.l.b16 %v3070
        %v3267 = vunpack.c.h.b16 %v3070
        %v3268 = vunpack.c.l.b16 %v3071
        %v3269 = vunpack.c.h.b16 %v3071
        %v3270 = vunpack.c.l.b16 %v3072
        %v3271 = vunpack.c.h.b16 %v3072
        %v3272 = vunpack.c.l.b16 %v3073
        %v3273 = vunpack.c.h.b16 %v3073
        %v3274 = vunpack.c.l.b16 %v3074
        %v3275 = vunpack.c.h.b16 %v3074
        %v3276 = vunpack.c.l.b16 %v3075
        %v3277 = vunpack.c.h.b16 %v3075
        %v3278 = vunpack.c.l.b16 %v3076
        %v3279 = vunpack.c.h.b16 %v3076
        %v3280 = vunpack.c.l.b16 %v3077
        %v3281 = vunpack.c.h.b16 %v3077
        %v3282 = vpack.c.b16 %v3156, %v3154
        %v3283 = vpack.c.b16 %v3157, %v3155
        %v3284 = vpack.c.b16 %v3160, %v3158
        %v3285 = vpack.c.b16 %v3161, %v3159
        %v3286 = vpack.c.b16 %v3164, %v3162
        %v3287 = vpack.c.b16 %v3165, %v3163
        %v3288 = vpack.c.b16 %v3168, %v3166
        %v3289 = vpack.c.b16 %v3169, %v3167
        %v3290 = vpack.c.b16 %v3172, %v3170
        %v3291 = vpack.c.b16 %v3173, %v3171
        %v3292 = vpack.c.b16 %v3176, %v3174
        %v3293 = vpack.c.b16 %v3177, %v3175
        %v3294 = vpack.c.b16 %v3180, %v3178
        %v3295 = vpack.c.b16 %v3181, %v3179
        %v3296 = vpack.c.b16 %v3184, %v3182
        %v3297 = vpack.c.b16 %v3185, %v3183
        %v3298 = vpack.c.b16 %v3188, %v3186
        %v3299 = vpack.c.b16 %v3189, %v3187
        %v3300 = vpack.c.b16 %v3192, %v3190
        %v3301 = vpack.c.b16 %v3193, %v3191
        %v3302 = vpack.c.b16 %v3196, %v3194
        %v3303 = vpack.c.b16 %v3197, %v3195
        %v3304 = vpack.c.b16 %v3200, %v3198
        %v3305 = vpack.c.b16 %v3201, %v3199
        %v3306 = vpack.c.b16 %v3204, %v3202
        %v3307 = vpack.c.b16 %v3205, %v3203
        %v3308 = vpack.c.b16 %v3208, %v3206
        %v3309 = vpack.c.b16 %v3209, %v3207
        %v3310 = vpack.c.b16 %v3212, %v3210
        %v3311 = vpack.c.b16 %v3213, %v3211
        %v3312 = vpack.c.b16 %v3216, %v3214
        %v3313 = vpack.c.b16 %v3217, %v3215
        %v3314 = vpack.c.b16 %v3220, %v3218
        %v3315 = vpack.c.b16 %v3221, %v3219
        %v3316 = vpack.c.b16 %v3224, %v3222
        %v3317 = vpack.c.b16 %v3225, %v3223
        %v3318 = vpack.c.b16 %v3228, %v3226
        %v3319 = vpack.c.b16 %v3229, %v3227
        %v3320 = vpack.c.b16 %v3232, %v3230
        %v3321 = vpack.c.b16 %v3233, %v3231
        %v3322 = vpack.c.b16 %v3236, %v3234
        %v3323 = vpack.c.b16 %v3237, %v3235
        %v3324 = vpack.c.b16 %v3240, %v3238
        %v3325 = vpack.c.b16 %v3241, %v3239
        %v3326 = vpack.c.b16 %v3244, %v3242
        %v3327 = vpack.c.b16 %v3245, %v3243
        %v3328 = vpack.c.b16 %v3248, %v3246
        %v3329 = vpack.c.b16 %v3249, %v3247
        %v3330 = vpack.c.b16 %v3252, %v3250
        %v3331 = vpack.c.b16 %v3253, %v3251
        %v3332 = vpack.c.b16 %v3256, %v3254
        %v3333 = vpack.c.b16 %v3257, %v3255
        %v3334 = vpack.c.b16 %v3260, %v3258
        %v3335 = vpack.c.b16 %v3261, %v3259
        %v3336 = vpack.c.b16 %v3264, %v3262
        %v3337 = vpack.c.b16 %v3265, %v3263
        %v3338 = vpack.c.b16 %v3268, %v3266
        %v3339 = vpack.c.b16 %v3269, %v3267
        %v3340 = vpack.c.b16 %v3272, %v3270
        %v3341 = vpack.c.b16 %v3273, %v3271
        %v3342 = vpack.c.b16 %v3276, %v3274
        %v3343 = vpack.c.b16 %v3277, %v3275
        %v3344 = vpack.c.b16 %v3280, %v3278
        %v3345 = vpack.c.b16 %v3281, %v3279
        %3410 = vmatprep.subr.bf16.mxu0 %v3283
        %3411 = vmatpush1.bf16.msra.mxu0 %v3282
        %3412 = vmatprep.subr.bf16.mxu0 %v3285
        %3413 = vmatpush1.bf16.msra.mxu0 %v3284
        %3414 = vmatprep.subr.bf16.mxu0 %v3287
        %3415 = vmatpush1.bf16.msra.mxu0 %v3286
        %3416 = vmatprep.subr.bf16.mxu0 %v3289
        %3417 = vmatpush1.bf16.msra.mxu0 %v3288
        %3418 = vmatprep.subr.bf16.mxu0 %v3291
        %3419 = vmatpush1.bf16.msra.mxu0 %v3290
        %3420 = vmatprep.subr.bf16.mxu0 %v3293
        %3421 = vmatpush1.bf16.msra.mxu0 %v3292
        %3422 = vmatprep.subr.bf16.mxu0 %v3295
        %3423 = vmatpush1.bf16.msra.mxu0 %v3294
        %3424 = vmatprep.subr.bf16.mxu0 %v3297
        %3425 = vmatpush1.bf16.msra.mxu0 %v3296
        %3426 = vmatprep.subr.bf16.mxu0 %v3299
        %3427 = vmatpush1.bf16.msra.mxu0 %v3298
        %3428 = vmatprep.subr.bf16.mxu0 %v3301
        %3429 = vmatpush1.bf16.msra.mxu0 %v3300
        %3430 = vmatprep.subr.bf16.mxu0 %v3303
        %3431 = vmatpush1.bf16.msra.mxu0 %v3302
        %3432 = vmatprep.subr.bf16.mxu0 %v3305
        %3433 = vmatpush1.bf16.msra.mxu0 %v3304
        %3434 = vmatprep.subr.bf16.mxu0 %v3307
        %3435 = vmatpush1.bf16.msra.mxu0 %v3306
        %3436 = vmatprep.subr.bf16.mxu0 %v3309
        %3437 = vmatpush1.bf16.msra.mxu0 %v3308
        %3438 = vmatprep.subr.bf16.mxu0 %v3311
        %3439 = vmatpush1.bf16.msra.mxu0 %v3310
        %3440 = vmatprep.subr.bf16.mxu0 %v3313
        %3441 = vmatpush1.bf16.msra.mxu0 %v3312
        %3442 = vmatprep.mubr.bf16.mxu0 %v3011
        %3443 = vmatmul.mubr.bf16.gmra.mrb[0].mxu0 %v3010
        %v3444 = vpop.f32.mrb[0].mxu0
        %v3445 = vadd.f32 %v3083, %v3444
        %v3446 = vpop.f32.mrb[0].mxu0
        %v3447 = vadd.f32 %v3087, %v3446
        %v3448 = vpop.f32.mrb[0].mxu0
        %v3449 = vpop.f32.mrb[0].mxu0
        %3450 = vdwg.mxu0
        %3451 = vmatprep.subr.bf16.mxu0 %v3315
        %3452 = vmatpush1.bf16.msra.mxu0 %v3314
        %3453 = vmatprep.subr.bf16.mxu0 %v3317
        %3454 = vmatpush1.bf16.msra.mxu0 %v3316
        %3455 = vmatprep.subr.bf16.mxu0 %v3319
        %3456 = vmatpush1.bf16.msra.mxu0 %v3318
        %3457 = vmatprep.subr.bf16.mxu0 %v3321
        %3458 = vmatpush1.bf16.msra.mxu0 %v3320
        %3459 = vmatprep.subr.bf16.mxu0 %v3323
        %3460 = vmatpush1.bf16.msra.mxu0 %v3322
        %3461 = vmatprep.subr.bf16.mxu0 %v3325
        %3462 = vmatpush1.bf16.msra.mxu0 %v3324
        %3463 = vmatprep.subr.bf16.mxu0 %v3327
        %3464 = vmatpush1.bf16.msra.mxu0 %v3326
        %3465 = vmatprep.subr.bf16.mxu0 %v3329
        %3466 = vmatpush1.bf16.msra.mxu0 %v3328
        %3467 = vmatprep.subr.bf16.mxu0 %v3331
        %3468 = vmatpush1.bf16.msra.mxu0 %v3330
        %3469 = vmatprep.subr.bf16.mxu0 %v3333
        %3470 = vmatpush1.bf16.msra.mxu0 %v3332
        %3471 = vmatprep.subr.bf16.mxu0 %v3335
        %3472 = vmatpush1.bf16.msra.mxu0 %v3334
        %3473 = vmatprep.subr.bf16.mxu0 %v3337
        %3474 = vmatpush1.bf16.msra.mxu0 %v3336
        %3475 = vmatprep.subr.bf16.mxu0 %v3339
        %3476 = vmatpush1.bf16.msra.mxu0 %v3338
        %3477 = vmatprep.subr.bf16.mxu0 %v3341
        %3478 = vmatpush1.bf16.msra.mxu0 %v3340
        %3479 = vmatprep.subr.bf16.mxu0 %v3343
        %3480 = vmatpush1.bf16.msra.mxu0 %v3342
        %3481 = vmatprep.subr.bf16.mxu0 %v3345
        %3482 = vmatpush1.bf16.msra.mxu0 %v3344
        %3483 = vmatprep.mubr.bf16.mxu0 %v3013
        %3484 = vmatmul.mubr.bf16.gmra.mrb[0].mxu0 %v3012
        %v3485 = vpop.f32.mrb[0].mxu0
        %v3486 = vadd.f32 %v3445, %v3485
        %v3487 = vpop.f32.mrb[0].mxu0
        %v3488 = vadd.f32 %v3447, %v3487
        %v3489 = vpop.f32.mrb[0].mxu0
        %v3490 = vpop.f32.mrb[0].mxu0
        %3491 = vdwg.mxu0
        %v3492 = vadd.f32 %v2514, %v3486
        %v3493 = vadd.f32 %v2515, %v3488
        %v3494 = vld [vmem:[%s10] sm:$0x3]
        %v3495 = vld [vmem:[%s11] sm:$0x3]
        %v3496 = vadd.f32 %v3492, %v3493
        %3497 = vadd.xlane.f32.xlu0 %v3496
        %v3498 = vpop.xlane.xlu0 %3497
        %v3499 = vmul.f32 %v3498, %v2476
        %v3500 = vsub.f32 %v3492, %v3499
        %v3501 = vsub.f32 %v3493, %v3499
        %v3502 = vmul.f32 %v3500, %v3500
        %v3503 = vmul.f32 %v3501, %v3501
        %v3504 = vadd.f32 %v3502, %v3503
        %3505 = vadd.xlane.f32.xlu0 %v3504
        %v3506 = vpop.xlane.xlu0 %3505
        %v3507 = vmul.f32 %v3506, %v2476
        %v3508 = vadd.f32 %v3507, 1e-05
        %v3509 = vrsqrt.pop %v3508
        %v3510 = vmul.f32 %v3500, %v3509
        %v3511 = vmul.f32 %v3501, %v3509
        %v3513 = vlaneseq
        %v3514 = vshrl.u32 %v3513, 7
        %v3515 = vsub.s32 0, %v3514
        %v3516 = vrot.slane %v3494, %v3515
        %v3517 = vlaneseq
        %v3518 = vshrl.u32 %v3517, 7
        %v3519 = vsub.s32 1, %v3518
        %v3520 = vrot.slane %v3494, %v3519
        %v3523 = vmul.f32 %v3510, %v3516
        %v3524 = vmul.f32 %v3511, %v3520
        %v3526 = vlaneseq
        %v3527 = vshrl.u32 %v3526, 7
        %v3528 = vsub.s32 0, %v3527
        %v3529 = vrot.slane %v3495, %v3528
        %v3530 = vlaneseq
        %v3531 = vshrl.u32 %v3530, 7
        %v3532 = vsub.s32 1, %v3531
        %v3533 = vrot.slane %v3495, %v3532
        %v3536 = vadd.f32 %v3523, %v3529
        %v3537 = vadd.f32 %v3524, %v3533
        %v3538 = vpack.c.bf16 %v3536, %v3536
        %v3539 = vpack.c.bf16 %v3537, %v3537
        %s3540 = scalar_lea.vmem [#allocation7], 768
        %v3541 = vld [vmem:[%s3540] sm:$0xff]
        %v3542 = vld [vmem:[%s3540 + $0x8] sm:$0xff]
        %v3543 = vld [vmem:[%s3540 + $0x10] sm:$0xff]
        %v3544 = vld [vmem:[%s3540 + $0x18] sm:$0xff]
        %v3545 = vld [vmem:[%s3540 + $0x20] sm:$0xff]
        %v3546 = vld [vmem:[%s3540 + $0x28] sm:$0xff]
        %v3547 = vld [vmem:[%s3540 + $0x30] sm:$0xff]
        %v3548 = vld [vmem:[%s3540 + $0x38] sm:$0xff]
        %v3549 = vld [vmem:[%s3540 + $0x40] sm:$0xff]
        %v3550 = vld [vmem:[%s3540 + $0x48] sm:$0xff]
        %v3551 = vld [vmem:[%s3540 + $0x50] sm:$0xff]
        %v3552 = vld [vmem:[%s3540 + $0x58] sm:$0xff]
        %v3553 = vld [vmem:[%s3540 + $0x60] sm:$0xff]
        %v3554 = vld [vmem:[%s3540 + $0x68] sm:$0xff]
        %v3555 = vld [vmem:[%s3540 + $0x70] sm:$0xff]
        %v3556 = vld [vmem:[%s3540 + $0x78] sm:$0xff]
        %v3557 = vld [vmem:[%s3540 + $0x80] sm:$0xff]
        %v3558 = vld [vmem:[%s3540 + $0x88] sm:$0xff]
        %v3559 = vld [vmem:[%s3540 + $0x90] sm:$0xff]
        %v3560 = vld [vmem:[%s3540 + $0x98] sm:$0xff]
        %v3561 = vld [vmem:[%s3540 + $0xa0] sm:$0xff]
        %v3562 = vld [vmem:[%s3540 + $0xa8] sm:$0xff]
        %v3563 = vld [vmem:[%s3540 + $0xb0] sm:$0xff]
        %v3564 = vld [vmem:[%s3540 + $0xb8] sm:$0xff]
        %v3565 = vld [vmem:[%s3540 + $0xc0] sm:$0xff]
        %v3566 = vld [vmem:[%s3540 + $0xc8] sm:$0xff]
        %v3567 = vld [vmem:[%s3540 + $0xd0] sm:$0xff]
        %v3568 = vld [vmem:[%s3540 + $0xd8] sm:$0xff]
        %v3569 = vld [vmem:[%s3540 + $0xe0] sm:$0xff]
        %v3570 = vld [vmem:[%s3540 + $0xe8] sm:$0xff]
        %v3571 = vld [vmem:[%s3540 + $0xf0] sm:$0xff]
        %v3572 = vld [vmem:[%s3540 + $0xf8] sm:$0xff]
        %v3573 = vld [vmem:[%s3540 + $0x100] sm:$0xff]
        %v3574 = vld [vmem:[%s3540 + $0x108] sm:$0xff]
        %v3575 = vld [vmem:[%s3540 + $0x110] sm:$0xff]
        %v3576 = vld [vmem:[%s3540 + $0x118] sm:$0xff]
        %v3577 = vld [vmem:[%s3540 + $0x120] sm:$0xff]
        %v3578 = vld [vmem:[%s3540 + $0x128] sm:$0xff]
        %v3579 = vld [vmem:[%s3540 + $0x130] sm:$0xff]
        %v3580 = vld [vmem:[%s3540 + $0x138] sm:$0xff]
        %v3581 = vld [vmem:[%s3540 + $0x140] sm:$0xff]
        %v3582 = vld [vmem:[%s3540 + $0x148] sm:$0xff]
        %v3583 = vld [vmem:[%s3540 + $0x150] sm:$0xff]
        %v3584 = vld [vmem:[%s3540 + $0x158] sm:$0xff]
        %v3585 = vld [vmem:[%s3540 + $0x160] sm:$0xff]
        %v3586 = vld [vmem:[%s3540 + $0x168] sm:$0xff]
        %v3587 = vld [vmem:[%s3540 + $0x170] sm:$0xff]
        %v3588 = vld [vmem:[%s3540 + $0x178] sm:$0xff]
        %v3589 = vld [vmem:[%s3540 + $0x180] sm:$0xff]
        %v3590 = vld [vmem:[%s3540 + $0x188] sm:$0xff]
        %v3591 = vld [vmem:[%s3540 + $0x190] sm:$0xff]
        %v3592 = vld [vmem:[%s3540 + $0x198] sm:$0xff]
        %v3593 = vld [vmem:[%s3540 + $0x1a0] sm:$0xff]
        %v3594 = vld [vmem:[%s3540 + $0x1a8] sm:$0xff]
        %v3595 = vld [vmem:[%s3540 + $0x1b0] sm:$0xff]
        %v3596 = vld [vmem:[%s3540 + $0x1b8] sm:$0xff]
        %v3597 = vld [vmem:[%s3540 + $0x1c0] sm:$0xff]
        %v3598 = vld [vmem:[%s3540 + $0x1c8] sm:$0xff]
        %v3599 = vld [vmem:[%s3540 + $0x1d0] sm:$0xff]
        %v3600 = vld [vmem:[%s3540 + $0x1d8] sm:$0xff]
        %v3601 = vld [vmem:[%s3540 + $0x1e0] sm:$0xff]
        %v3602 = vld [vmem:[%s3540 + $0x1e8] sm:$0xff]
        %v3603 = vld [vmem:[%s3540 + $0x1f0] sm:$0xff]
        %v3604 = vld [vmem:[%s3540 + $0x1f8] sm:$0xff]
        %v3605 = vld [vmem:[%s3540 + $0x200] sm:$0xff]
        %v3606 = vld [vmem:[%s3540 + $0x208] sm:$0xff]
        %v3607 = vld [vmem:[%s3540 + $0x210] sm:$0xff]
        %v3608 = vld [vmem:[%s3540 + $0x218] sm:$0xff]
        %v3609 = vld [vmem:[%s3540 + $0x220] sm:$0xff]
        %v3610 = vld [vmem:[%s3540 + $0x228] sm:$0xff]
        %v3611 = vld [vmem:[%s3540 + $0x230] sm:$0xff]
        %v3612 = vld [vmem:[%s3540 + $0x238] sm:$0xff]
        %v3613 = vld [vmem:[%s3540 + $0x240] sm:$0xff]
        %v3614 = vld [vmem:[%s3540 + $0x248] sm:$0xff]
        %v3615 = vld [vmem:[%s3540 + $0x250] sm:$0xff]
        %v3616 = vld [vmem:[%s3540 + $0x258] sm:$0xff]
        %v3617 = vld [vmem:[%s3540 + $0x260] sm:$0xff]
        %v3618 = vld [vmem:[%s3540 + $0x268] sm:$0xff]
        %v3619 = vld [vmem:[%s3540 + $0x270] sm:$0xff]
        %v3620 = vld [vmem:[%s3540 + $0x278] sm:$0xff]
        %v3621 = vld [vmem:[%s3540 + $0x280] sm:$0xff]
        %v3622 = vld [vmem:[%s3540 + $0x288] sm:$0xff]
        %v3623 = vld [vmem:[%s3540 + $0x290] sm:$0xff]
        %v3624 = vld [vmem:[%s3540 + $0x298] sm:$0xff]
        %v3625 = vld [vmem:[%s3540 + $0x2a0] sm:$0xff]
        %v3626 = vld [vmem:[%s3540 + $0x2a8] sm:$0xff]
        %v3627 = vld [vmem:[%s3540 + $0x2b0] sm:$0xff]
        %v3628 = vld [vmem:[%s3540 + $0x2b8] sm:$0xff]
        %v3629 = vld [vmem:[%s3540 + $0x2c0] sm:$0xff]
        %v3630 = vld [vmem:[%s3540 + $0x2c8] sm:$0xff]
        %v3631 = vld [vmem:[%s3540 + $0x2d0] sm:$0xff]
        %v3632 = vld [vmem:[%s3540 + $0x2d8] sm:$0xff]
        %v3633 = vld [vmem:[%s3540 + $0x2e0] sm:$0xff]
        %v3634 = vld [vmem:[%s3540 + $0x2e8] sm:$0xff]
        %v3635 = vld [vmem:[%s3540 + $0x2f0] sm:$0xff]
        %v3636 = vld [vmem:[%s3540 + $0x2f8] sm:$0xff]
        %s3637 = scalar_lea.vmem %s5, 6
        %v3638 = vld [vmem:[%s3637] sm:$0x3f]
        %v3640 = vlaneseq
        %v3641 = vshrl.u32 %v3640, 7
        %v3642 = vsub.s32 0, %v3641
        %v3643 = vrot.slane %v3638, %v3642
        %v3644 = vlaneseq
        %v3645 = vshrl.u32 %v3644, 7
        %v3646 = vsub.s32 1, %v3645
        %v3647 = vrot.slane %v3638, %v3646
        %v3648 = vlaneseq
        %v3649 = vshrl.u32 %v3648, 7
        %v3650 = vsub.s32 2, %v3649
        %v3651 = vrot.slane %v3638, %v3650
        %v3652 = vlaneseq
        %v3653 = vshrl.u32 %v3652, 7
        %v3654 = vsub.s32 3, %v3653
        %v3655 = vrot.slane %v3638, %v3654
        %v3656 = vlaneseq
        %v3657 = vshrl.u32 %v3656, 7
        %v3658 = vsub.s32 4, %v3657
        %v3659 = vrot.slane %v3638, %v3658
        %v3660 = vlaneseq
        %v3661 = vshrl.u32 %v3660, 7
        %v3662 = vsub.s32 5, %v3661
        %v3663 = vrot.slane %v3638, %v3662
        %v3766 = vunpack.c.l.b16 %v3541
        %v3767 = vunpack.c.h.b16 %v3541
        %v3768 = vunpack.c.l.b16 %v3542
        %v3769 = vunpack.c.h.b16 %v3542
        %v3770 = vunpack.c.l.b16 %v3543
        %v3771 = vunpack.c.h.b16 %v3543
        %v3772 = vunpack.c.l.b16 %v3544
        %v3773 = vunpack.c.h.b16 %v3544
        %v3774 = vunpack.c.l.b16 %v3545
        %v3775 = vunpack.c.h.b16 %v3545
        %v3776 = vunpack.c.l.b16 %v3546
        %v3777 = vunpack.c.h.b16 %v3546
        %v3778 = vunpack.c.l.b16 %v3547
        %v3779 = vunpack.c.h.b16 %v3547
        %v3780 = vunpack.c.l.b16 %v3548
        %v3781 = vunpack.c.h.b16 %v3548
        %v3782 = vunpack.c.l.b16 %v3549
        %v3783 = vunpack.c.h.b16 %v3549
        %v3784 = vunpack.c.l.b16 %v3550
        %v3785 = vunpack.c.h.b16 %v3550
        %v3786 = vunpack.c.l.b16 %v3551
        %v3787 = vunpack.c.h.b16 %v3551
        %v3788 = vunpack.c.l.b16 %v3552
        %v3789 = vunpack.c.h.b16 %v3552
        %v3790 = vunpack.c.l.b16 %v3553
        %v3791 = vunpack.c.h.b16 %v3553
        %v3792 = vunpack.c.l.b16 %v3554
        %v3793 = vunpack.c.h.b16 %v3554
        %v3794 = vunpack.c.l.b16 %v3555
        %v3795 = vunpack.c.h.b16 %v3555
        %v3796 = vunpack.c.l.b16 %v3556
        %v3797 = vunpack.c.h.b16 %v3556
        %v3798 = vunpack.c.l.b16 %v3557
        %v3799 = vunpack.c.h.b16 %v3557
        %v3800 = vunpack.c.l.b16 %v3558
        %v3801 = vunpack.c.h.b16 %v3558
        %v3802 = vunpack.c.l.b16 %v3559
        %v3803 = vunpack.c.h.b16 %v3559
        %v3804 = vunpack.c.l.b16 %v3560
        %v3805 = vunpack.c.h.b16 %v3560
        %v3806 = vunpack.c.l.b16 %v3561
        %v3807 = vunpack.c.h.b16 %v3561
        %v3808 = vunpack.c.l.b16 %v3562
        %v3809 = vunpack.c.h.b16 %v3562
        %v3810 = vunpack.c.l.b16 %v3563
        %v3811 = vunpack.c.h.b16 %v3563
        %v3812 = vunpack.c.l.b16 %v3564
        %v3813 = vunpack.c.h.b16 %v3564
        %v3814 = vunpack.c.l.b16 %v3565
        %v3815 = vunpack.c.h.b16 %v3565
        %v3816 = vunpack.c.l.b16 %v3566
        %v3817 = vunpack.c.h.b16 %v3566
        %v3818 = vunpack.c.l.b16 %v3567
        %v3819 = vunpack.c.h.b16 %v3567
        %v3820 = vunpack.c.l.b16 %v3568
        %v3821 = vunpack.c.h.b16 %v3568
        %v3822 = vunpack.c.l.b16 %v3569
        %v3823 = vunpack.c.h.b16 %v3569
        %v3824 = vunpack.c.l.b16 %v3570
        %v3825 = vunpack.c.h.b16 %v3570
        %v3826 = vunpack.c.l.b16 %v3571
        %v3827 = vunpack.c.h.b16 %v3571
        %v3828 = vunpack.c.l.b16 %v3572
        %v3829 = vunpack.c.h.b16 %v3572
        %v3830 = vunpack.c.l.b16 %v3573
        %v3831 = vunpack.c.h.b16 %v3573
        %v3832 = vunpack.c.l.b16 %v3574
        %v3833 = vunpack.c.h.b16 %v3574
        %v3834 = vunpack.c.l.b16 %v3575
        %v3835 = vunpack.c.h.b16 %v3575
        %v3836 = vunpack.c.l.b16 %v3576
        %v3837 = vunpack.c.h.b16 %v3576
        %v3838 = vunpack.c.l.b16 %v3577
        %v3839 = vunpack.c.h.b16 %v3577
        %v3840 = vunpack.c.l.b16 %v3578
        %v3841 = vunpack.c.h.b16 %v3578
        %v3842 = vunpack.c.l.b16 %v3579
        %v3843 = vunpack.c.h.b16 %v3579
        %v3844 = vunpack.c.l.b16 %v3580
        %v3845 = vunpack.c.h.b16 %v3580
        %v3846 = vunpack.c.l.b16 %v3581
        %v3847 = vunpack.c.h.b16 %v3581
        %v3848 = vunpack.c.l.b16 %v3582
        %v3849 = vunpack.c.h.b16 %v3582
        %v3850 = vunpack.c.l.b16 %v3583
        %v3851 = vunpack.c.h.b16 %v3583
        %v3852 = vunpack.c.l.b16 %v3584
        %v3853 = vunpack.c.h.b16 %v3584
        %v3854 = vunpack.c.l.b16 %v3585
        %v3855 = vunpack.c.h.b16 %v3585
        %v3856 = vunpack.c.l.b16 %v3586
        %v3857 = vunpack.c.h.b16 %v3586
        %v3858 = vunpack.c.l.b16 %v3587
        %v3859 = vunpack.c.h.b16 %v3587
        %v3860 = vunpack.c.l.b16 %v3588
        %v3861 = vunpack.c.h.b16 %v3588
        %v3862 = vunpack.c.l.b16 %v3589
        %v3863 = vunpack.c.h.b16 %v3589
        %v3864 = vunpack.c.l.b16 %v3590
        %v3865 = vunpack.c.h.b16 %v3590
        %v3866 = vunpack.c.l.b16 %v3591
        %v3867 = vunpack.c.h.b16 %v3591
        %v3868 = vunpack.c.l.b16 %v3592
        %v3869 = vunpack.c.h.b16 %v3592
        %v3870 = vunpack.c.l.b16 %v3593
        %v3871 = vunpack.c.h.b16 %v3593
        %v3872 = vunpack.c.l.b16 %v3594
        %v3873 = vunpack.c.h.b16 %v3594
        %v3874 = vunpack.c.l.b16 %v3595
        %v3875 = vunpack.c.h.b16 %v3595
        %v3876 = vunpack.c.l.b16 %v3596
        %v3877 = vunpack.c.h.b16 %v3596
        %v3878 = vunpack.c.l.b16 %v3597
        %v3879 = vunpack.c.h.b16 %v3597
        %v3880 = vunpack.c.l.b16 %v3598
        %v3881 = vunpack.c.h.b16 %v3598
        %v3882 = vunpack.c.l.b16 %v3599
        %v3883 = vunpack.c.h.b16 %v3599
        %v3884 = vunpack.c.l.b16 %v3600
        %v3885 = vunpack.c.h.b16 %v3600
        %v3886 = vunpack.c.l.b16 %v3601
        %v3887 = vunpack.c.h.b16 %v3601
        %v3888 = vunpack.c.l.b16 %v3602
        %v3889 = vunpack.c.h.b16 %v3602
        %v3890 = vunpack.c.l.b16 %v3603
        %v3891 = vunpack.c.h.b16 %v3603
        %v3892 = vunpack.c.l.b16 %v3604
        %v3893 = vunpack.c.h.b16 %v3604
        %v3894 = vunpack.c.l.b16 %v3605
        %v3895 = vunpack.c.h.b16 %v3605
        %v3896 = vunpack.c.l.b16 %v3606
        %v3897 = vunpack.c.h.b16 %v3606
        %v3898 = vunpack.c.l.b16 %v3607
        %v3899 = vunpack.c.h.b16 %v3607
        %v3900 = vunpack.c.l.b16 %v3608
        %v3901 = vunpack.c.h.b16 %v3608
        %v3902 = vunpack.c.l.b16 %v3609
        %v3903 = vunpack.c.h.b16 %v3609
        %v3904 = vunpack.c.l.b16 %v3610
        %v3905 = vunpack.c.h.b16 %v3610
        %v3906 = vunpack.c.l.b16 %v3611
        %v3907 = vunpack.c.h.b16 %v3611
        %v3908 = vunpack.c.l.b16 %v3612
        %v3909 = vunpack.c.h.b16 %v3612
        %v3910 = vunpack.c.l.b16 %v3613
        %v3911 = vunpack.c.h.b16 %v3613
        %v3912 = vunpack.c.l.b16 %v3614
        %v3913 = vunpack.c.h.b16 %v3614
        %v3914 = vunpack.c.l.b16 %v3615
        %v3915 = vunpack.c.h.b16 %v3615
        %v3916 = vunpack.c.l.b16 %v3616
        %v3917 = vunpack.c.h.b16 %v3616
        %v3918 = vunpack.c.l.b16 %v3617
        %v3919 = vunpack.c.h.b16 %v3617
        %v3920 = vunpack.c.l.b16 %v3618
        %v3921 = vunpack.c.h.b16 %v3618
        %v3922 = vunpack.c.l.b16 %v3619
        %v3923 = vunpack.c.h.b16 %v3619
        %v3924 = vunpack.c.l.b16 %v3620
        %v3925 = vunpack.c.h.b16 %v3620
        %v3926 = vunpack.c.l.b16 %v3621
        %v3927 = vunpack.c.h.b16 %v3621
        %v3928 = vunpack.c.l.b16 %v3622
        %v3929 = vunpack.c.h.b16 %v3622
        %v3930 = vunpack.c.l.b16 %v3623
        %v3931 = vunpack.c.h.b16 %v3623
        %v3932 = vunpack.c.l.b16 %v3624
        %v3933 = vunpack.c.h.b16 %v3624
        %v3934 = vunpack.c.l.b16 %v3625
        %v3935 = vunpack.c.h.b16 %v3625
        %v3936 = vunpack.c.l.b16 %v3626
        %v3937 = vunpack.c.h.b16 %v3626
        %v3938 = vunpack.c.l.b16 %v3627
        %v3939 = vunpack.c.h.b16 %v3627
        %v3940 = vunpack.c.l.b16 %v3628
        %v3941 = vunpack.c.h.b16 %v3628
        %v3942 = vunpack.c.l.b16 %v3629
        %v3943 = vunpack.c.h.b16 %v3629
        %v3944 = vunpack.c.l.b16 %v3630
        %v3945 = vunpack.c.h.b16 %v3630
        %v3946 = vunpack.c.l.b16 %v3631
        %v3947 = vunpack.c.h.b16 %v3631
        %v3948 = vunpack.c.l.b16 %v3632
        %v3949 = vunpack.c.h.b16 %v3632
        %v3950 = vunpack.c.l.b16 %v3633
        %v3951 = vunpack.c.h.b16 %v3633
        %v3952 = vunpack.c.l.b16 %v3634
        %v3953 = vunpack.c.h.b16 %v3634
        %v3954 = vunpack.c.l.b16 %v3635
        %v3955 = vunpack.c.h.b16 %v3635
        %v3956 = vunpack.c.l.b16 %v3636
        %v3957 = vunpack.c.h.b16 %v3636
        %v3958 = vpack.c.b16 %v3772, %v3766
        %v3959 = vpack.c.b16 %v3773, %v3767
        %v3960 = vpack.c.b16 %v3774, %v3768
        %v3961 = vpack.c.b16 %v3775, %v3769
        %v3962 = vpack.c.b16 %v3776, %v3770
        %v3963 = vpack.c.b16 %v3777, %v3771
        %v3964 = vpack.c.b16 %v3784, %v3778
        %v3965 = vpack.c.b16 %v3785, %v3779
        %v3966 = vpack.c.b16 %v3786, %v3780
        %v3967 = vpack.c.b16 %v3787, %v3781
        %v3968 = vpack.c.b16 %v3788, %v3782
        %v3969 = vpack.c.b16 %v3789, %v3783
        %v3970 = vpack.c.b16 %v3796, %v3790
        %v3971 = vpack.c.b16 %v3797, %v3791
        %v3972 = vpack.c.b16 %v3798, %v3792
        %v3973 = vpack.c.b16 %v3799, %v3793
        %v3974 = vpack.c.b16 %v3800, %v3794
        %v3975 = vpack.c.b16 %v3801, %v3795
        %v3976 = vpack.c.b16 %v3808, %v3802
        %v3977 = vpack.c.b16 %v3809, %v3803
        %v3978 = vpack.c.b16 %v3810, %v3804
        %v3979 = vpack.c.b16 %v3811, %v3805
        %v3980 = vpack.c.b16 %v3812, %v3806
        %v3981 = vpack.c.b16 %v3813, %v3807
        %v3982 = vpack.c.b16 %v3820, %v3814
        %v3983 = vpack.c.b16 %v3821, %v3815
        %v3984 = vpack.c.b16 %v3822, %v3816
        %v3985 = vpack.c.b16 %v3823, %v3817
        %v3986 = vpack.c.b16 %v3824, %v3818
        %v3987 = vpack.c.b16 %v3825, %v3819
        %v3988 = vpack.c.b16 %v3832, %v3826
        %v3989 = vpack.c.b16 %v3833, %v3827
        %v3990 = vpack.c.b16 %v3834, %v3828
        %v3991 = vpack.c.b16 %v3835, %v3829
        %v3992 = vpack.c.b16 %v3836, %v3830
        %v3993 = vpack.c.b16 %v3837, %v3831
        %v3994 = vpack.c.b16 %v3844, %v3838
        %v3995 = vpack.c.b16 %v3845, %v3839
        %v3996 = vpack.c.b16 %v3846, %v3840
        %v3997 = vpack.c.b16 %v3847, %v3841
        %v3998 = vpack.c.b16 %v3848, %v3842
        %v3999 = vpack.c.b16 %v3849, %v3843
        %v4000 = vpack.c.b16 %v3856, %v3850
        %v4001 = vpack.c.b16 %v3857, %v3851
        %v4002 = vpack.c.b16 %v3858, %v3852
        %v4003 = vpack.c.b16 %v3859, %v3853
        %v4004 = vpack.c.b16 %v3860, %v3854
        %v4005 = vpack.c.b16 %v3861, %v3855
        %v4006 = vpack.c.b16 %v3868, %v3862
        %v4007 = vpack.c.b16 %v3869, %v3863
        %v4008 = vpack.c.b16 %v3870, %v3864
        %v4009 = vpack.c.b16 %v3871, %v3865
        %v4010 = vpack.c.b16 %v3872, %v3866
        %v4011 = vpack.c.b16 %v3873, %v3867
        %v4012 = vpack.c.b16 %v3880, %v3874
        %v4013 = vpack.c.b16 %v3881, %v3875
        %v4014 = vpack.c.b16 %v3882, %v3876
        %v4015 = vpack.c.b16 %v3883, %v3877
        %v4016 = vpack.c.b16 %v3884, %v3878
        %v4017 = vpack.c.b16 %v3885, %v3879
        %v4018 = vpack.c.b16 %v3892, %v3886
        %v4019 = vpack.c.b16 %v3893, %v3887
        %v4020 = vpack.c.b16 %v3894, %v3888
        %v4021 = vpack.c.b16 %v3895, %v3889
        %v4022 = vpack.c.b16 %v3896, %v3890
        %v4023 = vpack.c.b16 %v3897, %v3891
        %v4024 = vpack.c.b16 %v3904, %v3898
        %v4025 = vpack.c.b16 %v3905, %v3899
        %v4026 = vpack.c.b16 %v3906, %v3900
        %v4027 = vpack.c.b16 %v3907, %v3901
        %v4028 = vpack.c.b16 %v3908, %v3902
        %v4029 = vpack.c.b16 %v3909, %v3903
        %v4030 = vpack.c.b16 %v3916, %v3910
        %v4031 = vpack.c.b16 %v3917, %v3911
        %v4032 = vpack.c.b16 %v3918, %v3912
        %v4033 = vpack.c.b16 %v3919, %v3913
        %v4034 = vpack.c.b16 %v3920, %v3914
        %v4035 = vpack.c.b16 %v3921, %v3915
        %v4036 = vpack.c.b16 %v3928, %v3922
        %v4037 = vpack.c.b16 %v3929, %v3923
        %v4038 = vpack.c.b16 %v3930, %v3924
        %v4039 = vpack.c.b16 %v3931, %v3925
        %v4040 = vpack.c.b16 %v3932, %v3926
        %v4041 = vpack.c.b16 %v3933, %v3927
        %v4042 = vpack.c.b16 %v3940, %v3934
        %v4043 = vpack.c.b16 %v3941, %v3935
        %v4044 = vpack.c.b16 %v3942, %v3936
        %v4045 = vpack.c.b16 %v3943, %v3937
        %v4046 = vpack.c.b16 %v3944, %v3938
        %v4047 = vpack.c.b16 %v3945, %v3939
        %v4048 = vpack.c.b16 %v3952, %v3946
        %v4049 = vpack.c.b16 %v3953, %v3947
        %v4050 = vpack.c.b16 %v3954, %v3948
        %v4051 = vpack.c.b16 %v3955, %v3949
        %v4052 = vpack.c.b16 %v3956, %v3950
        %v4053 = vpack.c.b16 %v3957, %v3951
        %4150 = vmatprep.subr.bf16.mxu0 %v3959
        %4151 = vmatpush1.bf16.msra.mxu0 %v3958
        %4152 = vmatprep.subr.bf16.mxu0 %v3965
        %4153 = vmatpush1.bf16.msra.mxu0 %v3964
        %4154 = vmatprep.subr.bf16.mxu0 %v3971
        %4155 = vmatpush1.bf16.msra.mxu0 %v3970
        %4156 = vmatprep.subr.bf16.mxu0 %v3977
        %4157 = vmatpush1.bf16.msra.mxu0 %v3976
        %4158 = vmatprep.subr.bf16.mxu0 %v3983
        %4159 = vmatpush1.bf16.msra.mxu0 %v3982
        %4160 = vmatprep.subr.bf16.mxu0 %v3989
        %4161 = vmatpush1.bf16.msra.mxu0 %v3988
        %4162 = vmatprep.subr.bf16.mxu0 %v3995
        %4163 = vmatpush1.bf16.msra.mxu0 %v3994
        %4164 = vmatprep.subr.bf16.mxu0 %v4001
        %4165 = vmatpush1.bf16.msra.mxu0 %v4000
        %4166 = vmatprep.subr.bf16.mxu0 %v4007
        %4167 = vmatpush1.bf16.msra.mxu0 %v4006
        %4168 = vmatprep.subr.bf16.mxu0 %v4013
        %4169 = vmatpush1.bf16.msra.mxu0 %v4012
        %4170 = vmatprep.subr.bf16.mxu0 %v4019
        %4171 = vmatpush1.bf16.msra.mxu0 %v4018
        %4172 = vmatprep.subr.bf16.mxu0 %v4025
        %4173 = vmatpush1.bf16.msra.mxu0 %v4024
        %4174 = vmatprep.subr.bf16.mxu0 %v4031
        %4175 = vmatpush1.bf16.msra.mxu0 %v4030
        %4176 = vmatprep.subr.bf16.mxu0 %v4037
        %4177 = vmatpush1.bf16.msra.mxu0 %v4036
        %4178 = vmatprep.subr.bf16.mxu0 %v4043
        %4179 = vmatpush1.bf16.msra.mxu0 %v4042
        %4180 = vmatprep.subr.bf16.mxu0 %v4049
        %4181 = vmatpush1.bf16.msra.mxu0 %v4048
        %4182 = vmatprep.mubr.bf16.mxu0 %v3539
        %4183 = vmatmul.mubr.bf16.gmra.mrb[0].mxu0 %v3538
        %v4184 = vpop.f32.mrb[0].mxu0
        %v4185 = vadd.f32 %v3643, %v4184
        %v4186 = vpop.f32.mrb[0].mxu0
        %v4187 = vadd.f32 %v3647, %v4186
        %v4188 = vpop.f32.mrb[0].mxu0
        %v4189 = vpop.f32.mrb[0].mxu0
        %4190 = vdwg.mxu0
        %4191 = vmatprep.subr.bf16.mxu0 %v3961
        %4192 = vmatpush1.bf16.msra.mxu0 %v3960
        %4193 = vmatprep.subr.bf16.mxu0 %v3967
        %4194 = vmatpush1.bf16.msra.mxu0 %v3966
        %4195 = vmatprep.subr.bf16.mxu0 %v3973
        %4196 = vmatpush1.bf16.msra.mxu0 %v3972
        %4197 = vmatprep.subr.bf16.mxu0 %v3979
        %4198 = vmatpush1.bf16.msra.mxu0 %v3978
        %4199 = vmatprep.subr.bf16.mxu0 %v3985
        %4200 = vmatpush1.bf16.msra.mxu0 %v3984
        %4201 = vmatprep.subr.bf16.mxu0 %v3991
        %4202 = vmatpush1.bf16.msra.mxu0 %v3990
        %4203 = vmatprep.subr.bf16.mxu0 %v3997
        %4204 = vmatpush1.bf16.msra.mxu0 %v3996
        %4205 = vmatprep.subr.bf16.mxu0 %v4003
        %4206 = vmatpush1.bf16.msra.mxu0 %v4002
        %4207 = vmatprep.subr.bf16.mxu0 %v4009
        %4208 = vmatpush1.bf16.msra.mxu0 %v4008
        %4209 = vmatprep.subr.bf16.mxu0 %v4015
        %4210 = vmatpush1.bf16.msra.mxu0 %v4014
        %4211 = vmatprep.subr.bf16.mxu0 %v4021
        %4212 = vmatpush1.bf16.msra.mxu0 %v4020
        %4213 = vmatprep.subr.bf16.mxu0 %v4027
        %4214 = vmatpush1.bf16.msra.mxu0 %v4026
        %4215 = vmatprep.subr.bf16.mxu0 %v4033
        %4216 = vmatpush1.bf16.msra.mxu0 %v4032
        %4217 = vmatprep.subr.bf16.mxu0 %v4039
        %4218 = vmatpush1.bf16.msra.mxu0 %v4038
        %4219 = vmatprep.subr.bf16.mxu0 %v4045
        %4220 = vmatpush1.bf16.msra.mxu0 %v4044
        %4221 = vmatprep.subr.bf16.mxu0 %v4051
        %4222 = vmatpush1.bf16.msra.mxu0 %v4050
        %4223 = vmatprep.mubr.bf16.mxu0 %v3539
        %4224 = vmatmul.mubr.bf16.gmra.mrb[0].mxu0 %v3538
        %v4225 = vpop.f32.mrb[0].mxu0
        %v4226 = vadd.f32 %v3651, %v4225
        %v4227 = vpop.f32.mrb[0].mxu0
        %v4228 = vadd.f32 %v3655, %v4227
        %v4229 = vpop.f32.mrb[0].mxu0
        %v4230 = vpop.f32.mrb[0].mxu0
        %4231 = vdwg.mxu0
        %4232 = vmatprep.subr.bf16.mxu0 %v3963
        %4233 = vmatpush1.bf16.msra.mxu0 %v3962
        %4234 = vmatprep.subr.bf16.mxu0 %v3969
        %4235 = vmatpush1.bf16.msra.mxu0 %v3968
        %4236 = vmatprep.subr.bf16.mxu0 %v3975
        %4237 = vmatpush1.bf16.msra.mxu0 %v3974
        %4238 = vmatprep.subr.bf16.mxu0 %v3981
        %4239 = vmatpush1.bf16.msra.mxu0 %v3980
        %4240 = vmatprep.subr.bf16.mxu0 %v3987
        %4241 = vmatpush1.bf16.msra.mxu0 %v3986
        %4242 = vmatprep.subr.bf16.mxu0 %v3993
        %4243 = vmatpush1.bf16.msra.mxu0 %v3992
        %4244 = vmatprep.subr.bf16.mxu0 %v3999
        %4245 = vmatpush1.bf16.msra.mxu0 %v3998
        %4246 = vmatprep.subr.bf16.mxu0 %v4005
        %4247 = vmatpush1.bf16.msra.mxu0 %v4004
        %4248 = vmatprep.subr.bf16.mxu0 %v4011
        %4249 = vmatpush1.bf16.msra.mxu0 %v4010
        %4250 = vmatprep.subr.bf16.mxu0 %v4017
        %4251 = vmatpush1.bf16.msra.mxu0 %v4016
        %4252 = vmatprep.subr.bf16.mxu0 %v4023
        %4253 = vmatpush1.bf16.msra.mxu0 %v4022
        %4254 = vmatprep.subr.bf16.mxu0 %v4029
        %4255 = vmatpush1.bf16.msra.mxu0 %v4028
        %4256 = vmatprep.subr.bf16.mxu0 %v4035
        %4257 = vmatpush1.bf16.msra.mxu0 %v4034
        %4258 = vmatprep.subr.bf16.mxu0 %v4041
        %4259 = vmatpush1.bf16.msra.mxu0 %v4040
        %4260 = vmatprep.subr.bf16.mxu0 %v4047
        %4261 = vmatpush1.bf16.msra.mxu0 %v4046
        %4262 = vmatprep.subr.bf16.mxu0 %v4053
        %4263 = vmatpush1.bf16.msra.mxu0 %v4052
        %4264 = vmatprep.mubr.bf16.mxu0 %v3539
        %4265 = vmatmul.mubr.bf16.gmra.mrb[0].mxu0 %v3538
        %v4266 = vpop.f32.mrb[0].mxu0
        %v4267 = vadd.f32 %v3659, %v4266
        %v4268 = vpop.f32.mrb[0].mxu0
        %v4269 = vadd.f32 %v3663, %v4268
        %v4270 = vpop.f32.mrb[0].mxu0
        %v4271 = vpop.f32.mrb[0].mxu0
        %4272 = vdwg.mxu0
        %v4274 = vsel %vm1558, %v4185, 0
        %v4277 = vsel %vm1558, %v4226, 0
        %4279 = vmatprep.subr.mxu0 0.0
        %4280 = vmatpush1.xpose.msra.mxu0 %v4277
        %4281 = vmatprep.subr.mxu0 0.0
        %4282 = vmatpush1.xpose.msra.mxu0 0.0
        %4283 = vmatprep.subr.mxu0 0.0
        %4284 = vmatpush1.xpose.msra.mxu0 0.0
        %4285 = vmatprep.subr.mxu0 0.0
        %4286 = vmatpush1.xpose.msra.mxu0 0.0
        %4287 = vmatprep.subr.mxu0 0.0
        %4288 = vmatpush1.xpose.msra.mxu0 0.0
        %4289 = vmatprep.subr.mxu0 0.0
        %4290 = vmatpush1.xpose.msra.mxu0 0.0
        %4291 = vmatprep.subr.mxu0 0.0
        %4292 = vmatpush1.xpose.msra.mxu0 0.0
        %4293 = vmatprep.subr.mxu0 0.0
        %4294 = vmatpush1.xpose.msra.mxu0 0.0
        %4295 = vmatprep.subr.mxu0 0.0
        %4296 = vmatpush1.xpose.msra.mxu0 0.0
        %4297 = vmatprep.subr.mxu0 0.0
        %4298 = vmatpush1.xpose.msra.mxu0 0.0
        %4299 = vmatprep.subr.mxu0 0.0
        %4300 = vmatpush1.xpose.msra.mxu0 0.0
        %4301 = vmatprep.subr.mxu0 0.0
        %4302 = vmatpush1.xpose.msra.mxu0 0.0
        %4303 = vmatprep.subr.mxu0 0.0
        %4304 = vmatpush1.xpose.msra.mxu0 0.0
        %4305 = vmatprep.subr.mxu0 0.0
        %4306 = vmatpush1.xpose.msra.mxu0 0.0
        %4307 = vmatprep.subr.mxu0 0.0
        %4308 = vmatpush1.xpose.msra.mxu0 0.0
        %4309 = vmatprep.subr.mxu0 0.0
        %4310 = vmatpush1.xpose.msra.mxu0 0.0
        %4311 = vmatprep.subr.mxu0 0.0
        %4312 = vmatpush1.xpose.msra.mxu0 0.0
        %4313 = vmatprep.subr.mxu0 0.0
        %4314 = vmatpush1.xpose.msra.mxu0 0.0
        %4315 = vmatprep.subr.mxu0 0.0
        %4316 = vmatpush1.xpose.msra.mxu0 0.0
        %4317 = vmatprep.subr.mxu0 0.0
        %4318 = vmatpush1.xpose.msra.mxu0 0.0
        %4319 = vmatprep.subr.mxu0 0.0
        %4320 = vmatpush1.xpose.msra.mxu0 0.0
        %4321 = vmatprep.subr.mxu0 0.0
        %4322 = vmatpush1.xpose.msra.mxu0 0.0
        %4323 = vmatprep.subr.mxu0 0.0
        %4324 = vmatpush1.xpose.msra.mxu0 0.0
        %4325 = vmatprep.subr.mxu0 0.0
        %4326 = vmatpush1.xpose.msra.mxu0 0.0
        %4327 = vmatprep.subr.mxu0 0.0
        %4328 = vmatpush1.xpose.msra.mxu0 0.0
        %4329 = vmatprep.subr.mxu0 0.0
        %4330 = vmatpush1.xpose.msra.mxu0 0.0
        %4331 = vmatprep.subr.mxu0 0.0
        %4332 = vmatpush1.xpose.msra.mxu0 0.0
        %4333 = vmatprep.subr.mxu0 0.0
        %4334 = vmatpush1.xpose.msra.mxu0 0.0
        %4335 = vmatprep.subr.mxu0 0.0
        %4336 = vmatpush1.xpose.msra.mxu0 0.0
        %4337 = vmatprep.subr.mxu0 0.0
        %4338 = vmatpush1.xpose.msra.mxu0 0.0
        %4339 = vmatprep.subr.mxu0 0.0
        %4340 = vmatpush1.xpose.msra.mxu0 0.0
        %4341 = vmatprep.subr.mxu0 0.0
        %4342 = vmatpush1.xpose.msra.mxu0 0.0
        %4343 = vmatprep.mubr.f32.mxu0 0.0
        %4344 = vmatmul.mubr.f32.gmra.mrb[0].mxu0 %v4274
        %v4345 = vpop.f32.mrb[0].mxu0
        %v4346 = vadd.f32 0.0, %v4345
        %v4347 = vpop.f32.mrb[0].mxu0
        %4348 = vdwg.mxu0
        %v4349 = vsel %vm1635, %v4346, -inf
        %4350 = vmax.xlane.f32.xlu0 %v4349
        %v4351 = vpop.xlane.xlu0 %4350
        %v4352 = vsub.f32 %v4346, %v4351
        %v4353 = vmul.f32 %v4352, 1.442695
        %v4354 = vpow.pop %v4353
        %v4355 = vsel %vm1635, %v4354, 0.0
        %4356 = vadd.xlane.f32.xlu0 %v4355
        %v4357 = vpop.xlane.xlu0 %4356
        %v4358 = vrcp.pop %v4357
        %v4359 = vmul.f32 %v4354, %v4358
        %v4361 = vsel %vm1635, %v4359, 0
        %4363 = vmatprep.subr.mxu0 0.0
        %4364 = vmatpush1.msra.mxu0 %v4267
        %4365 = vmatprep.subr.mxu0 0.0
        %4366 = vmatpush1.msra.mxu0 0.0
        %4367 = vmatprep.subr.mxu0 0.0
        %4368 = vmatpush1.msra.mxu0 0.0
        %4369 = vmatprep.subr.mxu0 0.0
        %4370 = vmatpush1.msra.mxu0 0.0
        %4371 = vmatprep.subr.mxu0 0.0
        %4372 = vmatpush1.msra.mxu0 0.0
        %4373 = vmatprep.subr.mxu0 0.0
        %4374 = vmatpush1.msra.mxu0 0.0
        %4375 = vmatprep.subr.mxu0 0.0
        %4376 = vmatpush1.msra.mxu0 0.0
        %4377 = vmatprep.subr.mxu0 0.0
        %4378 = vmatpush1.msra.mxu0 0.0
        %4379 = vmatprep.subr.mxu0 0.0
        %4380 = vmatpush1.msra.mxu0 0.0
        %4381 = vmatprep.subr.mxu0 0.0
        %4382 = vmatpush1.msra.mxu0 0.0
        %4383 = vmatprep.subr.mxu0 0.0
        %4384 = vmatpush1.msra.mxu0 0.0
        %4385 = vmatprep.subr.mxu0 0.0
        %4386 = vmatpush1.msra.mxu0 0.0
        %4387 = vmatprep.subr.mxu0 0.0
        %4388 = vmatpush1.msra.mxu0 0.0
        %4389 = vmatprep.subr.mxu0 0.0
        %4390 = vmatpush1.msra.mxu0 0.0
        %4391 = vmatprep.subr.mxu0 0.0
        %4392 = vmatpush1.msra.mxu0 0.0
        %4393 = vmatprep.subr.mxu0 0.0
        %4394 = vmatpush1.msra.mxu0 0.0
        %4395 = vmatprep.subr.mxu0 0.0
        %4396 = vmatpush1.msra.mxu0 0.0
        %4397 = vmatprep.subr.mxu0 0.0
        %4398 = vmatpush1.msra.mxu0 0.0
        %4399 = vmatprep.subr.mxu0 0.0
        %4400 = vmatpush1.msra.mxu0 0.0
        %4401 = vmatprep.subr.mxu0 0.0
        %4402 = vmatpush1.msra.mxu0 0.0
        %4403 = vmatprep.subr.mxu0 0.0
        %4404 = vmatpush1.msra.mxu0 0.0
        %4405 = vmatprep.subr.mxu0 0.0
        %4406 = vmatpush1.msra.mxu0 0.0
        %4407 = vmatprep.subr.mxu0 0.0
        %4408 = vmatpush1.msra.mxu0 0.0
        %4409 = vmatprep.subr.mxu0 0.0
        %4410 = vmatpush1.msra.mxu0 0.0
        %4411 = vmatprep.subr.mxu0 0.0
        %4412 = vmatpush1.msra.mxu0 0.0
        %4413 = vmatprep.subr.mxu0 0.0
        %4414 = vmatpush1.msra.mxu0 0.0
        %4415 = vmatprep.subr.mxu0 0.0
        %4416 = vmatpush1.msra.mxu0 0.0
        %4417 = vmatprep.subr.mxu0 0.0
        %4418 = vmatpush1.msra.mxu0 0.0
        %4419 = vmatprep.subr.mxu0 0.0
        %4420 = vmatpush1.msra.mxu0 0.0
        %4421 = vmatprep.subr.mxu0 0.0
        %4422 = vmatpush1.msra.mxu0 0.0
        %4423 = vmatprep.subr.mxu0 0.0
        %4424 = vmatpush1.msra.mxu0 0.0
        %4425 = vmatprep.subr.mxu0 0.0
        %4426 = vmatpush1.msra.mxu0 0.0
        %4427 = vmatprep.mubr.f32.mxu0 0.0
        %4428 = vmatmul.mubr.f32.gmra.mrb[0].mxu0 %v4361
        %v4429 = vpop.f32.mrb[0].mxu0
        %v4430 = vadd.f32 0.0, %v4429
        %v4431 = vpop.f32.mrb[0].mxu0
        %4432 = vdwg.mxu0
        %4433 = vrot.lane.b32.xlu0 %v4185, 64
        %v4434 = vpop.permute.xlu0 %4433
        %4435 = vrot.lane.b32.xlu0 %v4226, 64
        %v4436 = vpop.permute.xlu0 %4435
        %v4437 = vsel %vm1558, %v4434, 0
        %v4439 = vsel %vm1558, %v4436, 0
        %4441 = vmatprep.subr.mxu0 0.0
        %4442 = vmatpush1.xpose.msra.mxu0 %v4439
        %4443 = vmatprep.subr.mxu0 0.0
        %4444 = vmatpush1.xpose.msra.mxu0 0.0
        %4445 = vmatprep.subr.mxu0 0.0
        %4446 = vmatpush1.xpose.msra.mxu0 0.0
        %4447 = vmatprep.subr.mxu0 0.0
        %4448 = vmatpush1.xpose.msra.mxu0 0.0
        %4449 = vmatprep.subr.mxu0 0.0
        %4450 = vmatpush1.xpose.msra.mxu0 0.0
        %4451 = vmatprep.subr.mxu0 0.0
        %4452 = vmatpush1.xpose.msra.mxu0 0.0
        %4453 = vmatprep.subr.mxu0 0.0
        %4454 = vmatpush1.xpose.msra.mxu0 0.0
        %4455 = vmatprep.subr.mxu0 0.0
        %4456 = vmatpush1.xpose.msra.mxu0 0.0
        %4457 = vmatprep.subr.mxu0 0.0
        %4458 = vmatpush1.xpose.msra.mxu0 0.0
        %4459 = vmatprep.subr.mxu0 0.0
        %4460 = vmatpush1.xpose.msra.mxu0 0.0
        %4461 = vmatprep.subr.mxu0 0.0
        %4462 = vmatpush1.xpose.msra.mxu0 0.0
        %4463 = vmatprep.subr.mxu0 0.0
        %4464 = vmatpush1.xpose.msra.mxu0 0.0
        %4465 = vmatprep.subr.mxu0 0.0
        %4466 = vmatpush1.xpose.msra.mxu0 0.0
        %4467 = vmatprep.subr.mxu0 0.0
        %4468 = vmatpush1.xpose.msra.mxu0 0.0
        %4469 = vmatprep.subr.mxu0 0.0
        %4470 = vmatpush1.xpose.msra.mxu0 0.0
        %4471 = vmatprep.subr.mxu0 0.0
        %4472 = vmatpush1.xpose.msra.mxu0 0.0
        %4473 = vmatprep.subr.mxu0 0.0
        %4474 = vmatpush1.xpose.msra.mxu0 0.0
        %4475 = vmatprep.subr.mxu0 0.0
        %4476 = vmatpush1.xpose.msra.mxu0 0.0
        %4477 = vmatprep.subr.mxu0 0.0
        %4478 = vmatpush1.xpose.msra.mxu0 0.0
        %4479 = vmatprep.subr.mxu0 0.0
        %4480 = vmatpush1.xpose.msra.mxu0 0.0
        %4481 = vmatprep.subr.mxu0 0.0
        %4482 = vmatpush1.xpose.msra.mxu0 0.0
        %4483 = vmatprep.subr.mxu0 0.0
        %4484 = vmatpush1.xpose.msra.mxu0 0.0
        %4485 = vmatprep.subr.mxu0 0.0
        %4486 = vmatpush1.xpose.msra.mxu0 0.0
        %4487 = vmatprep.subr.mxu0 0.0
        %4488 = vmatpush1.xpose.msra.mxu0 0.0
        %4489 = vmatprep.subr.mxu0 0.0
        %4490 = vmatpush1.xpose.msra.mxu0 0.0
        %4491 = vmatprep.subr.mxu0 0.0
        %4492 = vmatpush1.xpose.msra.mxu0 0.0
        %4493 = vmatprep.subr.mxu0 0.0
        %4494 = vmatpush1.xpose.msra.mxu0 0.0
        %4495 = vmatprep.subr.mxu0 0.0
        %4496 = vmatpush1.xpose.msra.mxu0 0.0
        %4497 = vmatprep.subr.mxu0 0.0
        %4498 = vmatpush1.xpose.msra.mxu0 0.0
        %4499 = vmatprep.subr.mxu0 0.0
        %4500 = vmatpush1.xpose.msra.mxu0 0.0
        %4501 = vmatprep.subr.mxu0 0.0
        %4502 = vmatpush1.xpose.msra.mxu0 0.0
        %4503 = vmatprep.subr.mxu0 0.0
        %4504 = vmatpush1.xpose.msra.mxu0 0.0
        %4505 = vmatprep.mubr.f32.mxu0 0.0
        %4506 = vmatmul.mubr.f32.gmra.mrb[0].mxu0 %v4437
        %v4507 = vpop.f32.mrb[0].mxu0
        %v4508 = vadd.f32 0.0, %v4507
        %v4509 = vpop.f32.mrb[0].mxu0
        %4510 = vdwg.mxu0
        %v4511 = vsel %vm1635, %v4508, -inf
        %4512 = vmax.xlane.f32.xlu0 %v4511
        %v4513 = vpop.xlane.xlu0 %4512
        %v4514 = vsub.f32 %v4508, %v4513
        %v4515 = vmul.f32 %v4514, 1.442695
        %v4516 = vpow.pop %v4515
        %v4517 = vsel %vm1635, %v4516, 0.0
        %4518 = vadd.xlane.f32.xlu0 %v4517
        %v4519 = vpop.xlane.xlu0 %4518
        %v4520 = vrcp.pop %v4519
        %v4521 = vmul.f32 %v4516, %v4520
        %4523 = vrot.lane.b32.xlu0 %v4267, 64
        %v4524 = vpop.permute.xlu0 %4523
        %v4527 = vsel %vm1635, %v4521, 0
        %4529 = vmatprep.subr.mxu0 0.0
        %4530 = vmatpush1.msra.mxu0 %v4524
        %4531 = vmatprep.subr.mxu0 0.0
        %4532 = vmatpush1.msra.mxu0 0.0
        %4533 = vmatprep.subr.mxu0 0.0
        %4534 = vmatpush1.msra.mxu0 0.0
        %4535 = vmatprep.subr.mxu0 0.0
        %4536 = vmatpush1.msra.mxu0 0.0
        %4537 = vmatprep.subr.mxu0 0.0
        %4538 = vmatpush1.msra.mxu0 0.0
        %4539 = vmatprep.subr.mxu0 0.0
        %4540 = vmatpush1.msra.mxu0 0.0
        %4541 = vmatprep.subr.mxu0 0.0
        %4542 = vmatpush1.msra.mxu0 0.0
        %4543 = vmatprep.subr.mxu0 0.0
        %4544 = vmatpush1.msra.mxu0 0.0
        %4545 = vmatprep.subr.mxu0 0.0
        %4546 = vmatpush1.msra.mxu0 0.0
        %4547 = vmatprep.subr.mxu0 0.0
        %4548 = vmatpush1.msra.mxu0 0.0
        %4549 = vmatprep.subr.mxu0 0.0
        %4550 = vmatpush1.msra.mxu0 0.0
        %4551 = vmatprep.subr.mxu0 0.0
        %4552 = vmatpush1.msra.mxu0 0.0
        %4553 = vmatprep.subr.mxu0 0.0
        %4554 = vmatpush1.msra.mxu0 0.0
        %4555 = vmatprep.subr.mxu0 0.0
        %4556 = vmatpush1.msra.mxu0 0.0
        %4557 = vmatprep.subr.mxu0 0.0
        %4558 = vmatpush1.msra.mxu0 0.0
        %4559 = vmatprep.subr.mxu0 0.0
        %4560 = vmatpush1.msra.mxu0 0.0
        %4561 = vmatprep.subr.mxu0 0.0
        %4562 = vmatpush1.msra.mxu0 0.0
        %4563 = vmatprep.subr.mxu0 0.0
        %4564 = vmatpush1.msra.mxu0 0.0
        %4565 = vmatprep.subr.mxu0 0.0
        %4566 = vmatpush1.msra.mxu0 0.0
        %4567 = vmatprep.subr.mxu0 0.0
        %4568 = vmatpush1.msra.mxu0 0.0
        %4569 = vmatprep.subr.mxu0 0.0
        %4570 = vmatpush1.msra.mxu0 0.0
        %4571 = vmatprep.subr.mxu0 0.0
        %4572 = vmatpush1.msra.mxu0 0.0
        %4573 = vmatprep.subr.mxu0 0.0
        %4574 = vmatpush1.msra.mxu0 0.0
        %4575 = vmatprep.subr.mxu0 0.0
        %4576 = vmatpush1.msra.mxu0 0.0
        %4577 = vmatprep.subr.mxu0 0.0
        %4578 = vmatpush1.msra.mxu0 0.0
        %4579 = vmatprep.subr.mxu0 0.0
        %4580 = vmatpush1.msra.mxu0 0.0
        %4581 = vmatprep.subr.mxu0 0.0
        %4582 = vmatpush1.msra.mxu0 0.0
        %4583 = vmatprep.subr.mxu0 0.0
        %4584 = vmatpush1.msra.mxu0 0.0
        %4585 = vmatprep.subr.mxu0 0.0
        %4586 = vmatpush1.msra.mxu0 0.0
        %4587 = vmatprep.subr.mxu0 0.0
        %4588 = vmatpush1.msra.mxu0 0.0
        %4589 = vmatprep.subr.mxu0 0.0
        %4590 = vmatpush1.msra.mxu0 0.0
        %4591 = vmatprep.subr.mxu0 0.0
        %4592 = vmatpush1.msra.mxu0 0.0
        %4593 = vmatprep.mubr.f32.mxu0 0.0
        %4594 = vmatmul.mubr.f32.gmra.mrb[0].mxu0 %v4527
        %v4595 = vpop.f32.mrb[0].mxu0
        %v4596 = vadd.f32 0.0, %v4595
        %v4597 = vpop.f32.mrb[0].mxu0
        %4598 = vdwg.mxu0
        %v4600 = vsel %vm1558, %v4187, 0
        %v4603 = vsel %vm1558, %v4228, 0
        %4605 = vmatprep.subr.mxu0 0.0
        %4606 = vmatpush1.xpose.msra.mxu0 %v4603
        %4607 = vmatprep.subr.mxu0 0.0
        %4608 = vmatpush1.xpose.msra.mxu0 0.0
        %4609 = vmatprep.subr.mxu0 0.0
        %4610 = vmatpush1.xpose.msra.mxu0 0.0
        %4611 = vmatprep.subr.mxu0 0.0
        %4612 = vmatpush1.xpose.msra.mxu0 0.0
        %4613 = vmatprep.subr.mxu0 0.0
        %4614 = vmatpush1.xpose.msra.mxu0 0.0
        %4615 = vmatprep.subr.mxu0 0.0
        %4616 = vmatpush1.xpose.msra.mxu0 0.0
        %4617 = vmatprep.subr.mxu0 0.0
        %4618 = vmatpush1.xpose.msra.mxu0 0.0
        %4619 = vmatprep.subr.mxu0 0.0
        %4620 = vmatpush1.xpose.msra.mxu0 0.0
        %4621 = vmatprep.subr.mxu0 0.0
        %4622 = vmatpush1.xpose.msra.mxu0 0.0
        %4623 = vmatprep.subr.mxu0 0.0
        %4624 = vmatpush1.xpose.msra.mxu0 0.0
        %4625 = vmatprep.subr.mxu0 0.0
        %4626 = vmatpush1.xpose.msra.mxu0 0.0
        %4627 = vmatprep.subr.mxu0 0.0
        %4628 = vmatpush1.xpose.msra.mxu0 0.0
        %4629 = vmatprep.subr.mxu0 0.0
        %4630 = vmatpush1.xpose.msra.mxu0 0.0
        %4631 = vmatprep.subr.mxu0 0.0
        %4632 = vmatpush1.xpose.msra.mxu0 0.0
        %4633 = vmatprep.subr.mxu0 0.0
        %4634 = vmatpush1.xpose.msra.mxu0 0.0
        %4635 = vmatprep.subr.mxu0 0.0
        %4636 = vmatpush1.xpose.msra.mxu0 0.0
        %4637 = vmatprep.subr.mxu0 0.0
        %4638 = vmatpush1.xpose.msra.mxu0 0.0
        %4639 = vmatprep.subr.mxu0 0.0
        %4640 = vmatpush1.xpose.msra.mxu0 0.0
        %4641 = vmatprep.subr.mxu0 0.0
        %4642 = vmatpush1.xpose.msra.mxu0 0.0
        %4643 = vmatprep.subr.mxu0 0.0
        %4644 = vmatpush1.xpose.msra.mxu0 0.0
        %4645 = vmatprep.subr.mxu0 0.0
        %4646 = vmatpush1.xpose.msra.mxu0 0.0
        %4647 = vmatprep.subr.mxu0 0.0
        %4648 = vmatpush1.xpose.msra.mxu0 0.0
        %4649 = vmatprep.subr.mxu0 0.0
        %4650 = vmatpush1.xpose.msra.mxu0 0.0
        %4651 = vmatprep.subr.mxu0 0.0
        %4652 = vmatpush1.xpose.msra.mxu0 0.0
        %4653 = vmatprep.subr.mxu0 0.0
        %4654 = vmatpush1.xpose.msra.mxu0 0.0
        %4655 = vmatprep.subr.mxu0 0.0
        %4656 = vmatpush1.xpose.msra.mxu0 0.0
        %4657 = vmatprep.subr.mxu0 0.0
        %4658 = vmatpush1.xpose.msra.mxu0 0.0
        %4659 = vmatprep.subr.mxu0 0.0
        %4660 = vmatpush1.xpose.msra.mxu0 0.0
        %4661 = vmatprep.subr.mxu0 0.0
        %4662 = vmatpush1.xpose.msra.mxu0 0.0
        %4663 = vmatprep.subr.mxu0 0.0
        %4664 = vmatpush1.xpose.msra.mxu0 0.0
        %4665 = vmatprep.subr.mxu0 0.0
        %4666 = vmatpush1.xpose.msra.mxu0 0.0
        %4667 = vmatprep.subr.mxu0 0.0
        %4668 = vmatpush1.xpose.msra.mxu0 0.0
        %4669 = vmatprep.mubr.f32.mxu0 0.0
        %4670 = vmatmul.mubr.f32.gmra.mrb[0].mxu0 %v4600
        %v4671 = vpop.f32.mrb[0].mxu0
        %v4672 = vadd.f32 0.0, %v4671
        %v4673 = vpop.f32.mrb[0].mxu0
        %4674 = vdwg.mxu0
        %v4675 = vsel %vm1635, %v4672, -inf
        %4676 = vmax.xlane.f32.xlu0 %v4675
        %v4677 = vpop.xlane.xlu0 %4676
        %v4678 = vsub.f32 %v4672, %v4677
        %v4679 = vmul.f32 %v4678, 1.442695
        %v4680 = vpow.pop %v4679
        %v4681 = vsel %vm1635, %v4680, 0.0
        %4682 = vadd.xlane.f32.xlu0 %v4681
        %v4683 = vpop.xlane.xlu0 %4682
        %v4684 = vrcp.pop %v4683
        %v4685 = vmul.f32 %v4680, %v4684
        %v4687 = vsel %vm1635, %v4685, 0
        %4689 = vmatprep.subr.mxu0 0.0
        %4690 = vmatpush1.msra.mxu0 %v4269
        %4691 = vmatprep.subr.mxu0 0.0
        %4692 = vmatpush1.msra.mxu0 0.0
        %4693 = vmatprep.subr.mxu0 0.0
        %4694 = vmatpush1.msra.mxu0 0.0
        %4695 = vmatprep.subr.mxu0 0.0
        %4696 = vmatpush1.msra.mxu0 0.0
        %4697 = vmatprep.subr.mxu0 0.0
        %4698 = vmatpush1.msra.mxu0 0.0
        %4699 = vmatprep.subr.mxu0 0.0
        %4700 = vmatpush1.msra.mxu0 0.0
        %4701 = vmatprep.subr.mxu0 0.0
        %4702 = vmatpush1.msra.mxu0 0.0
        %4703 = vmatprep.subr.mxu0 0.0
        %4704 = vmatpush1.msra.mxu0 0.0
        %4705 = vmatprep.subr.mxu0 0.0
        %4706 = vmatpush1.msra.mxu0 0.0
        %4707 = vmatprep.subr.mxu0 0.0
        %4708 = vmatpush1.msra.mxu0 0.0
        %4709 = vmatprep.subr.mxu0 0.0
        %4710 = vmatpush1.msra.mxu0 0.0
        %4711 = vmatprep.subr.mxu0 0.0
        %4712 = vmatpush1.msra.mxu0 0.0
        %4713 = vmatprep.subr.mxu0 0.0
        %4714 = vmatpush1.msra.mxu0 0.0
        %4715 = vmatprep.subr.mxu0 0.0
        %4716 = vmatpush1.msra.mxu0 0.0
        %4717 = vmatprep.subr.mxu0 0.0
        %4718 = vmatpush1.msra.mxu0 0.0
        %4719 = vmatprep.subr.mxu0 0.0
        %4720 = vmatpush1.msra.mxu0 0.0
        %4721 = vmatprep.subr.mxu0 0.0
        %4722 = vmatpush1.msra.mxu0 0.0
        %4723 = vmatprep.subr.mxu0 0.0
        %4724 = vmatpush1.msra.mxu0 0.0
        %4725 = vmatprep.subr.mxu0 0.0
        %4726 = vmatpush1.msra.mxu0 0.0
        %4727 = vmatprep.subr.mxu0 0.0
        %4728 = vmatpush1.msra.mxu0 0.0
        %4729 = vmatprep.subr.mxu0 0.0
        %4730 = vmatpush1.msra.mxu0 0.0
        %4731 = vmatprep.subr.mxu0 0.0
        %4732 = vmatpush1.msra.mxu0 0.0
        %4733 = vmatprep.subr.mxu0 0.0
        %4734 = vmatpush1.msra.mxu0 0.0
        %4735 = vmatprep.subr.mxu0 0.0
        %4736 = vmatpush1.msra.mxu0 0.0
        %4737 = vmatprep.subr.mxu0 0.0
        %4738 = vmatpush1.msra.mxu0 0.0
        %4739 = vmatprep.subr.mxu0 0.0
        %4740 = vmatpush1.msra.mxu0 0.0
        %4741 = vmatprep.subr.mxu0 0.0
        %4742 = vmatpush1.msra.mxu0 0.0
        %4743 = vmatprep.subr.mxu0 0.0
        %4744 = vmatpush1.msra.mxu0 0.0
        %4745 = vmatprep.subr.mxu0 0.0
        %4746 = vmatpush1.msra.mxu0 0.0
        %4747 = vmatprep.subr.mxu0 0.0
        %4748 = vmatpush1.msra.mxu0 0.0
        %4749 = vmatprep.subr.mxu0 0.0
        %4750 = vmatpush1.msra.mxu0 0.0
        %4751 = vmatprep.subr.mxu0 0.0
        %4752 = vmatpush1.msra.mxu0 0.0
        %4753 = vmatprep.mubr.f32.mxu0 0.0
        %4754 = vmatmul.mubr.f32.gmra.mrb[0].mxu0 %v4687
        %v4755 = vpop.f32.mrb[0].mxu0
        %v4756 = vadd.f32 0.0, %v4755
        %v4757 = vpop.f32.mrb[0].mxu0
        %4758 = vdwg.mxu0
        %4759 = vrot.lane.b32.xlu0 %v4187, 64
        %v4760 = vpop.permute.xlu0 %4759
        %4761 = vrot.lane.b32.xlu0 %v4228, 64
        %v4762 = vpop.permute.xlu0 %4761
        %v4763 = vsel %vm1558, %v4760, 0
        %v4765 = vsel %vm1558, %v4762, 0
        %4767 = vmatprep.subr.mxu0 0.0
        %4768 = vmatpush1.xpose.msra.mxu0 %v4765
        %4769 = vmatprep.subr.mxu0 0.0
        %4770 = vmatpush1.xpose.msra.mxu0 0.0
        %4771 = vmatprep.subr.mxu0 0.0
        %4772 = vmatpush1.xpose.msra.mxu0 0.0
        %4773 = vmatprep.subr.mxu0 0.0
        %4774 = vmatpush1.xpose.msra.mxu0 0.0
        %4775 = vmatprep.subr.mxu0 0.0
        %4776 = vmatpush1.xpose.msra.mxu0 0.0
        %4777 = vmatprep.subr.mxu0 0.0
        %4778 = vmatpush1.xpose.msra.mxu0 0.0
        %4779 = vmatprep.subr.mxu0 0.0
        %4780 = vmatpush1.xpose.msra.mxu0 0.0
        %4781 = vmatprep.subr.mxu0 0.0
        %4782 = vmatpush1.xpose.msra.mxu0 0.0
        %4783 = vmatprep.subr.mxu0 0.0
        %4784 = vmatpush1.xpose.msra.mxu0 0.0
        %4785 = vmatprep.subr.mxu0 0.0
        %4786 = vmatpush1.xpose.msra.mxu0 0.0
        %4787 = vmatprep.subr.mxu0 0.0
        %4788 = vmatpush1.xpose.msra.mxu0 0.0
        %4789 = vmatprep.subr.mxu0 0.0
        %4790 = vmatpush1.xpose.msra.mxu0 0.0
        %4791 = vmatprep.subr.mxu0 0.0
        %4792 = vmatpush1.xpose.msra.mxu0 0.0
        %4793 = vmatprep.subr.mxu0 0.0
        %4794 = vmatpush1.xpose.msra.mxu0 0.0
        %4795 = vmatprep.subr.mxu0 0.0
        %4796 = vmatpush1.xpose.msra.mxu0 0.0
        %4797 = vmatprep.subr.mxu0 0.0
        %4798 = vmatpush1.xpose.msra.mxu0 0.0
        %4799 = vmatprep.subr.mxu0 0.0
        %4800 = vmatpush1.xpose.msra.mxu0 0.0
        %4801 = vmatprep.subr.mxu0 0.0
        %4802 = vmatpush1.xpose.msra.mxu0 0.0
        %4803 = vmatprep.subr.mxu0 0.0
        %4804 = vmatpush1.xpose.msra.mxu0 0.0
        %4805 = vmatprep.subr.mxu0 0.0
        %4806 = vmatpush1.xpose.msra.mxu0 0.0
        %4807 = vmatprep.subr.mxu0 0.0
        %4808 = vmatpush1.xpose.msra.mxu0 0.0
        %4809 = vmatprep.subr.mxu0 0.0
        %4810 = vmatpush1.xpose.msra.mxu0 0.0
        %4811 = vmatprep.subr.mxu0 0.0
        %4812 = vmatpush1.xpose.msra.mxu0 0.0
        %4813 = vmatprep.subr.mxu0 0.0
        %4814 = vmatpush1.xpose.msra.mxu0 0.0
        %4815 = vmatprep.subr.mxu0 0.0
        %4816 = vmatpush1.xpose.msra.mxu0 0.0
        %4817 = vmatprep.subr.mxu0 0.0
        %4818 = vmatpush1.xpose.msra.mxu0 0.0
        %4819 = vmatprep.subr.mxu0 0.0
        %4820 = vmatpush1.xpose.msra.mxu0 0.0
        %4821 = vmatprep.subr.mxu0 0.0
        %4822 = vmatpush1.xpose.msra.mxu0 0.0
        %4823 = vmatprep.subr.mxu0 0.0
        %4824 = vmatpush1.xpose.msra.mxu0 0.0
        %4825 = vmatprep.subr.mxu0 0.0
        %4826 = vmatpush1.xpose.msra.mxu0 0.0
        %4827 = vmatprep.subr.mxu0 0.0
        %4828 = vmatpush1.xpose.msra.mxu0 0.0
        %4829 = vmatprep.subr.mxu0 0.0
        %4830 = vmatpush1.xpose.msra.mxu0 0.0
        %4831 = vmatprep.mubr.f32.mxu0 0.0
        %4832 = vmatmul.mubr.f32.gmra.mrb[0].mxu0 %v4763
        %v4833 = vpop.f32.mrb[0].mxu0
        %v4834 = vadd.f32 0.0, %v4833
        %v4835 = vpop.f32.mrb[0].mxu0
        %4836 = vdwg.mxu0
        %v4837 = vsel %vm1635, %v4834, -inf
        %4838 = vmax.xlane.f32.xlu0 %v4837
        %v4839 = vpop.xlane.xlu0 %4838
        %v4840 = vsub.f32 %v4834, %v4839
        %v4841 = vmul.f32 %v4840, 1.442695
        %v4842 = vpow.pop %v4841
        %v4843 = vsel %vm1635, %v4842, 0.0
        %4844 = vadd.xlane.f32.xlu0 %v4843
        %v4845 = vpop.xlane.xlu0 %4844
        %v4846 = vrcp.pop %v4845
        %v4847 = vmul.f32 %v4842, %v4846
        %4849 = vrot.lane.b32.xlu0 %v4269, 64
        %v4850 = vpop.permute.xlu0 %4849
        %v4853 = vsel %vm1635, %v4847, 0
        %4855 = vmatprep.subr.mxu0 0.0
        %4856 = vmatpush1.msra.mxu0 %v4850
        %4857 = vmatprep.subr.mxu0 0.0
        %4858 = vmatpush1.msra.mxu0 0.0
        %4859 = vmatprep.subr.mxu0 0.0
        %4860 = vmatpush1.msra.mxu0 0.0
        %4861 = vmatprep.subr.mxu0 0.0
        %4862 = vmatpush1.msra.mxu0 0.0
        %4863 = vmatprep.subr.mxu0 0.0
        %4864 = vmatpush1.msra.mxu0 0.0
        %4865 = vmatprep.subr.mxu0 0.0
        %4866 = vmatpush1.msra.mxu0 0.0
        %4867 = vmatprep.subr.mxu0 0.0
        %4868 = vmatpush1.msra.mxu0 0.0
        %4869 = vmatprep.subr.mxu0 0.0
        %4870 = vmatpush1.msra.mxu0 0.0
        %4871 = vmatprep.subr.mxu0 0.0
        %4872 = vmatpush1.msra.mxu0 0.0
        %4873 = vmatprep.subr.mxu0 0.0
        %4874 = vmatpush1.msra.mxu0 0.0
        %4875 = vmatprep.subr.mxu0 0.0
        %4876 = vmatpush1.msra.mxu0 0.0
        %4877 = vmatprep.subr.mxu0 0.0
        %4878 = vmatpush1.msra.mxu0 0.0
        %4879 = vmatprep.subr.mxu0 0.0
        %4880 = vmatpush1.msra.mxu0 0.0
        %4881 = vmatprep.subr.mxu0 0.0
        %4882 = vmatpush1.msra.mxu0 0.0
        %4883 = vmatprep.subr.mxu0 0.0
        %4884 = vmatpush1.msra.mxu0 0.0
        %4885 = vmatprep.subr.mxu0 0.0
        %4886 = vmatpush1.msra.mxu0 0.0
        %4887 = vmatprep.subr.mxu0 0.0
        %4888 = vmatpush1.msra.mxu0 0.0
        %4889 = vmatprep.subr.mxu0 0.0
        %4890 = vmatpush1.msra.mxu0 0.0
        %4891 = vmatprep.subr.mxu0 0.0
        %4892 = vmatpush1.msra.mxu0 0.0
        %4893 = vmatprep.subr.mxu0 0.0
        %4894 = vmatpush1.msra.mxu0 0.0
        %4895 = vmatprep.subr.mxu0 0.0
        %4896 = vmatpush1.msra.mxu0 0.0
        %4897 = vmatprep.subr.mxu0 0.0
        %4898 = vmatpush1.msra.mxu0 0.0
        %4899 = vmatprep.subr.mxu0 0.0
        %4900 = vmatpush1.msra.mxu0 0.0
        %4901 = vmatprep.subr.mxu0 0.0
        %4902 = vmatpush1.msra.mxu0 0.0
        %4903 = vmatprep.subr.mxu0 0.0
        %4904 = vmatpush1.msra.mxu0 0.0
        %4905 = vmatprep.subr.mxu0 0.0
        %4906 = vmatpush1.msra.mxu0 0.0
        %4907 = vmatprep.subr.mxu0 0.0
        %4908 = vmatpush1.msra.mxu0 0.0
        %4909 = vmatprep.subr.mxu0 0.0
        %4910 = vmatpush1.msra.mxu0 0.0
        %4911 = vmatprep.subr.mxu0 0.0
        %4912 = vmatpush1.msra.mxu0 0.0
        %4913 = vmatprep.subr.mxu0 0.0
        %4914 = vmatpush1.msra.mxu0 0.0
        %4915 = vmatprep.subr.mxu0 0.0
        %4916 = vmatpush1.msra.mxu0 0.0
        %4917 = vmatprep.subr.mxu0 0.0
        %4918 = vmatpush1.msra.mxu0 0.0
        %4919 = vmatprep.mubr.f32.mxu0 0.0
        %4920 = vmatmul.mubr.f32.gmra.mrb[0].mxu0 %v4853
        %v4921 = vpop.f32.mrb[0].mxu0
        %v4922 = vadd.f32 0.0, %v4921
        %v4923 = vpop.f32.mrb[0].mxu0
        %4924 = vdwg.mxu0
        %4926 = vrot.lane.b32.xlu0 %v4596, 64
        %v4927 = vpop.permute.xlu0 %4926
        %4930 = vrot.lane.b32.xlu0 %v4922, 64
        %v4931 = vpop.permute.xlu0 %4930
        %v4933 = vsel %vm1558, %v4430, %v4927
        %v4934 = vsel %vm1558, %v4756, %v4931
        %v4935 = vpack.c.bf16 %v4933, %v4933
        %v4936 = vpack.c.bf16 %v4934, %v4934
        %s4937 = scalar_lea.vmem [#allocation8], 256
        %v4938 = vld [vmem:[%s4937] sm:$0xff]
        %v4939 = vld [vmem:[%s4937 + $0x8] sm:$0xff]
        %v4940 = vld [vmem:[%s4937 + $0x10] sm:$0xff]
        %v4941 = vld [vmem:[%s4937 + $0x18] sm:$0xff]
        %v4942 = vld [vmem:[%s4937 + $0x20] sm:$0xff]
        %v4943 = vld [vmem:[%s4937 + $0x28] sm:$0xff]
        %v4944 = vld [vmem:[%s4937 + $0x30] sm:$0xff]
        %v4945 = vld [vmem:[%s4937 + $0x38] sm:$0xff]
        %v4946 = vld [vmem:[%s4937 + $0x40] sm:$0xff]
        %v4947 = vld [vmem:[%s4937 + $0x48] sm:$0xff]
        %v4948 = vld [vmem:[%s4937 + $0x50] sm:$0xff]
        %v4949 = vld [vmem:[%s4937 + $0x58] sm:$0xff]
        %v4950 = vld [vmem:[%s4937 + $0x60] sm:$0xff]
        %v4951 = vld [vmem:[%s4937 + $0x68] sm:$0xff]
        %v4952 = vld [vmem:[%s4937 + $0x70] sm:$0xff]
        %v4953 = vld [vmem:[%s4937 + $0x78] sm:$0xff]
        %v4954 = vld [vmem:[%s4937 + $0x80] sm:$0xff]
        %v4955 = vld [vmem:[%s4937 + $0x88] sm:$0xff]
        %v4956 = vld [vmem:[%s4937 + $0x90] sm:$0xff]
        %v4957 = vld [vmem:[%s4937 + $0x98] sm:$0xff]
        %v4958 = vld [vmem:[%s4937 + $0xa0] sm:$0xff]
        %v4959 = vld [vmem:[%s4937 + $0xa8] sm:$0xff]
        %v4960 = vld [vmem:[%s4937 + $0xb0] sm:$0xff]
        %v4961 = vld [vmem:[%s4937 + $0xb8] sm:$0xff]
        %v4962 = vld [vmem:[%s4937 + $0xc0] sm:$0xff]
        %v4963 = vld [vmem:[%s4937 + $0xc8] sm:$0xff]
        %v4964 = vld [vmem:[%s4937 + $0xd0] sm:$0xff]
        %v4965 = vld [vmem:[%s4937 + $0xd8] sm:$0xff]
        %v4966 = vld [vmem:[%s4937 + $0xe0] sm:$0xff]
        %v4967 = vld [vmem:[%s4937 + $0xe8] sm:$0xff]
        %v4968 = vld [vmem:[%s4937 + $0xf0] sm:$0xff]
        %v4969 = vld [vmem:[%s4937 + $0xf8] sm:$0xff]
        %s4970 = scalar_lea.vmem %s7, 2
        %v4971 = vld [vmem:[%s4970] sm:$0x3]
        %v4973 = vlaneseq
        %v4974 = vshrl.u32 %v4973, 7
        %v4975 = vsub.s32 0, %v4974
        %v4976 = vrot.slane %v4971, %v4975
        %v4977 = vlaneseq
        %v4978 = vshrl.u32 %v4977, 7
        %v4979 = vsub.s32 1, %v4978
        %v4980 = vrot.slane %v4971, %v4979
        %v5015 = vunpack.c.l.b16 %v4938
        %v5016 = vunpack.c.h.b16 %v4938
        %v5017 = vunpack.c.l.b16 %v4939
        %v5018 = vunpack.c.h.b16 %v4939
        %v5019 = vunpack.c.l.b16 %v4940
        %v5020 = vunpack.c.h.b16 %v4940
        %v5021 = vunpack.c.l.b16 %v4941
        %v5022 = vunpack.c.h.b16 %v4941
        %v5023 = vunpack.c.l.b16 %v4942
        %v5024 = vunpack.c.h.b16 %v4942
        %v5025 = vunpack.c.l.b16 %v4943
        %v5026 = vunpack.c.h.b16 %v4943
        %v5027 = vunpack.c.l.b16 %v4944
        %v5028 = vunpack.c.h.b16 %v4944
        %v5029 = vunpack.c.l.b16 %v4945
        %v5030 = vunpack.c.h.b16 %v4945
        %v5031 = vunpack.c.l.b16 %v4946
        %v5032 = vunpack.c.h.b16 %v4946
        %v5033 = vunpack.c.l.b16 %v4947
        %v5034 = vunpack.c.h.b16 %v4947
        %v5035 = vunpack.c.l.b16 %v4948
        %v5036 = vunpack.c.h.b16 %v4948
        %v5037 = vunpack.c.l.b16 %v4949
        %v5038 = vunpack.c.h.b16 %v4949
        %v5039 = vunpack.c.l.b16 %v4950
        %v5040 = vunpack.c.h.b16 %v4950
        %v5041 = vunpack.c.l.b16 %v4951
        %v5042 = vunpack.c.h.b16 %v4951
        %v5043 = vunpack.c.l.b16 %v4952
        %v5044 = vunpack.c.h.b16 %v4952
        %v5045 = vunpack.c.l.b16 %v4953
        %v5046 = vunpack.c.h.b16 %v4953
        %v5047 = vunpack.c.l.b16 %v4954
        %v5048 = vunpack.c.h.b16 %v4954
        %v5049 = vunpack.c.l.b16 %v4955
        %v5050 = vunpack.c.h.b16 %v4955
        %v5051 = vunpack.c.l.b16 %v4956
        %v5052 = vunpack.c.h.b16 %v4956
        %v5053 = vunpack.c.l.b16 %v4957
        %v5054 = vunpack.c.h.b16 %v4957
        %v5055 = vunpack.c.l.b16 %v4958
        %v5056 = vunpack.c.h.b16 %v4958
        %v5057 = vunpack.c.l.b16 %v4959
        %v5058 = vunpack.c.h.b16 %v4959
        %v5059 = vunpack.c.l.b16 %v4960
        %v5060 = vunpack.c.h.b16 %v4960
        %v5061 = vunpack.c.l.b16 %v4961
        %v5062 = vunpack.c.h.b16 %v4961
        %v5063 = vunpack.c.l.b16 %v4962
        %v5064 = vunpack.c.h.b16 %v4962
        %v5065 = vunpack.c.l.b16 %v4963
        %v5066 = vunpack.c.h.b16 %v4963
        %v5067 = vunpack.c.l.b16 %v4964
        %v5068 = vunpack.c.h.b16 %v4964
        %v5069 = vunpack.c.l.b16 %v4965
        %v5070 = vunpack.c.h.b16 %v4965
        %v5071 = vunpack.c.l.b16 %v4966
        %v5072 = vunpack.c.h.b16 %v4966
        %v5073 = vunpack.c.l.b16 %v4967
        %v5074 = vunpack.c.h.b16 %v4967
        %v5075 = vunpack.c.l.b16 %v4968
        %v5076 = vunpack.c.h.b16 %v4968
        %v5077 = vunpack.c.l.b16 %v4969
        %v5078 = vunpack.c.h.b16 %v4969
        %v5079 = vpack.c.b16 %v5017, %v5015
        %v5080 = vpack.c.b16 %v5018, %v5016
        %v5081 = vpack.c.b16 %v5021, %v5019
        %v5082 = vpack.c.b16 %v5022, %v5020
        %v5083 = vpack.c.b16 %v5025, %v5023
        %v5084 = vpack.c.b16 %v5026, %v5024
        %v5085 = vpack.c.b16 %v5029, %v5027
        %v5086 = vpack.c.b16 %v5030, %v5028
        %v5087 = vpack.c.b16 %v5033, %v5031
        %v5088 = vpack.c.b16 %v5034, %v5032
        %v5089 = vpack.c.b16 %v5037, %v5035
        %v5090 = vpack.c.b16 %v5038, %v5036
        %v5091 = vpack.c.b16 %v5041, %v5039
        %v5092 = vpack.c.b16 %v5042, %v5040
        %v5093 = vpack.c.b16 %v5045, %v5043
        %v5094 = vpack.c.b16 %v5046, %v5044
        %v5095 = vpack.c.b16 %v5049, %v5047
        %v5096 = vpack.c.b16 %v5050, %v5048
        %v5097 = vpack.c.b16 %v5053, %v5051
        %v5098 = vpack.c.b16 %v5054, %v5052
        %v5099 = vpack.c.b16 %v5057, %v5055
        %v5100 = vpack.c.b16 %v5058, %v5056
        %v5101 = vpack.c.b16 %v5061, %v5059
        %v5102 = vpack.c.b16 %v5062, %v5060
        %v5103 = vpack.c.b16 %v5065, %v5063
        %v5104 = vpack.c.b16 %v5066, %v5064
        %v5105 = vpack.c.b16 %v5069, %v5067
        %v5106 = vpack.c.b16 %v5070, %v5068
        %v5107 = vpack.c.b16 %v5073, %v5071
        %v5108 = vpack.c.b16 %v5074, %v5072
        %v5109 = vpack.c.b16 %v5077, %v5075
        %v5110 = vpack.c.b16 %v5078, %v5076
        %5143 = vmatprep.subr.bf16.mxu0 %v5080
        %5144 = vmatpush1.bf16.msra.mxu0 %v5079
        %5145 = vmatprep.subr.bf16.mxu0 %v5082
        %5146 = vmatpush1.bf16.msra.mxu0 %v5081
        %5147 = vmatprep.subr.bf16.mxu0 %v5084
        %5148 = vmatpush1.bf16.msra.mxu0 %v5083
        %5149 = vmatprep.subr.bf16.mxu0 %v5086
        %5150 = vmatpush1.bf16.msra.mxu0 %v5085
        %5151 = vmatprep.subr.bf16.mxu0 %v5088
        %5152 = vmatpush1.bf16.msra.mxu0 %v5087
        %5153 = vmatprep.subr.bf16.mxu0 %v5090
        %5154 = vmatpush1.bf16.msra.mxu0 %v5089
        %5155 = vmatprep.subr.bf16.mxu0 %v5092
        %5156 = vmatpush1.bf16.msra.mxu0 %v5091
        %5157 = vmatprep.subr.bf16.mxu0 %v5094
        %5158 = vmatpush1.bf16.msra.mxu0 %v5093
        %5159 = vmatprep.subr.bf16.mxu0 %v5096
        %5160 = vmatpush1.bf16.msra.mxu0 %v5095
        %5161 = vmatprep.subr.bf16.mxu0 %v5098
        %5162 = vmatpush1.bf16.msra.mxu0 %v5097
        %5163 = vmatprep.subr.bf16.mxu0 %v5100
        %5164 = vmatpush1.bf16.msra.mxu0 %v5099
        %5165 = vmatprep.subr.bf16.mxu0 %v5102
        %5166 = vmatpush1.bf16.msra.mxu0 %v5101
        %5167 = vmatprep.subr.bf16.mxu0 %v5104
        %5168 = vmatpush1.bf16.msra.mxu0 %v5103
        %5169 = vmatprep.subr.bf16.mxu0 %v5106
        %5170 = vmatpush1.bf16.msra.mxu0 %v5105
        %5171 = vmatprep.subr.bf16.mxu0 %v5108
        %5172 = vmatpush1.bf16.msra.mxu0 %v5107
        %5173 = vmatprep.subr.bf16.mxu0 %v5110
        %5174 = vmatpush1.bf16.msra.mxu0 %v5109
        %5175 = vmatprep.mubr.bf16.mxu0 %v4936
        %5176 = vmatmul.mubr.bf16.gmra.mrb[0].mxu0 %v4935
        %v5177 = vpop.f32.mrb[0].mxu0
        %v5178 = vadd.f32 %v4976, %v5177
        %v5179 = vpop.f32.mrb[0].mxu0
        %v5180 = vadd.f32 %v4980, %v5179
        %v5181 = vpop.f32.mrb[0].mxu0
        %v5182 = vpop.f32.mrb[0].mxu0
        %5183 = vdwg.mxu0
        %v5184 = vadd.f32 %v3536, %v5178
        %v5185 = vadd.f32 %v3537, %v5180
        %s5186 = scalar_lea.vmem %s8, 2
        %v5187 = vld [vmem:[%s5186] sm:$0x3]
        %s5188 = scalar_lea.vmem %s9, 2
        %v5189 = vld [vmem:[%s5188] sm:$0x3]
        %v5190 = vadd.f32 %v5184, %v5185
        %5191 = vadd.xlane.f32.xlu0 %v5190
        %v5192 = vpop.xlane.xlu0 %5191
        %v5193 = vmul.f32 %v5192, %v2476
        %v5194 = vsub.f32 %v5184, %v5193
        %v5195 = vsub.f32 %v5185, %v5193
        %v5196 = vmul.f32 %v5194, %v5194
        %v5197 = vmul.f32 %v5195, %v5195
        %v5198 = vadd.f32 %v5196, %v5197
        %5199 = vadd.xlane.f32.xlu0 %v5198
        %v5200 = vpop.xlane.xlu0 %5199
        %v5201 = vmul.f32 %v5200, %v2476
        %v5202 = vadd.f32 %v5201, 1e-05
        %v5203 = vrsqrt.pop %v5202
        %v5204 = vmul.f32 %v5194, %v5203
        %v5205 = vmul.f32 %v5195, %v5203
        %v5207 = vlaneseq
        %v5208 = vshrl.u32 %v5207, 7
        %v5209 = vsub.s32 0, %v5208
        %v5210 = vrot.slane %v5187, %v5209
        %v5211 = vlaneseq
        %v5212 = vshrl.u32 %v5211, 7
        %v5213 = vsub.s32 1, %v5212
        %v5214 = vrot.slane %v5187, %v5213
        %v5217 = vmul.f32 %v5204, %v5210
        %v5218 = vmul.f32 %v5205, %v5214
        %v5220 = vlaneseq
        %v5221 = vshrl.u32 %v5220, 7
        %v5222 = vsub.s32 0, %v5221
        %v5223 = vrot.slane %v5189, %v5222
        %v5224 = vlaneseq
        %v5225 = vshrl.u32 %v5224, 7
        %v5226 = vsub.s32 1, %v5225
        %v5227 = vrot.slane %v5189, %v5226
        %v5230 = vadd.f32 %v5217, %v5223
        %v5231 = vadd.f32 %v5218, %v5227
        %v5232 = vpack.c.bf16 %v5230, %v5230
        %v5233 = vpack.c.bf16 %v5231, %v5231
        %s5234 = scalar_lea.vmem [#allocation10], 512
        %v5235 = vld [vmem:[%s5234] sm:$0xff]
        %v5236 = vld [vmem:[%s5234 + $0x8] sm:$0xff]
        %v5237 = vld [vmem:[%s5234 + $0x10] sm:$0xff]
        %v5238 = vld [vmem:[%s5234 + $0x18] sm:$0xff]
        %v5239 = vld [vmem:[%s5234 + $0x20] sm:$0xff]
        %v5240 = vld [vmem:[%s5234 + $0x28] sm:$0xff]
        %v5241 = vld [vmem:[%s5234 + $0x30] sm:$0xff]
        %v5242 = vld [vmem:[%s5234 + $0x38] sm:$0xff]
        %v5243 = vld [vmem:[%s5234 + $0x40] sm:$0xff]
        %v5244 = vld [vmem:[%s5234 + $0x48] sm:$0xff]
        %v5245 = vld [vmem:[%s5234 + $0x50] sm:$0xff]
        %v5246 = vld [vmem:[%s5234 + $0x58] sm:$0xff]
        %v5247 = vld [vmem:[%s5234 + $0x60] sm:$0xff]
        %v5248 = vld [vmem:[%s5234 + $0x68] sm:$0xff]
        %v5249 = vld [vmem:[%s5234 + $0x70] sm:$0xff]
        %v5250 = vld [vmem:[%s5234 + $0x78] sm:$0xff]
        %v5251 = vld [vmem:[%s5234 + $0x80] sm:$0xff]
        %v5252 = vld [vmem:[%s5234 + $0x88] sm:$0xff]
        %v5253 = vld [vmem:[%s5234 + $0x90] sm:$0xff]
        %v5254 = vld [vmem:[%s5234 + $0x98] sm:$0xff]
        %v5255 = vld [vmem:[%s5234 + $0xa0] sm:$0xff]
        %v5256 = vld [vmem:[%s5234 + $0xa8] sm:$0xff]
        %v5257 = vld [vmem:[%s5234 + $0xb0] sm:$0xff]
        %v5258 = vld [vmem:[%s5234 + $0xb8] sm:$0xff]
        %v5259 = vld [vmem:[%s5234 + $0xc0] sm:$0xff]
        %v5260 = vld [vmem:[%s5234 + $0xc8] sm:$0xff]
        %v5261 = vld [vmem:[%s5234 + $0xd0] sm:$0xff]
        %v5262 = vld [vmem:[%s5234 + $0xd8] sm:$0xff]
        %v5263 = vld [vmem:[%s5234 + $0xe0] sm:$0xff]
        %v5264 = vld [vmem:[%s5234 + $0xe8] sm:$0xff]
        %v5265 = vld [vmem:[%s5234 + $0xf0] sm:$0xff]
        %v5266 = vld [vmem:[%s5234 + $0xf8] sm:$0xff]
        %v5267 = vld [vmem:[%s5234 + $0x100] sm:$0xff]
        %v5268 = vld [vmem:[%s5234 + $0x108] sm:$0xff]
        %v5269 = vld [vmem:[%s5234 + $0x110] sm:$0xff]
        %v5270 = vld [vmem:[%s5234 + $0x118] sm:$0xff]
        %v5271 = vld [vmem:[%s5234 + $0x120] sm:$0xff]
        %v5272 = vld [vmem:[%s5234 + $0x128] sm:$0xff]
        %v5273 = vld [vmem:[%s5234 + $0x130] sm:$0xff]
        %v5274 = vld [vmem:[%s5234 + $0x138] sm:$0xff]
        %v5275 = vld [vmem:[%s5234 + $0x140] sm:$0xff]
        %v5276 = vld [vmem:[%s5234 + $0x148] sm:$0xff]
        %v5277 = vld [vmem:[%s5234 + $0x150] sm:$0xff]
        %v5278 = vld [vmem:[%s5234 + $0x158] sm:$0xff]
        %v5279 = vld [vmem:[%s5234 + $0x160] sm:$0xff]
        %v5280 = vld [vmem:[%s5234 + $0x168] sm:$0xff]
        %v5281 = vld [vmem:[%s5234 + $0x170] sm:$0xff]
        %v5282 = vld [vmem:[%s5234 + $0x178] sm:$0xff]
        %v5283 = vld [vmem:[%s5234 + $0x180] sm:$0xff]
        %v5284 = vld [vmem:[%s5234 + $0x188] sm:$0xff]
        %v5285 = vld [vmem:[%s5234 + $0x190] sm:$0xff]
        %v5286 = vld [vmem:[%s5234 + $0x198] sm:$0xff]
        %v5287 = vld [vmem:[%s5234 + $0x1a0] sm:$0xff]
        %v5288 = vld [vmem:[%s5234 + $0x1a8] sm:$0xff]
        %v5289 = vld [vmem:[%s5234 + $0x1b0] sm:$0xff]
        %v5290 = vld [vmem:[%s5234 + $0x1b8] sm:$0xff]
        %v5291 = vld [vmem:[%s5234 + $0x1c0] sm:$0xff]
        %v5292 = vld [vmem:[%s5234 + $0x1c8] sm:$0xff]
        %v5293 = vld [vmem:[%s5234 + $0x1d0] sm:$0xff]
        %v5294 = vld [vmem:[%s5234 + $0x1d8] sm:$0xff]
        %v5295 = vld [vmem:[%s5234 + $0x1e0] sm:$0xff]
        %v5296 = vld [vmem:[%s5234 + $0x1e8] sm:$0xff]
        %v5297 = vld [vmem:[%s5234 + $0x1f0] sm:$0xff]
        %v5298 = vld [vmem:[%s5234 + $0x1f8] sm:$0xff]
        %s5299 = scalar_lea.vmem %s13, 4
        %v5300 = vld [vmem:[%s5299] sm:$0xf]
        %v5302 = vlaneseq
        %v5303 = vshrl.u32 %v5302, 7
        %v5304 = vsub.s32 0, %v5303
        %v5305 = vrot.slane %v5300, %v5304
        %v5306 = vlaneseq
        %v5307 = vshrl.u32 %v5306, 7
        %v5308 = vsub.s32 1, %v5307
        %v5309 = vrot.slane %v5300, %v5308
        %v5310 = vlaneseq
        %v5311 = vshrl.u32 %v5310, 7
        %v5312 = vsub.s32 2, %v5311
        %v5313 = vrot.slane %v5300, %v5312
        %v5314 = vlaneseq
        %v5315 = vshrl.u32 %v5314, 7
        %v5316 = vsub.s32 3, %v5315
        %v5317 = vrot.slane %v5300, %v5316
        %v5386 = vunpack.c.l.b16 %v5235
        %v5387 = vunpack.c.h.b16 %v5235
        %v5388 = vunpack.c.l.b16 %v5236
        %v5389 = vunpack.c.h.b16 %v5236
        %v5390 = vunpack.c.l.b16 %v5237
        %v5391 = vunpack.c.h.b16 %v5237
        %v5392 = vunpack.c.l.b16 %v5238
        %v5393 = vunpack.c.h.b16 %v5238
        %v5394 = vunpack.c.l.b16 %v5239
        %v5395 = vunpack.c.h.b16 %v5239
        %v5396 = vunpack.c.l.b16 %v5240
        %v5397 = vunpack.c.h.b16 %v5240
        %v5398 = vunpack.c.l.b16 %v5241
        %v5399 = vunpack.c.h.b16 %v5241
        %v5400 = vunpack.c.l.b16 %v5242
        %v5401 = vunpack.c.h.b16 %v5242
        %v5402 = vunpack.c.l.b16 %v5243
        %v5403 = vunpack.c.h.b16 %v5243
        %v5404 = vunpack.c.l.b16 %v5244
        %v5405 = vunpack.c.h.b16 %v5244
        %v5406 = vunpack.c.l.b16 %v5245
        %v5407 = vunpack.c.h.b16 %v5245
        %v5408 = vunpack.c.l.b16 %v5246
        %v5409 = vunpack.c.h.b16 %v5246
        %v5410 = vunpack.c.l.b16 %v5247
        %v5411 = vunpack.c.h.b16 %v5247
        %v5412 = vunpack.c.l.b16 %v5248
        %v5413 = vunpack.c.h.b16 %v5248
        %v5414 = vunpack.c.l.b16 %v5249
        %v5415 = vunpack.c.h.b16 %v5249
        %v5416 = vunpack.c.l.b16 %v5250
        %v5417 = vunpack.c.h.b16 %v5250
        %v5418 = vunpack.c.l.b16 %v5251
        %v5419 = vunpack.c.h.b16 %v5251
        %v5420 = vunpack.c.l.b16 %v5252
        %v5421 = vunpack.c.h.b16 %v5252
        %v5422 = vunpack.c.l.b16 %v5253
        %v5423 = vunpack.c.h.b16 %v5253
        %v5424 = vunpack.c.l.b16 %v5254
        %v5425 = vunpack.c.h.b16 %v5254
        %v5426 = vunpack.c.l.b16 %v5255
        %v5427 = vunpack.c.h.b16 %v5255
        %v5428 = vunpack.c.l.b16 %v5256
        %v5429 = vunpack.c.h.b16 %v5256
        %v5430 = vunpack.c.l.b16 %v5257
        %v5431 = vunpack.c.h.b16 %v5257
        %v5432 = vunpack.c.l.b16 %v5258
        %v5433 = vunpack.c.h.b16 %v5258
        %v5434 = vunpack.c.l.b16 %v5259
        %v5435 = vunpack.c.h.b16 %v5259
        %v5436 = vunpack.c.l.b16 %v5260
        %v5437 = vunpack.c.h.b16 %v5260
        %v5438 = vunpack.c.l.b16 %v5261
        %v5439 = vunpack.c.h.b16 %v5261
        %v5440 = vunpack.c.l.b16 %v5262
        %v5441 = vunpack.c.h.b16 %v5262
        %v5442 = vunpack.c.l.b16 %v5263
        %v5443 = vunpack.c.h.b16 %v5263
        %v5444 = vunpack.c.l.b16 %v5264
        %v5445 = vunpack.c.h.b16 %v5264
        %v5446 = vunpack.c.l.b16 %v5265
        %v5447 = vunpack.c.h.b16 %v5265
        %v5448 = vunpack.c.l.b16 %v5266
        %v5449 = vunpack.c.h.b16 %v5266
        %v5450 = vunpack.c.l.b16 %v5267
        %v5451 = vunpack.c.h.b16 %v5267
        %v5452 = vunpack.c.l.b16 %v5268
        %v5453 = vunpack.c.h.b16 %v5268
        %v5454 = vunpack.c.l.b16 %v5269
        %v5455 = vunpack.c.h.b16 %v5269
        %v5456 = vunpack.c.l.b16 %v5270
        %v5457 = vunpack.c.h.b16 %v5270
        %v5458 = vunpack.c.l.b16 %v5271
        %v5459 = vunpack.c.h.b16 %v5271
        %v5460 = vunpack.c.l.b16 %v5272
        %v5461 = vunpack.c.h.b16 %v5272
        %v5462 = vunpack.c.l.b16 %v5273
        %v5463 = vunpack.c.h.b16 %v5273
        %v5464 = vunpack.c.l.b16 %v5274
        %v5465 = vunpack.c.h.b16 %v5274
        %v5466 = vunpack.c.l.b16 %v5275
        %v5467 = vunpack.c.h.b16 %v5275
        %v5468 = vunpack.c.l.b16 %v5276
        %v5469 = vunpack.c.h.b16 %v5276
        %v5470 = vunpack.c.l.b16 %v5277
        %v5471 = vunpack.c.h.b16 %v5277
        %v5472 = vunpack.c.l.b16 %v5278
        %v5473 = vunpack.c.h.b16 %v5278
        %v5474 = vunpack.c.l.b16 %v5279
        %v5475 = vunpack.c.h.b16 %v5279
        %v5476 = vunpack.c.l.b16 %v5280
        %v5477 = vunpack.c.h.b16 %v5280
        %v5478 = vunpack.c.l.b16 %v5281
        %v5479 = vunpack.c.h.b16 %v5281
        %v5480 = vunpack.c.l.b16 %v5282
        %v5481 = vunpack.c.h.b16 %v5282
        %v5482 = vunpack.c.l.b16 %v5283
        %v5483 = vunpack.c.h.b16 %v5283
        %v5484 = vunpack.c.l.b16 %v5284
        %v5485 = vunpack.c.h.b16 %v5284
        %v5486 = vunpack.c.l.b16 %v5285
        %v5487 = vunpack.c.h.b16 %v5285
        %v5488 = vunpack.c.l.b16 %v5286
        %v5489 = vunpack.c.h.b16 %v5286
        %v5490 = vunpack.c.l.b16 %v5287
        %v5491 = vunpack.c.h.b16 %v5287
        %v5492 = vunpack.c.l.b16 %v5288
        %v5493 = vunpack.c.h.b16 %v5288
        %v5494 = vunpack.c.l.b16 %v5289
        %v5495 = vunpack.c.h.b16 %v5289
        %v5496 = vunpack.c.l.b16 %v5290
        %v5497 = vunpack.c.h.b16 %v5290
        %v5498 = vunpack.c.l.b16 %v5291
        %v5499 = vunpack.c.h.b16 %v5291
        %v5500 = vunpack.c.l.b16 %v5292
        %v5501 = vunpack.c.h.b16 %v5292
        %v5502 = vunpack.c.l.b16 %v5293
        %v5503 = vunpack.c.h.b16 %v5293
        %v5504 = vunpack.c.l.b16 %v5294
        %v5505 = vunpack.c.h.b16 %v5294
        %v5506 = vunpack.c.l.b16 %v5295
        %v5507 = vunpack.c.h.b16 %v5295
        %v5508 = vunpack.c.l.b16 %v5296
        %v5509 = vunpack.c.h.b16 %v5296
        %v5510 = vunpack.c.l.b16 %v5297
        %v5511 = vunpack.c.h.b16 %v5297
        %v5512 = vunpack.c.l.b16 %v5298
        %v5513 = vunpack.c.h.b16 %v5298
        %v5514 = vpack.c.b16 %v5390, %v5386
        %v5515 = vpack.c.b16 %v5391, %v5387
        %v5516 = vpack.c.b16 %v5392, %v5388
        %v5517 = vpack.c.b16 %v5393, %v5389
        %v5518 = vpack.c.b16 %v5398, %v5394
        %v5519 = vpack.c.b16 %v5399, %v5395
        %v5520 = vpack.c.b16 %v5400, %v5396
        %v5521 = vpack.c.b16 %v5401, %v5397
        %v5522 = vpack.c.b16 %v5406, %v5402
        %v5523 = vpack.c.b16 %v5407, %v5403
        %v5524 = vpack.c.b16 %v5408, %v5404
        %v5525 = vpack.c.b16 %v5409, %v5405
        %v5526 = vpack.c.b16 %v5414, %v5410
        %v5527 = vpack.c.b16 %v5415, %v5411
        %v5528 = vpack.c.b16 %v5416, %v5412
        %v5529 = vpack.c.b16 %v5417, %v5413
        %v5530 = vpack.c.b16 %v5422, %v5418
        %v5531 = vpack.c.b16 %v5423, %v5419
        %v5532 = vpack.c.b16 %v5424, %v5420
        %v5533 = vpack.c.b16 %v5425, %v5421
        %v5534 = vpack.c.b16 %v5430, %v5426
        %v5535 = vpack.c.b16 %v5431, %v5427
        %v5536 = vpack.c.b16 %v5432, %v5428
        %v5537 = vpack.c.b16 %v5433, %v5429
        %v5538 = vpack.c.b16 %v5438, %v5434
        %v5539 = vpack.c.b16 %v5439, %v5435
        %v5540 = vpack.c.b16 %v5440, %v5436
        %v5541 = vpack.c.b16 %v5441, %v5437
        %v5542 = vpack.c.b16 %v5446, %v5442
        %v5543 = vpack.c.b16 %v5447, %v5443
        %v5544 = vpack.c.b16 %v5448, %v5444
        %v5545 = vpack.c.b16 %v5449, %v5445
        %v5546 = vpack.c.b16 %v5454, %v5450
        %v5547 = vpack.c.b16 %v5455, %v5451
        %v5548 = vpack.c.b16 %v5456, %v5452
        %v5549 = vpack.c.b16 %v5457, %v5453
        %v5550 = vpack.c.b16 %v5462, %v5458
        %v5551 = vpack.c.b16 %v5463, %v5459
        %v5552 = vpack.c.b16 %v5464, %v5460
        %v5553 = vpack.c.b16 %v5465, %v5461
        %v5554 = vpack.c.b16 %v5470, %v5466
        %v5555 = vpack.c.b16 %v5471, %v5467
        %v5556 = vpack.c.b16 %v5472, %v5468
        %v5557 = vpack.c.b16 %v5473, %v5469
        %v5558 = vpack.c.b16 %v5478, %v5474
        %v5559 = vpack.c.b16 %v5479, %v5475
        %v5560 = vpack.c.b16 %v5480, %v5476
        %v5561 = vpack.c.b16 %v5481, %v5477
        %v5562 = vpack.c.b16 %v5486, %v5482
        %v5563 = vpack.c.b16 %v5487, %v5483
        %v5564 = vpack.c.b16 %v5488, %v5484
        %v5565 = vpack.c.b16 %v5489, %v5485
        %v5566 = vpack.c.b16 %v5494, %v5490
        %v5567 = vpack.c.b16 %v5495, %v5491
        %v5568 = vpack.c.b16 %v5496, %v5492
        %v5569 = vpack.c.b16 %v5497, %v5493
        %v5570 = vpack.c.b16 %v5502, %v5498
        %v5571 = vpack.c.b16 %v5503, %v5499
        %v5572 = vpack.c.b16 %v5504, %v5500
        %v5573 = vpack.c.b16 %v5505, %v5501
        %v5574 = vpack.c.b16 %v5510, %v5506
        %v5575 = vpack.c.b16 %v5511, %v5507
        %v5576 = vpack.c.b16 %v5512, %v5508
        %v5577 = vpack.c.b16 %v5513, %v5509
        %5642 = vmatprep.subr.bf16.mxu0 %v5515
        %5643 = vmatpush1.bf16.msra.mxu0 %v5514
        %5644 = vmatprep.subr.bf16.mxu0 %v5519
        %5645 = vmatpush1.bf16.msra.mxu0 %v5518
        %5646 = vmatprep.subr.bf16.mxu0 %v5523
        %5647 = vmatpush1.bf16.msra.mxu0 %v5522
        %5648 = vmatprep.subr.bf16.mxu0 %v5527
        %5649 = vmatpush1.bf16.msra.mxu0 %v5526
        %5650 = vmatprep.subr.bf16.mxu0 %v5531
        %5651 = vmatpush1.bf16.msra.mxu0 %v5530
        %5652 = vmatprep.subr.bf16.mxu0 %v5535
        %5653 = vmatpush1.bf16.msra.mxu0 %v5534
        %5654 = vmatprep.subr.bf16.mxu0 %v5539
        %5655 = vmatpush1.bf16.msra.mxu0 %v5538
        %5656 = vmatprep.subr.bf16.mxu0 %v5543
        %5657 = vmatpush1.bf16.msra.mxu0 %v5542
        %5658 = vmatprep.subr.bf16.mxu0 %v5547
        %5659 = vmatpush1.bf16.msra.mxu0 %v5546
        %5660 = vmatprep.subr.bf16.mxu0 %v5551
        %5661 = vmatpush1.bf16.msra.mxu0 %v5550
        %5662 = vmatprep.subr.bf16.mxu0 %v5555
        %5663 = vmatpush1.bf16.msra.mxu0 %v5554
        %5664 = vmatprep.subr.bf16.mxu0 %v5559
        %5665 = vmatpush1.bf16.msra.mxu0 %v5558
        %5666 = vmatprep.subr.bf16.mxu0 %v5563
        %5667 = vmatpush1.bf16.msra.mxu0 %v5562
        %5668 = vmatprep.subr.bf16.mxu0 %v5567
        %5669 = vmatpush1.bf16.msra.mxu0 %v5566
        %5670 = vmatprep.subr.bf16.mxu0 %v5571
        %5671 = vmatpush1.bf16.msra.mxu0 %v5570
        %5672 = vmatprep.subr.bf16.mxu0 %v5575
        %5673 = vmatpush1.bf16.msra.mxu0 %v5574
        %5674 = vmatprep.mubr.bf16.mxu0 %v5233
        %5675 = vmatmul.mubr.bf16.gmra.mrb[0].mxu0 %v5232
        %v5676 = vpop.f32.mrb[0].mxu0
        %v5677 = vadd.f32 %v5305, %v5676
        %v5678 = vpop.f32.mrb[0].mxu0
        %v5679 = vadd.f32 %v5309, %v5678
        %v5680 = vpop.f32.mrb[0].mxu0
        %v5681 = vpop.f32.mrb[0].mxu0
        %5682 = vdwg.mxu0
        %5683 = vmatprep.subr.bf16.mxu0 %v5517
        %5684 = vmatpush1.bf16.msra.mxu0 %v5516
        %5685 = vmatprep.subr.bf16.mxu0 %v5521
        %5686 = vmatpush1.bf16.msra.mxu0 %v5520
        %5687 = vmatprep.subr.bf16.mxu0 %v5525
        %5688 = vmatpush1.bf16.msra.mxu0 %v5524
        %5689 = vmatprep.subr.bf16.mxu0 %v5529
        %5690 = vmatpush1.bf16.msra.mxu0 %v5528
        %5691 = vmatprep.subr.bf16.mxu0 %v5533
        %5692 = vmatpush1.bf16.msra.mxu0 %v5532
        %5693 = vmatprep.subr.bf16.mxu0 %v5537
        %5694 = vmatpush1.bf16.msra.mxu0 %v5536
        %5695 = vmatprep.subr.bf16.mxu0 %v5541
        %5696 = vmatpush1.bf16.msra.mxu0 %v5540
        %5697 = vmatprep.subr.bf16.mxu0 %v5545
        %5698 = vmatpush1.bf16.msra.mxu0 %v5544
        %5699 = vmatprep.subr.bf16.mxu0 %v5549
        %5700 = vmatpush1.bf16.msra.mxu0 %v5548
        %5701 = vmatprep.subr.bf16.mxu0 %v5553
        %5702 = vmatpush1.bf16.msra.mxu0 %v5552
        %5703 = vmatprep.subr.bf16.mxu0 %v5557
        %5704 = vmatpush1.bf16.msra.mxu0 %v5556
        %5705 = vmatprep.subr.bf16.mxu0 %v5561
        %5706 = vmatpush1.bf16.msra.mxu0 %v5560
        %5707 = vmatprep.subr.bf16.mxu0 %v5565
        %5708 = vmatpush1.bf16.msra.mxu0 %v5564
        %5709 = vmatprep.subr.bf16.mxu0 %v5569
        %5710 = vmatpush1.bf16.msra.mxu0 %v5568
        %5711 = vmatprep.subr.bf16.mxu0 %v5573
        %5712 = vmatpush1.bf16.msra.mxu0 %v5572
        %5713 = vmatprep.subr.bf16.mxu0 %v5577
        %5714 = vmatpush1.bf16.msra.mxu0 %v5576
        %5715 = vmatprep.mubr.bf16.mxu0 %v5233
        %5716 = vmatmul.mubr.bf16.gmra.mrb[0].mxu0 %v5232
        %v5717 = vpop.f32.mrb[0].mxu0
        %v5718 = vadd.f32 %v5313, %v5717
        %v5719 = vpop.f32.mrb[0].mxu0
        %v5720 = vadd.f32 %v5317, %v5719
        %v5721 = vpop.f32.mrb[0].mxu0
        %v5722 = vpop.f32.mrb[0].mxu0
        %5723 = vdwg.mxu0
        %v5724 = vmax.f32 %v5677, 0.0
        %v5725 = vmax.f32 %v5679, 0.0
        %v5726 = vmax.f32 %v5718, 0.0
        %v5727 = vmax.f32 %v5720, 0.0
        %v5728 = vpack.c.bf16 %v5724, %v5724
        %v5729 = vpack.c.bf16 %v5725, %v5725
        %v5730 = vpack.c.bf16 %v5726, %v5726
        %v5731 = vpack.c.bf16 %v5727, %v5727
        %s5732 = scalar_lea.vmem [#allocation11], 512
        %v5733 = vld [vmem:[%s5732] sm:$0xff]
        %v5734 = vld [vmem:[%s5732 + $0x8] sm:$0xff]
        %v5735 = vld [vmem:[%s5732 + $0x10] sm:$0xff]
        %v5736 = vld [vmem:[%s5732 + $0x18] sm:$0xff]
        %v5737 = vld [vmem:[%s5732 + $0x20] sm:$0xff]
        %v5738 = vld [vmem:[%s5732 + $0x28] sm:$0xff]
        %v5739 = vld [vmem:[%s5732 + $0x30] sm:$0xff]
        %v5740 = vld [vmem:[%s5732 + $0x38] sm:$0xff]
        %v5741 = vld [vmem:[%s5732 + $0x40] sm:$0xff]
        %v5742 = vld [vmem:[%s5732 + $0x48] sm:$0xff]
        %v5743 = vld [vmem:[%s5732 + $0x50] sm:$0xff]
        %v5744 = vld [vmem:[%s5732 + $0x58] sm:$0xff]
        %v5745 = vld [vmem:[%s5732 + $0x60] sm:$0xff]
        %v5746 = vld [vmem:[%s5732 + $0x68] sm:$0xff]
        %v5747 = vld [vmem:[%s5732 + $0x70] sm:$0xff]
        %v5748 = vld [vmem:[%s5732 + $0x78] sm:$0xff]
        %v5749 = vld [vmem:[%s5732 + $0x80] sm:$0xff]
        %v5750 = vld [vmem:[%s5732 + $0x88] sm:$0xff]
        %v5751 = vld [vmem:[%s5732 + $0x90] sm:$0xff]
        %v5752 = vld [vmem:[%s5732 + $0x98] sm:$0xff]
        %v5753 = vld [vmem:[%s5732 + $0xa0] sm:$0xff]
        %v5754 = vld [vmem:[%s5732 + $0xa8] sm:$0xff]
        %v5755 = vld [vmem:[%s5732 + $0xb0] sm:$0xff]
        %v5756 = vld [vmem:[%s5732 + $0xb8] sm:$0xff]
        %v5757 = vld [vmem:[%s5732 + $0xc0] sm:$0xff]
        %v5758 = vld [vmem:[%s5732 + $0xc8] sm:$0xff]
        %v5759 = vld [vmem:[%s5732 + $0xd0] sm:$0xff]
        %v5760 = vld [vmem:[%s5732 + $0xd8] sm:$0xff]
        %v5761 = vld [vmem:[%s5732 + $0xe0] sm:$0xff]
        %v5762 = vld [vmem:[%s5732 + $0xe8] sm:$0xff]
        %v5763 = vld [vmem:[%s5732 + $0xf0] sm:$0xff]
        %v5764 = vld [vmem:[%s5732 + $0xf8] sm:$0xff]
        %v5765 = vld [vmem:[%s5732 + $0x100] sm:$0xff]
        %v5766 = vld [vmem:[%s5732 + $0x108] sm:$0xff]
        %v5767 = vld [vmem:[%s5732 + $0x110] sm:$0xff]
        %v5768 = vld [vmem:[%s5732 + $0x118] sm:$0xff]
        %v5769 = vld [vmem:[%s5732 + $0x120] sm:$0xff]
        %v5770 = vld [vmem:[%s5732 + $0x128] sm:$0xff]
        %v5771 = vld [vmem:[%s5732 + $0x130] sm:$0xff]
        %v5772 = vld [vmem:[%s5732 + $0x138] sm:$0xff]
        %v5773 = vld [vmem:[%s5732 + $0x140] sm:$0xff]
        %v5774 = vld [vmem:[%s5732 + $0x148] sm:$0xff]
        %v5775 = vld [vmem:[%s5732 + $0x150] sm:$0xff]
        %v5776 = vld [vmem:[%s5732 + $0x158] sm:$0xff]
        %v5777 = vld [vmem:[%s5732 + $0x160] sm:$0xff]
        %v5778 = vld [vmem:[%s5732 + $0x168] sm:$0xff]
        %v5779 = vld [vmem:[%s5732 + $0x170] sm:$0xff]
        %v5780 = vld [vmem:[%s5732 + $0x178] sm:$0xff]
        %v5781 = vld [vmem:[%s5732 + $0x180] sm:$0xff]
        %v5782 = vld [vmem:[%s5732 + $0x188] sm:$0xff]
        %v5783 = vld [vmem:[%s5732 + $0x190] sm:$0xff]
        %v5784 = vld [vmem:[%s5732 + $0x198] sm:$0xff]
        %v5785 = vld [vmem:[%s5732 + $0x1a0] sm:$0xff]
        %v5786 = vld [vmem:[%s5732 + $0x1a8] sm:$0xff]
        %v5787 = vld [vmem:[%s5732 + $0x1b0] sm:$0xff]
        %v5788 = vld [vmem:[%s5732 + $0x1b8] sm:$0xff]
        %v5789 = vld [vmem:[%s5732 + $0x1c0] sm:$0xff]
        %v5790 = vld [vmem:[%s5732 + $0x1c8] sm:$0xff]
        %v5791 = vld [vmem:[%s5732 + $0x1d0] sm:$0xff]
        %v5792 = vld [vmem:[%s5732 + $0x1d8] sm:$0xff]
        %v5793 = vld [vmem:[%s5732 + $0x1e0] sm:$0xff]
        %v5794 = vld [vmem:[%s5732 + $0x1e8] sm:$0xff]
        %v5795 = vld [vmem:[%s5732 + $0x1f0] sm:$0xff]
        %v5796 = vld [vmem:[%s5732 + $0x1f8] sm:$0xff]
        %s5797 = scalar_lea.vmem %s15, 2
        %v5798 = vld [vmem:[%s5797] sm:$0x3]
        %v5800 = vlaneseq
        %v5801 = vshrl.u32 %v5800, 7
        %v5802 = vsub.s32 0, %v5801
        %v5803 = vrot.slane %v5798, %v5802
        %v5804 = vlaneseq
        %v5805 = vshrl.u32 %v5804, 7
        %v5806 = vsub.s32 1, %v5805
        %v5807 = vrot.slane %v5798, %v5806
        %v5874 = vunpack.c.l.b16 %v5733
        %v5875 = vunpack.c.h.b16 %v5733
        %v5876 = vunpack.c.l.b16 %v5734
        %v5877 = vunpack.c.h.b16 %v5734
        %v5878 = vunpack.c.l.b16 %v5735
        %v5879 = vunpack.c.h.b16 %v5735
        %v5880 = vunpack.c.l.b16 %v5736
        %v5881 = vunpack.c.h.b16 %v5736
        %v5882 = vunpack.c.l.b16 %v5737
        %v5883 = vunpack.c.h.b16 %v5737
        %v5884 = vunpack.c.l.b16 %v5738
        %v5885 = vunpack.c.h.b16 %v5738
        %v5886 = vunpack.c.l.b16 %v5739
        %v5887 = vunpack.c.h.b16 %v5739
        %v5888 = vunpack.c.l.b16 %v5740
        %v5889 = vunpack.c.h.b16 %v5740
        %v5890 = vunpack.c.l.b16 %v5741
        %v5891 = vunpack.c.h.b16 %v5741
        %v5892 = vunpack.c.l.b16 %v5742
        %v5893 = vunpack.c.h.b16 %v5742
        %v5894 = vunpack.c.l.b16 %v5743
        %v5895 = vunpack.c.h.b16 %v5743
        %v5896 = vunpack.c.l.b16 %v5744
        %v5897 = vunpack.c.h.b16 %v5744
        %v5898 = vunpack.c.l.b16 %v5745
        %v5899 = vunpack.c.h.b16 %v5745
        %v5900 = vunpack.c.l.b16 %v5746
        %v5901 = vunpack.c.h.b16 %v5746
        %v5902 = vunpack.c.l.b16 %v5747
        %v5903 = vunpack.c.h.b16 %v5747
        %v5904 = vunpack.c.l.b16 %v5748
        %v5905 = vunpack.c.h.b16 %v5748
        %v5906 = vunpack.c.l.b16 %v5749
        %v5907 = vunpack.c.h.b16 %v5749
        %v5908 = vunpack.c.l.b16 %v5750
        %v5909 = vunpack.c.h.b16 %v5750
        %v5910 = vunpack.c.l.b16 %v5751
        %v5911 = vunpack.c.h.b16 %v5751
        %v5912 = vunpack.c.l.b16 %v5752
        %v5913 = vunpack.c.h.b16 %v5752
        %v5914 = vunpack.c.l.b16 %v5753
        %v5915 = vunpack.c.h.b16 %v5753
        %v5916 = vunpack.c.l.b16 %v5754
        %v5917 = vunpack.c.h.b16 %v5754
        %v5918 = vunpack.c.l.b16 %v5755
        %v5919 = vunpack.c.h.b16 %v5755
        %v5920 = vunpack.c.l.b16 %v5756
        %v5921 = vunpack.c.h.b16 %v5756
        %v5922 = vunpack.c.l.b16 %v5757
        %v5923 = vunpack.c.h.b16 %v5757
        %v5924 = vunpack.c.l.b16 %v5758
        %v5925 = vunpack.c.h.b16 %v5758
        %v5926 = vunpack.c.l.b16 %v5759
        %v5927 = vunpack.c.h.b16 %v5759
        %v5928 = vunpack.c.l.b16 %v5760
        %v5929 = vunpack.c.h.b16 %v5760
        %v5930 = vunpack.c.l.b16 %v5761
        %v5931 = vunpack.c.h.b16 %v5761
        %v5932 = vunpack.c.l.b16 %v5762
        %v5933 = vunpack.c.h.b16 %v5762
        %v5934 = vunpack.c.l.b16 %v5763
        %v5935 = vunpack.c.h.b16 %v5763
        %v5936 = vunpack.c.l.b16 %v5764
        %v5937 = vunpack.c.h.b16 %v5764
        %v5938 = vunpack.c.l.b16 %v5765
        %v5939 = vunpack.c.h.b16 %v5765
        %v5940 = vunpack.c.l.b16 %v5766
        %v5941 = vunpack.c.h.b16 %v5766
        %v5942 = vunpack.c.l.b16 %v5767
        %v5943 = vunpack.c.h.b16 %v5767
        %v5944 = vunpack.c.l.b16 %v5768
        %v5945 = vunpack.c.h.b16 %v5768
        %v5946 = vunpack.c.l.b16 %v5769
        %v5947 = vunpack.c.h.b16 %v5769
        %v5948 = vunpack.c.l.b16 %v5770
        %v5949 = vunpack.c.h.b16 %v5770
        %v5950 = vunpack.c.l.b16 %v5771
        %v5951 = vunpack.c.h.b16 %v5771
        %v5952 = vunpack.c.l.b16 %v5772
        %v5953 = vunpack.c.h.b16 %v5772
        %v5954 = vunpack.c.l.b16 %v5773
        %v5955 = vunpack.c.h.b16 %v5773
        %v5956 = vunpack.c.l.b16 %v5774
        %v5957 = vunpack.c.h.b16 %v5774
        %v5958 = vunpack.c.l.b16 %v5775
        %v5959 = vunpack.c.h.b16 %v5775
        %v5960 = vunpack.c.l.b16 %v5776
        %v5961 = vunpack.c.h.b16 %v5776
        %v5962 = vunpack.c.l.b16 %v5777
        %v5963 = vunpack.c.h.b16 %v5777
        %v5964 = vunpack.c.l.b16 %v5778
        %v5965 = vunpack.c.h.b16 %v5778
        %v5966 = vunpack.c.l.b16 %v5779
        %v5967 = vunpack.c.h.b16 %v5779
        %v5968 = vunpack.c.l.b16 %v5780
        %v5969 = vunpack.c.h.b16 %v5780
        %v5970 = vunpack.c.l.b16 %v5781
        %v5971 = vunpack.c.h.b16 %v5781
        %v5972 = vunpack.c.l.b16 %v5782
        %v5973 = vunpack.c.h.b16 %v5782
        %v5974 = vunpack.c.l.b16 %v5783
        %v5975 = vunpack.c.h.b16 %v5783
        %v5976 = vunpack.c.l.b16 %v5784
        %v5977 = vunpack.c.h.b16 %v5784
        %v5978 = vunpack.c.l.b16 %v5785
        %v5979 = vunpack.c.h.b16 %v5785
        %v5980 = vunpack.c.l.b16 %v5786
        %v5981 = vunpack.c.h.b16 %v5786
        %v5982 = vunpack.c.l.b16 %v5787
        %v5983 = vunpack.c.h.b16 %v5787
        %v5984 = vunpack.c.l.b16 %v5788
        %v5985 = vunpack.c.h.b16 %v5788
        %v5986 = vunpack.c.l.b16 %v5789
        %v5987 = vunpack.c.h.b16 %v5789
        %v5988 = vunpack.c.l.b16 %v5790
        %v5989 = vunpack.c.h.b16 %v5790
        %v5990 = vunpack.c.l.b16 %v5791
        %v5991 = vunpack.c.h.b16 %v5791
        %v5992 = vunpack.c.l.b16 %v5792
        %v5993 = vunpack.c.h.b16 %v5792
        %v5994 = vunpack.c.l.b16 %v5793
        %v5995 = vunpack.c.h.b16 %v5793
        %v5996 = vunpack.c.l.b16 %v5794
        %v5997 = vunpack.c.h.b16 %v5794
        %v5998 = vunpack.c.l.b16 %v5795
        %v5999 = vunpack.c.h.b16 %v5795
        %v6000 = vunpack.c.l.b16 %v5796
        %v6001 = vunpack.c.h.b16 %v5796
        %v6002 = vpack.c.b16 %v5876, %v5874
        %v6003 = vpack.c.b16 %v5877, %v5875
        %v6004 = vpack.c.b16 %v5880, %v5878
        %v6005 = vpack.c.b16 %v5881, %v5879
        %v6006 = vpack.c.b16 %v5884, %v5882
        %v6007 = vpack.c.b16 %v5885, %v5883
        %v6008 = vpack.c.b16 %v5888, %v5886
        %v6009 = vpack.c.b16 %v5889, %v5887
        %v6010 = vpack.c.b16 %v5892, %v5890
        %v6011 = vpack.c.b16 %v5893, %v5891
        %v6012 = vpack.c.b16 %v5896, %v5894
        %v6013 = vpack.c.b16 %v5897, %v5895
        %v6014 = vpack.c.b16 %v5900, %v5898
        %v6015 = vpack.c.b16 %v5901, %v5899
        %v6016 = vpack.c.b16 %v5904, %v5902
        %v6017 = vpack.c.b16 %v5905, %v5903
        %v6018 = vpack.c.b16 %v5908, %v5906
        %v6019 = vpack.c.b16 %v5909, %v5907
        %v6020 = vpack.c.b16 %v5912, %v5910
        %v6021 = vpack.c.b16 %v5913, %v5911
        %v6022 = vpack.c.b16 %v5916, %v5914
        %v6023 = vpack.c.b16 %v5917, %v5915
        %v6024 = vpack.c.b16 %v5920, %v5918
        %v6025 = vpack.c.b16 %v5921, %v5919
        %v6026 = vpack.c.b16 %v5924, %v5922
        %v6027 = vpack.c.b16 %v5925, %v5923
        %v6028 = vpack.c.b16 %v5928, %v5926
        %v6029 = vpack.c.b16 %v5929, %v5927
        %v6030 = vpack.c.b16 %v5932, %v5930
        %v6031 = vpack.c.b16 %v5933, %v5931
        %v6032 = vpack.c.b16 %v5936, %v5934
        %v6033 = vpack.c.b16 %v5937, %v5935
        %v6034 = vpack.c.b16 %v5940, %v5938
        %v6035 = vpack.c.b16 %v5941, %v5939
        %v6036 = vpack.c.b16 %v5944, %v5942
        %v6037 = vpack.c.b16 %v5945, %v5943
        %v6038 = vpack.c.b16 %v5948, %v5946
        %v6039 = vpack.c.b16 %v5949, %v5947
        %v6040 = vpack.c.b16 %v5952, %v5950
        %v6041 = vpack.c.b16 %v5953, %v5951
        %v6042 = vpack.c.b16 %v5956, %v5954
        %v6043 = vpack.c.b16 %v5957, %v5955
        %v6044 = vpack.c.b16 %v5960, %v5958
        %v6045 = vpack.c.b16 %v5961, %v5959
        %v6046 = vpack.c.b16 %v5964, %v5962
        %v6047 = vpack.c.b16 %v5965, %v5963
        %v6048 = vpack.c.b16 %v5968, %v5966
        %v6049 = vpack.c.b16 %v5969, %v5967
        %v6050 = vpack.c.b16 %v5972, %v5970
        %v6051 = vpack.c.b16 %v5973, %v5971
        %v6052 = vpack.c.b16 %v5976, %v5974
        %v6053 = vpack.c.b16 %v5977, %v5975
        %v6054 = vpack.c.b16 %v5980, %v5978
        %v6055 = vpack.c.b16 %v5981, %v5979
        %v6056 = vpack.c.b16 %v5984, %v5982
        %v6057 = vpack.c.b16 %v5985, %v5983
        %v6058 = vpack.c.b16 %v5988, %v5986
        %v6059 = vpack.c.b16 %v5989, %v5987
        %v6060 = vpack.c.b16 %v5992, %v5990
        %v6061 = vpack.c.b16 %v5993, %v5991
        %v6062 = vpack.c.b16 %v5996, %v5994
        %v6063 = vpack.c.b16 %v5997, %v5995
        %v6064 = vpack.c.b16 %v6000, %v5998
        %v6065 = vpack.c.b16 %v6001, %v5999
        %6130 = vmatprep.subr.bf16.mxu0 %v6003
        %6131 = vmatpush1.bf16.msra.mxu0 %v6002
        %6132 = vmatprep.subr.bf16.mxu0 %v6005
        %6133 = vmatpush1.bf16.msra.mxu0 %v6004
        %6134 = vmatprep.subr.bf16.mxu0 %v6007
        %6135 = vmatpush1.bf16.msra.mxu0 %v6006
        %6136 = vmatprep.subr.bf16.mxu0 %v6009
        %6137 = vmatpush1.bf16.msra.mxu0 %v6008
        %6138 = vmatprep.subr.bf16.mxu0 %v6011
        %6139 = vmatpush1.bf16.msra.mxu0 %v6010
        %6140 = vmatprep.subr.bf16.mxu0 %v6013
        %6141 = vmatpush1.bf16.msra.mxu0 %v6012
        %6142 = vmatprep.subr.bf16.mxu0 %v6015
        %6143 = vmatpush1.bf16.msra.mxu0 %v6014
        %6144 = vmatprep.subr.bf16.mxu0 %v6017
        %6145 = vmatpush1.bf16.msra.mxu0 %v6016
        %6146 = vmatprep.subr.bf16.mxu0 %v6019
        %6147 = vmatpush1.bf16.msra.mxu0 %v6018
        %6148 = vmatprep.subr.bf16.mxu0 %v6021
        %6149 = vmatpush1.bf16.msra.mxu0 %v6020
        %6150 = vmatprep.subr.bf16.mxu0 %v6023
        %6151 = vmatpush1.bf16.msra.mxu0 %v6022
        %6152 = vmatprep.subr.bf16.mxu0 %v6025
        %6153 = vmatpush1.bf16.msra.mxu0 %v6024
        %6154 = vmatprep.subr.bf16.mxu0 %v6027
        %6155 = vmatpush1.bf16.msra.mxu0 %v6026
        %6156 = vmatprep.subr.bf16.mxu0 %v6029
        %6157 = vmatpush1.bf16.msra.mxu0 %v6028
        %6158 = vmatprep.subr.bf16.mxu0 %v6031
        %6159 = vmatpush1.bf16.msra.mxu0 %v6030
        %6160 = vmatprep.subr.bf16.mxu0 %v6033
        %6161 = vmatpush1.bf16.msra.mxu0 %v6032
        %6162 = vmatprep.mubr.bf16.mxu0 %v5729
        %6163 = vmatmul.mubr.bf16.gmra.mrb[0].mxu0 %v5728
        %v6164 = vpop.f32.mrb[0].mxu0
        %v6165 = vadd.f32 %v5803, %v6164
        %v6166 = vpop.f32.mrb[0].mxu0
        %v6167 = vadd.f32 %v5807, %v6166
        %v6168 = vpop.f32.mrb[0].mxu0
        %v6169 = vpop.f32.mrb[0].mxu0
        %6170 = vdwg.mxu0
        %6171 = vmatprep.subr.bf16.mxu0 %v6035
        %6172 = vmatpush1.bf16.msra.mxu0 %v6034
        %6173 = vmatprep.subr.bf16.mxu0 %v6037
        %6174 = vmatpush1.bf16.msra.mxu0 %v6036
        %6175 = vmatprep.subr.bf16.mxu0 %v6039
        %6176 = vmatpush1.bf16.msra.mxu0 %v6038
        %6177 = vmatprep.subr.bf16.mxu0 %v6041
        %6178 = vmatpush1.bf16.msra.mxu0 %v6040
        %6179 = vmatprep.subr.bf16.mxu0 %v6043
        %6180 = vmatpush1.bf16.msra.mxu0 %v6042
        %6181 = vmatprep.subr.bf16.mxu0 %v6045
        %6182 = vmatpush1.bf16.msra.mxu0 %v6044
        %6183 = vmatprep.subr.bf16.mxu0 %v6047
        %6184 = vmatpush1.bf16.msra.mxu0 %v6046
        %6185 = vmatprep.subr.bf16.mxu0 %v6049
        %6186 = vmatpush1.bf16.msra.mxu0 %v6048
        %6187 = vmatprep.subr.bf16.mxu0 %v6051
        %6188 = vmatpush1.bf16.msra.mxu0 %v6050
        %6189 = vmatprep.subr.bf16.mxu0 %v6053
        %6190 = vmatpush1.bf16.msra.mxu0 %v6052
        %6191 = vmatprep.subr.bf16.mxu0 %v6055
        %6192 = vmatpush1.bf16.msra.mxu0 %v6054
        %6193 = vmatprep.subr.bf16.mxu0 %v6057
        %6194 = vmatpush1.bf16.msra.mxu0 %v6056
        %6195 = vmatprep.subr.bf16.mxu0 %v6059
        %6196 = vmatpush1.bf16.msra.mxu0 %v6058
        %6197 = vmatprep.subr.bf16.mxu0 %v6061
        %6198 = vmatpush1.bf16.msra.mxu0 %v6060
        %6199 = vmatprep.subr.bf16.mxu0 %v6063
        %6200 = vmatpush1.bf16.msra.mxu0 %v6062
        %6201 = vmatprep.subr.bf16.mxu0 %v6065
        %6202 = vmatpush1.bf16.msra.mxu0 %v6064
        %6203 = vmatprep.mubr.bf16.mxu0 %v5731
        %6204 = vmatmul.mubr.bf16.gmra.mrb[0].mxu0 %v5730
        %v6205 = vpop.f32.mrb[0].mxu0
        %v6206 = vadd.f32 %v6165, %v6205
        %v6207 = vpop.f32.mrb[0].mxu0
        %v6208 = vadd.f32 %v6167, %v6207
        %v6209 = vpop.f32.mrb[0].mxu0
        %v6210 = vpop.f32.mrb[0].mxu0
        %6211 = vdwg.mxu0
        %v6212 = vadd.f32 %v5230, %v6206
        %v6213 = vadd.f32 %v5231, %v6208
        %s6214 = scalar_lea.vmem %s10, 2
        %v6215 = vld [vmem:[%s6214] sm:$0x3]
        %s6216 = scalar_lea.vmem %s11, 2
        %v6217 = vld [vmem:[%s6216] sm:$0x3]
        %v6218 = vadd.f32 %v6212, %v6213
        %6219 = vadd.xlane.f32.xlu0 %v6218
        %v6220 = vpop.xlane.xlu0 %6219
        %v6221 = vmul.f32 %v6220, %v2476
        %v6222 = vsub.f32 %v6212, %v6221
        %v6223 = vsub.f32 %v6213, %v6221
        %v6224 = vmul.f32 %v6222, %v6222
        %v6225 = vmul.f32 %v6223, %v6223
        %v6226 = vadd.f32 %v6224, %v6225
        %6227 = vadd.xlane.f32.xlu0 %v6226
        %v6228 = vpop.xlane.xlu0 %6227
        %v6229 = vmul.f32 %v6228, %v2476
        %v6230 = vadd.f32 %v6229, 1e-05
        %v6231 = vrsqrt.pop %v6230
        %v6232 = vmul.f32 %v6222, %v6231
        %v6233 = vmul.f32 %v6223, %v6231
        %v6235 = vlaneseq
        %v6236 = vshrl.u32 %v6235, 7
        %v6237 = vsub.s32 0, %v6236
        %v6238 = vrot.slane %v6215, %v6237
        %v6239 = vlaneseq
        %v6240 = vshrl.u32 %v6239, 7
        %v6241 = vsub.s32 1, %v6240
        %v6242 = vrot.slane %v6215, %v6241
        %v6245 = vmul.f32 %v6232, %v6238
        %v6246 = vmul.f32 %v6233, %v6242
        %v6248 = vlaneseq
        %v6249 = vshrl.u32 %v6248, 7
        %v6250 = vsub.s32 0, %v6249
        %v6251 = vrot.slane %v6217, %v6250
        %v6252 = vlaneseq
        %v6253 = vshrl.u32 %v6252, 7
        %v6254 = vsub.s32 1, %v6253
        %v6255 = vrot.slane %v6217, %v6254
        %v6258 = vadd.f32 %v6245, %v6251
        %v6259 = vadd.f32 %v6246, %v6255
        %v6260 = vld [vmem:[%s16] sm:$0x3]
        %v6262 = vlaneseq
        %v6263 = vshrl.u32 %v6262, 7
        %v6264 = vsub.s32 0, %v6263
        %v6265 = vrot.slane %v6260, %v6264
        %v6266 = vlaneseq
        %v6267 = vshrl.u32 %v6266, 7
        %v6268 = vsub.s32 1, %v6267
        %v6269 = vrot.slane %v6260, %v6268
        %v6272 = vmul.f32 %v6258, %v6265
        %v6273 = vmul.f32 %v6259, %v6269
        %v6274 = vadd.f32 %v6272, %v6273
        %6275 = vadd.xlane.f32.xlu0 %v6274
        %v6276 = vpop.xlane.xlu0 %6275
        %v6277 = vld [vmem:[#allocation2] sm:$0x1]
        %v6279 = vlaneseq
        %v6280 = vshrl.u32 %v6279, 7
        %v6281 = vsub.s32 0, %v6280
        %v6282 = vrot.slane %v6277, %v6281
        %v6284 = vadd.f32 %v6276, %v6282
        %vm6285 = vcmask 7168
        %6286 = vst.msk [vmem:[%s658] sm:$0xff] %vm6285, %v6284
        %p6287 = scmp.lt.s32.totalorder %s35, 1
        %s6288 = scalar_select %p6287, %s35, 1
        %s6289 = smul.addr %s6288, 8
        %s6290 = scalar_lea.vmem %s18, %s6289
        // Predicated region
        $region117: #{transformer_forward.1} parent=91 // pred_check
          %p6291 = pneg %p436
        $region118: #{transformer_forward.1} parent=91 // pred_check_branch
          %6293 = sbr.rel (%p6291) target = $region120
        $region119: #{transformer_forward.1} parent=91 // pred_region
          _
        $region120: #{transformer_forward.1} parent=91 // pred_fallthru
          _
      $region92: #{transformer_forward.1} parent=5 // pred_fallthru
        _
      %p6294 = scmp.le.s32.totalorder 2, %s30
      // Predicated region
      $region121: #{transformer_forward.1} parent=5 // pred_check
        %p6295 = pneg %p6294
      $region122: #{transformer_forward.1} parent=5 // pred_check_branch
        %6297 = sbr.rel (%p6295) target = $region124
      $region123: #{transformer_forward.1} parent=5 // pred_region
        %s6298 = ssub.s32 %s30, 2
        // Predicated region
        $region125: #{transformer_forward.1} parent=123 // pred_check
          %p6299 = pneg %p442
        $region126: #{transformer_forward.1} parent=123 // pred_check_branch
          %6301 = sbr.rel (%p6299) target = $region128
        $region127: #{transformer_forward.1} parent=123 // pred_region
          %p6302 = scmp.lt.s32.totalorder %s36, 1
          %s6303 = scalar_select %p6302, %s36, 1
          %s6304 = smul.addr %s6303, 8
          %s6305 = scalar_lea.vmem %s18, %s6304
        $region128: #{transformer_forward.1} parent=123 // pred_fallthru
          _
      $region124: #{transformer_forward.1} parent=5 // pred_fallthru
        _
    $region6: #{transformer_forward.1} parent=1 // loop_footer
      %s34 = sadd.s32 1, %s30
    $region7: #{transformer_forward.1} parent=1 // loop_footer_branch
      %29 = sbr.rel target = $region3
    $region8: #{transformer_forward.1} parent=1 // loop_exit
      _
    %6306 = vsyncpa [#allocation4], 1
    %s6307 = scalar_lea.sflag [#allocation4], 1
    %6308 = vsyncpa %s6307, 1
    %6309 = vsyncpa [#allocation6], 1
    %6310 = vsyncpa [#allocation9], 1
    %6311 = vsyncpa [#allocation12], 1

</llo_original>
